<compile_context>
chip_gen: v7x
topology: tpu7x:2x2x1
jax: 0.10.0
libtpu: 0.0.40
codegen_flags: <defaults>
</compile_context>

<pallas_src>
import functools

import jax
import jax.numpy as jnp
from jax.experimental import pallas as pl
from jax.experimental.pallas import tpu as pltpu


def _round_up(x, m):
    return ((x + m - 1) // m) * m


def _layernorm(h, g, be, inv_h, eps):
    # One-pass stats: mu = E[h], var = E[h^2] - mu^2 (clamped at 0).
    s = jnp.sum(h, axis=-1, keepdims=True)
    s2 = jnp.sum(h * h, axis=-1, keepdims=True)
    mu = s * inv_h
    var = jnp.maximum(s2 * inv_h - mu * mu, 0.0)
    scale = g * jax.lax.rsqrt(var + eps)
    return (h - mu) * scale + be


def critic_kernel(s_ref, a_ref, w1s_ref, w1a_ref, w2_ref, vecs_ref, o_ref):
    eps = 1e-5
    hdim = w2_ref.shape[0]
    inv_h = 1.0 / hdim

    b1 = vecs_ref[0:1, :]
    g1 = vecs_ref[1:2, :]
    be1 = vecs_ref[2:3, :]
    b2 = vecs_ref[3:4, :]
    g2 = vecs_ref[4:5, :]
    be2 = vecs_ref[5:6, :]
    w3 = vecs_ref[6:7, :]
    b3 = vecs_ref[7:8, 0:1]

    # Layer 1: fused (state|action) @ w1 without materializing the concat.
    h = jnp.dot(s_ref[...], w1s_ref[...], preferred_element_type=jnp.float32)
    h = h + jnp.dot(a_ref[...], w1a_ref[...], preferred_element_type=jnp.float32)
    h = jnp.maximum(h + b1, 0.0)
    h = _layernorm(h, g1, be1, inv_h, eps)

    # Layer 2
    h = jnp.dot(h, w2_ref[...], preferred_element_type=jnp.float32)
    h = jnp.maximum(h + b2, 0.0)
    h = _layernorm(h, g2, be2, inv_h, eps)

    # Head: (1, H) contracted with (TB, H) over H -> (1, TB) lane-dense row.
    o = jax.lax.dot_general(
        w3, h,
        dimension_numbers=(((1,), (1,)), ((), ())),
        preferred_element_type=jnp.float32,
    )
    o_ref[...] = (o + b3).astype(o_ref.dtype)


def critic_forward(state, action, params, *, tb=256):
    B, obs_dim = state.shape
    act_dim = action.shape[1]
    H = params["w1"].shape[1]

    # Pick a batch tile; pad B to a multiple of it (lane-dense output wants >=128).
    tb = min(tb, _round_up(B, 128))
    Bp = _round_up(B, tb)
    if Bp != B:
        state = jnp.pad(state, ((0, Bp - B), (0, 0)))
        action = jnp.pad(action, ((0, Bp - B), (0, 0)))

    # Split layer-1 weight to avoid the HBM concat of [state, action].
    w1 = params["w1"]
    w1s = w1[:obs_dim]
    w1a = w1[obs_dim:]
    w2 = params["w2"]

    # Pack all per-feature vectors + head weight/bias into one (8, H) array.
    b3_row = jnp.zeros((H,), jnp.float32).at[0].set(params["b3"].reshape(()))
    vecs = jnp.stack(
        [params["b1"][0], params["g1"][0], params["be1"][0],
         params["b2"][0], params["g2"][0], params["be2"][0],
         params["w3"][:, 0], b3_row],
        axis=0,
    )

    grid = (Bp // tb,)
    d_in = obs_dim + act_dim
    flops = 2 * Bp * (d_in * H + H * H + H)
    bytes_accessed = 4 * (Bp * d_in + d_in * H + H * H + 8 * H + Bp)
    cost = pl.CostEstimate(
        flops=flops, transcendentals=2 * Bp, bytes_accessed=bytes_accessed)

    out = pl.pallas_call(
        critic_kernel,
        out_shape=jax.ShapeDtypeStruct((1, Bp), jnp.float32),
        grid=grid,
        in_specs=[
            pl.BlockSpec((tb, obs_dim), lambda i: (i, 0)),
            pl.BlockSpec((tb, act_dim), lambda i: (i, 0)),
            pl.BlockSpec((obs_dim, H), lambda i: (0, 0)),
            pl.BlockSpec((act_dim, H), lambda i: (0, 0)),
            pl.BlockSpec((H, H), lambda i: (0, 0)),
            pl.BlockSpec((8, H), lambda i: (0, 0)),
        ],
        out_specs=pl.BlockSpec((1, tb), lambda i: (0, i)),
        compiler_params=pltpu.CompilerParams(
            dimension_semantics=("parallel",)),
        cost_estimate=cost,
    )(state, action, w1s, w1a, w2, vecs)

    return out[0, :B].reshape(B, 1)


def init_params(key, obs_dim, action_dim, hidden_dim):
    """Deterministic synthetic init (PyTorch-like uniform bounds)."""
    d_in = obs_dim + action_dim
    ks = jax.random.split(key, 6)

    def lin(kw, kb, fan_in, fan_out):
        bound = 1.0 / jnp.sqrt(fan_in)
        w = jax.random.uniform(kw, (fan_in, fan_out), jnp.float32, -bound, bound)
        b = jax.random.uniform(kb, (1, fan_out), jnp.float32, -bound, bound)
        return w, b

    w1, b1 = lin(ks[0], ks[1], d_in, hidden_dim)
    w2, b2 = lin(ks[2], ks[3], hidden_dim, hidden_dim)
    w3, b3 = lin(ks[4], ks[5], hidden_dim, 1)
    return {
        "w1": w1, "b1": b1,
        "g1": jnp.ones((1, hidden_dim), jnp.float32),
        "be1": jnp.zeros((1, hidden_dim), jnp.float32),
        "w2": w2, "b2": b2,
        "g2": jnp.ones((1, hidden_dim), jnp.float32),
        "be2": jnp.zeros((1, hidden_dim), jnp.float32),
        "w3": w3, "b3": b3,
    }


def critic_reference(state, action, params):
    """Plain-JAX reference matching the PyTorch module semantics."""
    eps = 1e-5
    x = jnp.concatenate([state, action], axis=-1)

    def ln(h, g, b):
        mu = jnp.mean(h, axis=-1, keepdims=True)
        var = jnp.mean((h - mu) ** 2, axis=-1, keepdims=True)
        return (h - mu) / jnp.sqrt(var + eps) * g + b

    h = jnp.maximum(x @ params["w1"] + params["b1"], 0.0)
    h = ln(h, params["g1"], params["be1"])
    h = jnp.maximum(h @ params["w2"] + params["b2"], 0.0)
    h = ln(h, params["g2"], params["be2"])
    return h @ params["w3"] + params["b3"]


if __name__ == "__main__":
    obs_dim, action_dim, hidden_dim = 12, 4, 256   # module default hidden=256
    batch = 512

    key = jax.random.PRNGKey(0)
    k_p, k_s, k_a = jax.random.split(key, 3)
    params = init_params(k_p, obs_dim, action_dim, hidden_dim)
    state = jax.random.normal(k_s, (batch, obs_dim), jnp.float32)
    action = jax.random.normal(k_a, (batch, action_dim), jnp.float32)

    fwd = functools.partial(critic_forward, tb=256)   # grid of 2 batch tiles
    out = fwd(state, action, params)
    out = jax.block_until_ready(out)

    ref = critic_reference(state, action, params)
    assert out.shape == (batch, 1), out.shape
    assert jnp.allclose(out, ref, atol=1e-4, rtol=1e-4), float(
        jnp.max(jnp.abs(out - ref)))

    print("KERNEL_OK")
</pallas_src>

<mosaic_0001>
module attributes {stable_mosaic.version = 11 : i64} {
  func.func @critic_kernel(%arg0: i32, %arg1: memref<256x12xf32, #tpu.memory_space<vmem>>, %arg2: memref<256x4xf32, #tpu.memory_space<vmem>>, %arg3: memref<12x256xf32, #tpu.memory_space<vmem>>, %arg4: memref<4x256xf32, #tpu.memory_space<vmem>>, %arg5: memref<256x256xf32, #tpu.memory_space<vmem>>, %arg6: memref<8x256xf32, #tpu.memory_space<vmem>>, %arg7: memref<1x256xf32, #tpu.memory_space<vmem>>) attributes {dimension_semantics = [#tpu.dimension_semantics<parallel>], iteration_bounds = array<i64: 2>, scalar_prefetch = 0 : i64, scratch_operands = 0 : i64, tpu.core_type = #tpu.core_type<tc>, window_params = [{transform_indices = @transform_0, window_bounds = array<i64: 256, 12>}, {transform_indices = @transform_1, window_bounds = array<i64: 256, 4>}, {pipeline_mode = #tpu.pipeline_mode<synchronous>, transform_indices = @transform_2, window_bounds = array<i64: 12, 256>}, {pipeline_mode = #tpu.pipeline_mode<synchronous>, transform_indices = @transform_3, window_bounds = array<i64: 4, 256>}, {pipeline_mode = #tpu.pipeline_mode<synchronous>, transform_indices = @transform_4, window_bounds = array<i64: 256, 256>}, {pipeline_mode = #tpu.pipeline_mode<synchronous>, transform_indices = @transform_5, window_bounds = array<i64: 8, 256>}, {transform_indices = @transform_6, window_bounds = array<i64: 1, 256>}]} {
    %c0 = arith.constant 0 : index
    %c0_0 = arith.constant 0 : index
    %0 = vector.load %arg6[%c0, %c0_0] : memref<8x256xf32, #tpu.memory_space<vmem>>, vector<1x256xf32>
    %c1 = arith.constant 1 : index
    %c0_1 = arith.constant 0 : index
    %1 = vector.load %arg6[%c1, %c0_1] : memref<8x256xf32, #tpu.memory_space<vmem>>, vector<1x256xf32>
    %c2 = arith.constant 2 : index
    %c0_2 = arith.constant 0 : index
    %2 = vector.load %arg6[%c2, %c0_2] : memref<8x256xf32, #tpu.memory_space<vmem>>, vector<1x256xf32>
    %c3 = arith.constant 3 : index
    %c0_3 = arith.constant 0 : index
    %3 = vector.load %arg6[%c3, %c0_3] : memref<8x256xf32, #tpu.memory_space<vmem>>, vector<1x256xf32>
    %c4 = arith.constant 4 : index
    %c0_4 = arith.constant 0 : index
    %4 = vector.load %arg6[%c4, %c0_4] : memref<8x256xf32, #tpu.memory_space<vmem>>, vector<1x256xf32>
    %c5 = arith.constant 5 : index
    %c0_5 = arith.constant 0 : index
    %5 = vector.load %arg6[%c5, %c0_5] : memref<8x256xf32, #tpu.memory_space<vmem>>, vector<1x256xf32>
    %c6 = arith.constant 6 : index
    %c0_6 = arith.constant 0 : index
    %6 = vector.load %arg6[%c6, %c0_6] : memref<8x256xf32, #tpu.memory_space<vmem>>, vector<1x256xf32>
    %c7 = arith.constant 7 : index
    %c0_7 = arith.constant 0 : index
    %7 = vector.load %arg6[%c7, %c0_7] : memref<8x256xf32, #tpu.memory_space<vmem>>, vector<1x1xf32>
    %c0_8 = arith.constant 0 : index
    %c0_9 = arith.constant 0 : index
    %8 = vector.load %arg1[%c0_8, %c0_9] : memref<256x12xf32, #tpu.memory_space<vmem>>, vector<256x12xf32>
    %c0_10 = arith.constant 0 : index
    %c0_11 = arith.constant 0 : index
    %9 = vector.load %arg3[%c0_10, %c0_11] : memref<12x256xf32, #tpu.memory_space<vmem>>, vector<12x256xf32>
    %cst = arith.constant dense<0.000000e+00> : vector<256x256xf32>
    %10 = tpu.matmul %8, %9, %cst {dimension_numbers = #tpu.dot_dimension_numbers<[1], [0], [0], [1], [0, 0, 1, 1], [], []>} : vector<256x12xf32>, vector<12x256xf32>, vector<256x256xf32> -> vector<256x256xf32>
    %c0_12 = arith.constant 0 : index
    %c0_13 = arith.constant 0 : index
    %11 = vector.load %arg2[%c0_12, %c0_13] : memref<256x4xf32, #tpu.memory_space<vmem>>, vector<256x4xf32>
    %c0_14 = arith.constant 0 : index
    %c0_15 = arith.constant 0 : index
    %12 = vector.load %arg4[%c0_14, %c0_15] : memref<4x256xf32, #tpu.memory_space<vmem>>, vector<4x256xf32>
    %cst_16 = arith.constant dense<0.000000e+00> : vector<256x256xf32>
    %13 = tpu.matmul %11, %12, %cst_16 {dimension_numbers = #tpu.dot_dimension_numbers<[1], [0], [0], [1], [0, 0, 1, 1], [], []>} : vector<256x4xf32>, vector<4x256xf32>, vector<256x256xf32> -> vector<256x256xf32>
    %14 = arith.addf %10, %13 : vector<256x256xf32>
    %15 = vector.broadcast %0 : vector<1x256xf32> to vector<256x256xf32>
    %16 = arith.addf %14, %15 : vector<256x256xf32>
    %cst_17 = arith.constant 0.000000e+00 : f32
    %17 = vector.broadcast %cst_17 : f32 to vector<256x256xf32>
    %18 = arith.maximumf %16, %17 : vector<256x256xf32>
    %cst_18 = arith.constant dense<0.000000e+00> : vector<256xf32>
    %19 = vector.multi_reduction <add>, %18, %cst_18 [1] : vector<256x256xf32> to vector<256xf32>
    %20 = vector.shape_cast %19 : vector<256xf32> to vector<256x1xf32>
    %21 = arith.mulf %18, %18 : vector<256x256xf32>
    %cst_19 = arith.constant dense<0.000000e+00> : vector<256xf32>
    %22 = vector.multi_reduction <add>, %21, %cst_19 [1] : vector<256x256xf32> to vector<256xf32>
    %23 = vector.shape_cast %22 : vector<256xf32> to vector<256x1xf32>
    %cst_20 = arith.constant 3.906250e-03 : f32
    %24 = vector.broadcast %cst_20 : f32 to vector<256x1xf32>
    %25 = arith.mulf %20, %24 : vector<256x1xf32>
    %cst_21 = arith.constant 3.906250e-03 : f32
    %26 = vector.broadcast %cst_21 : f32 to vector<256x1xf32>
    %27 = arith.mulf %23, %26 : vector<256x1xf32>
    %28 = arith.mulf %25, %25 : vector<256x1xf32>
    %29 = arith.subf %27, %28 : vector<256x1xf32>
    %cst_22 = arith.constant 0.000000e+00 : f32
    %30 = vector.broadcast %cst_22 : f32 to vector<256x1xf32>
    %31 = arith.maximumf %29, %30 : vector<256x1xf32>
    %cst_23 = arith.constant 9.99999974E-6 : f32
    %32 = vector.broadcast %cst_23 : f32 to vector<256x1xf32>
    %33 = arith.addf %31, %32 : vector<256x1xf32>
    %34 = math.rsqrt %33 : vector<256x1xf32>
    %35 = vector.broadcast %1 : vector<1x256xf32> to vector<256x256xf32>
    %36 = vector.broadcast %34 : vector<256x1xf32> to vector<256x256xf32>
    %37 = arith.mulf %35, %36 : vector<256x256xf32>
    %38 = vector.broadcast %25 : vector<256x1xf32> to vector<256x256xf32>
    %39 = arith.subf %18, %38 : vector<256x256xf32>
    %40 = arith.mulf %39, %37 : vector<256x256xf32>
    %41 = vector.broadcast %2 : vector<1x256xf32> to vector<256x256xf32>
    %42 = arith.addf %40, %41 : vector<256x256xf32>
    %c0_24 = arith.constant 0 : index
    %c0_25 = arith.constant 0 : index
    %43 = vector.load %arg5[%c0_24, %c0_25] : memref<256x256xf32, #tpu.memory_space<vmem>>, vector<256x256xf32>
    %cst_26 = arith.constant dense<0.000000e+00> : vector<256x256xf32>
    %44 = tpu.matmul %42, %43, %cst_26 {dimension_numbers = #tpu.dot_dimension_numbers<[1], [0], [0], [1], [0, 0, 1, 1], [], []>} : vector<256x256xf32>, vector<256x256xf32>, vector<256x256xf32> -> vector<256x256xf32>
    %45 = vector.broadcast %3 : vector<1x256xf32> to vector<256x256xf32>
    %46 = arith.addf %44, %45 : vector<256x256xf32>
    %cst_27 = arith.constant 0.000000e+00 : f32
    %47 = vector.broadcast %cst_27 : f32 to vector<256x256xf32>
    %48 = arith.maximumf %46, %47 : vector<256x256xf32>
    %cst_28 = arith.constant dense<0.000000e+00> : vector<256xf32>
    %49 = vector.multi_reduction <add>, %48, %cst_28 [1] : vector<256x256xf32> to vector<256xf32>
    %50 = vector.shape_cast %49 : vector<256xf32> to vector<256x1xf32>
    %51 = arith.mulf %48, %48 : vector<256x256xf32>
    %cst_29 = arith.constant dense<0.000000e+00> : vector<256xf32>
    %52 = vector.multi_reduction <add>, %51, %cst_29 [1] : vector<256x256xf32> to vector<256xf32>
    %53 = vector.shape_cast %52 : vector<256xf32> to vector<256x1xf32>
    %cst_30 = arith.constant 3.906250e-03 : f32
    %54 = vector.broadcast %cst_30 : f32 to vector<256x1xf32>
    %55 = arith.mulf %50, %54 : vector<256x1xf32>
    %cst_31 = arith.constant 3.906250e-03 : f32
    %56 = vector.broadcast %cst_31 : f32 to vector<256x1xf32>
    %57 = arith.mulf %53, %56 : vector<256x1xf32>
    %58 = arith.mulf %55, %55 : vector<256x1xf32>
    %59 = arith.subf %57, %58 : vector<256x1xf32>
    %cst_32 = arith.constant 0.000000e+00 : f32
    %60 = vector.broadcast %cst_32 : f32 to vector<256x1xf32>
    %61 = arith.maximumf %59, %60 : vector<256x1xf32>
    %cst_33 = arith.constant 9.99999974E-6 : f32
    %62 = vector.broadcast %cst_33 : f32 to vector<256x1xf32>
    %63 = arith.addf %61, %62 : vector<256x1xf32>
    %64 = math.rsqrt %63 : vector<256x1xf32>
    %65 = vector.broadcast %4 : vector<1x256xf32> to vector<256x256xf32>
    %66 = vector.broadcast %64 : vector<256x1xf32> to vector<256x256xf32>
    %67 = arith.mulf %65, %66 : vector<256x256xf32>
    %68 = vector.broadcast %55 : vector<256x1xf32> to vector<256x256xf32>
    %69 = arith.subf %48, %68 : vector<256x256xf32>
    %70 = arith.mulf %69, %67 : vector<256x256xf32>
    %71 = vector.broadcast %5 : vector<1x256xf32> to vector<256x256xf32>
    %72 = arith.addf %70, %71 : vector<256x256xf32>
    %cst_34 = arith.constant dense<0.000000e+00> : vector<1x256xf32>
    %73 = tpu.matmul %6, %72, %cst_34 {dimension_numbers = #tpu.dot_dimension_numbers<[1], [1], [0], [0], [0, 0, 1, 0], [], []>} : vector<1x256xf32>, vector<256x256xf32>, vector<1x256xf32> -> vector<1x256xf32>
    %74 = vector.broadcast %7 : vector<1x1xf32> to vector<1x256xf32>
    %75 = arith.addf %73, %74 : vector<1x256xf32>
    %c0_35 = arith.constant 0 : index
    %c0_36 = arith.constant 0 : index
    %76 = vector.load %arg7[%c0_35, %c0_36] : memref<1x256xf32, #tpu.memory_space<vmem>>, vector<1x256xf32>
    tpu.vector_store %arg7[%c0_35, %c0_36], %75 {strides = array<i32>} : memref<1x256xf32, #tpu.memory_space<vmem>>, vector<1x256xf32>,
    return
  }
  func.func @transform_0(%arg0: i32) -> (i32, i32) {
    %c0_i32 = arith.constant 0 : i32
    %c0_i32_0 = arith.constant 0 : i32
    return %arg0, %c0_i32 : i32, i32
  }
  func.func @transform_1(%arg0: i32) -> (i32, i32) {
    %c0_i32 = arith.constant 0 : i32
    %c0_i32_0 = arith.constant 0 : i32
    return %arg0, %c0_i32 : i32, i32
  }
  func.func @transform_2(%arg0: i32) -> (i32, i32) {
    %c0_i32 = arith.constant 0 : i32
    %c0_i32_0 = arith.constant 0 : i32
    %c0_i32_1 = arith.constant 0 : i32
    return %c0_i32, %c0_i32_0 : i32, i32
  }
  func.func @transform_3(%arg0: i32) -> (i32, i32) {
    %c0_i32 = arith.constant 0 : i32
    %c0_i32_0 = arith.constant 0 : i32
    %c0_i32_1 = arith.constant 0 : i32
    return %c0_i32, %c0_i32_0 : i32, i32
  }
  func.func @transform_4(%arg0: i32) -> (i32, i32) {
    %c0_i32 = arith.constant 0 : i32
    %c0_i32_0 = arith.constant 0 : i32
    %c0_i32_1 = arith.constant 0 : i32
    return %c0_i32, %c0_i32_0 : i32, i32
  }
  func.func @transform_5(%arg0: i32) -> (i32, i32) {
    %c0_i32 = arith.constant 0 : i32
    %c0_i32_0 = arith.constant 0 : i32
    %c0_i32_1 = arith.constant 0 : i32
    return %c0_i32, %c0_i32_0 : i32, i32
  }
  func.func @transform_6(%arg0: i32) -> (i32, i32) {
    %c0_i32 = arith.constant 0 : i32
    %c0_i32_0 = arith.constant 0 : i32
    return %c0_i32, %arg0 : i32, i32
  }
}

</mosaic_0001>

<llo_original>
// kernel: tpu_custom_call.1
$region0: #{tpu_custom_call.1}
  #allocation0 [shape = 'u32[]', space=smem, size = 0x4, offset = 0x4, fixed_abs, tag = 'smem constant byte address 0x4 - core index']
  #allocation1 [shape = 'u32[144,128]{1,0:T(1,128)}', space=vmem, size = 0x12000, scoped, tag = 'internal scratch']
  %s0 = inlined_call_operand.vmem [shape: f32[512,12], index: 0, kind: input, shape index: {}]
  %s1 = inlined_call_operand.vmem [shape: f32[512,4], index: 1, kind: input, shape index: {}]
  %s2 = inlined_call_operand.vmem [shape: f32[12,256], index: 2, kind: input, shape index: {}]
  %s3 = inlined_call_operand.vmem [shape: f32[4,256], index: 3, kind: input, shape index: {}]
  %s4 = inlined_call_operand.vmem [shape: f32[256,256], index: 4, kind: input, shape index: {}]
  %s5 = inlined_call_operand.vmem [shape: f32[8,256], index: 5, kind: input, shape index: {}]
  %s6 = inlined_call_operand.hbm [shape: f32[1,512], index: 6, kind: output, shape index: {}]
  %s7 = sld [smem:[#allocation0]]
  $region57: #{tpu_custom_call.1} parent=0
    _
  %s9 = ssub.s32 1, %s7
  %s10 = scalar_select 0, %s9, %s7
  $region1: #{tpu_custom_call.1} parent=0
    #allocation2 [shape = 'u8[2048]{0}', space=vmem, size = 0x800, scoped, tag = 'output window, operand 0']
    #allocation3 [shape = 's32[2]{0}', space=sflag, size = 0x8, scoped, tag = 'scoped memory for tpu_custom_call.1']
    %11 = vsyncpa [#allocation3], 0
    %s12 = scalar_lea.sflag [#allocation3], 1
    %13 = vsyncpa %s12, 0
    loop: start=0, step=1, limit=4
    $region2: #{tpu_custom_call.1} parent=1 // loop_pre_header
      _
    $region3: #{tpu_custom_call.1} parent=1 // loop_header
      %s15 = sphi 0, %s19
      %p16 = scmp.ge.s32.totalorder %s15, 4
      %s25 = sphi 0, %s27
      %s28 = sphi 0, %s25
      %s29 = sphi 0, %s28
      %s45 = sphi 0, %s29
      %s51 = sphi 0, %s53
      %s54 = sphi 0, %s51
      %s55 = sphi 0, %s54
      %s71 = sphi 0, %s55
      %s75 = sphi 0, %s75
      %s77 = sphi 0, %s75
      %s78 = sphi 0, %s77
      %s92 = sphi 0, %s78
      %s96 = sphi 0, %s96
      %s98 = sphi 0, %s96
      %s99 = sphi 0, %s98
      %s113 = sphi 0, %s99
      %s117 = sphi 0, %s117
      %s119 = sphi 0, %s117
      %s120 = sphi 0, %s119
      %s134 = sphi 0, %s120
      %s138 = sphi 0, %s138
      %s140 = sphi 0, %s138
      %s141 = sphi 0, %s140
      %s155 = sphi 0, %s141
      %s161 = sphi 0, %s163
      %s164 = sphi 0, %s161
      %s165 = sphi 0, %s164
      %s181 = sphi 0, %s165
    $region4: #{tpu_custom_call.1} parent=1 // loop_header_branch
      %18 = sbr.rel (%p16) target = $region8
    $region5: #{tpu_custom_call.1} parent=1 // loop_body
      %s20 = ssub.s32 %s15, 1
      %s21 = ssub.s32 %s15, 2
      %s22 = sadd.s32 %s15, 1
      %s23 = ssub.s32 %s15, %s22
      %p24 = scmp.eq.s32.totalorder %s23, 0
      %s26 = sadd.s32 %s25, 1
      %s27 = scalar_select %p24, %s25, %s26
      %p30 = pneg %p24
      %p31 = scmp.eq.s32.totalorder %s15, 1
      %p32 = por %p30, %p31
      %p33 = scmp.ne.s32.totalorder %s25, %s28
      %p34 = scmp.eq.s32.totalorder %s15, 0
      %p35 = por %p33, %p34
      %p36 = scmp.ne.s32.totalorder %s25, %s28
      %p37 = scmp.eq.s32.totalorder %s20, 1
      %p38 = por %p36, %p37
      %p39 = scmp.ne.s32.totalorder %s28, %s29
      %p40 = scmp.eq.s32.totalorder %s20, 0
      %p41 = por %p39, %p40
      %p42 = scmp.ne.s32.totalorder %s28, %s29
      %p43 = scmp.eq.s32.totalorder %s21, 1
      %p44 = por %p42, %p43
      %p46 = scmp.ne.s32.totalorder %s29, %s45
      %p47 = scmp.eq.s32.totalorder %s21, 0
      %p48 = por %p46, %p47
      %s49 = ssub.s32 %s15, %s22
      %p50 = scmp.eq.s32.totalorder %s49, 0
      %s52 = sadd.s32 %s51, 1
      %s53 = scalar_select %p50, %s51, %s52
      %p56 = pneg %p50
      %p57 = scmp.eq.s32.totalorder %s15, 1
      %p58 = por %p56, %p57
      %p59 = scmp.ne.s32.totalorder %s51, %s54
      %p60 = scmp.eq.s32.totalorder %s15, 0
      %p61 = por %p59, %p60
      %p62 = scmp.ne.s32.totalorder %s51, %s54
      %p63 = scmp.eq.s32.totalorder %s20, 1
      %p64 = por %p62, %p63
      %p65 = scmp.ne.s32.totalorder %s54, %s55
      %p66 = scmp.eq.s32.totalorder %s20, 0
      %p67 = por %p65, %p66
      %p68 = scmp.ne.s32.totalorder %s54, %s55
      %p69 = scmp.eq.s32.totalorder %s21, 1
      %p70 = por %p68, %p69
      %p72 = scmp.ne.s32.totalorder %s55, %s71
      %p73 = scmp.eq.s32.totalorder %s21, 0
      %p74 = por %p72, %p73
      %s76 = sadd.s32 %s75, 1
      %p79 = scmp.eq.s32.totalorder %s15, 1
      %p80 = scmp.ne.s32.totalorder %s75, %s77
      %p81 = scmp.eq.s32.totalorder %s15, 0
      %p82 = por %p80, %p81
      %p83 = scmp.ne.s32.totalorder %s75, %s77
      %p84 = scmp.eq.s32.totalorder %s20, 1
      %p85 = por %p83, %p84
      %p86 = scmp.ne.s32.totalorder %s77, %s78
      %p87 = scmp.eq.s32.totalorder %s20, 0
      %p88 = por %p86, %p87
      %p89 = scmp.ne.s32.totalorder %s77, %s78
      %p90 = scmp.eq.s32.totalorder %s21, 1
      %p91 = por %p89, %p90
      %p93 = scmp.ne.s32.totalorder %s78, %s92
      %p94 = scmp.eq.s32.totalorder %s21, 0
      %p95 = por %p93, %p94
      %s97 = sadd.s32 %s96, 1
      %p100 = scmp.eq.s32.totalorder %s15, 1
      %p101 = scmp.ne.s32.totalorder %s96, %s98
      %p102 = scmp.eq.s32.totalorder %s15, 0
      %p103 = por %p101, %p102
      %p104 = scmp.ne.s32.totalorder %s96, %s98
      %p105 = scmp.eq.s32.totalorder %s20, 1
      %p106 = por %p104, %p105
      %p107 = scmp.ne.s32.totalorder %s98, %s99
      %p108 = scmp.eq.s32.totalorder %s20, 0
      %p109 = por %p107, %p108
      %p110 = scmp.ne.s32.totalorder %s98, %s99
      %p111 = scmp.eq.s32.totalorder %s21, 1
      %p112 = por %p110, %p111
      %p114 = scmp.ne.s32.totalorder %s99, %s113
      %p115 = scmp.eq.s32.totalorder %s21, 0
      %p116 = por %p114, %p115
      %s118 = sadd.s32 %s117, 1
      %p121 = scmp.eq.s32.totalorder %s15, 1
      %p122 = scmp.ne.s32.totalorder %s117, %s119
      %p123 = scmp.eq.s32.totalorder %s15, 0
      %p124 = por %p122, %p123
      %p125 = scmp.ne.s32.totalorder %s117, %s119
      %p126 = scmp.eq.s32.totalorder %s20, 1
      %p127 = por %p125, %p126
      %p128 = scmp.ne.s32.totalorder %s119, %s120
      %p129 = scmp.eq.s32.totalorder %s20, 0
      %p130 = por %p128, %p129
      %p131 = scmp.ne.s32.totalorder %s119, %s120
      %p132 = scmp.eq.s32.totalorder %s21, 1
      %p133 = por %p131, %p132
      %p135 = scmp.ne.s32.totalorder %s120, %s134
      %p136 = scmp.eq.s32.totalorder %s21, 0
      %p137 = por %p135, %p136
      %s139 = sadd.s32 %s138, 1
      %p142 = scmp.eq.s32.totalorder %s15, 1
      %p143 = scmp.ne.s32.totalorder %s138, %s140
      %p144 = scmp.eq.s32.totalorder %s15, 0
      %p145 = por %p143, %p144
      %p146 = scmp.ne.s32.totalorder %s138, %s140
      %p147 = scmp.eq.s32.totalorder %s20, 1
      %p148 = por %p146, %p147
      %p149 = scmp.ne.s32.totalorder %s140, %s141
      %p150 = scmp.eq.s32.totalorder %s20, 0
      %p151 = por %p149, %p150
      %p152 = scmp.ne.s32.totalorder %s140, %s141
      %p153 = scmp.eq.s32.totalorder %s21, 1
      %p154 = por %p152, %p153
      %p156 = scmp.ne.s32.totalorder %s141, %s155
      %p157 = scmp.eq.s32.totalorder %s21, 0
      %p158 = por %p156, %p157
      %s159 = ssub.s32 %s15, %s22
      %p160 = scmp.eq.s32.totalorder %s159, 0
      %s162 = sadd.s32 %s161, 1
      %s163 = scalar_select %p160, %s161, %s162
      %p166 = pneg %p160
      %p167 = scmp.eq.s32.totalorder %s15, 1
      %p168 = por %p166, %p167
      %p169 = scmp.ne.s32.totalorder %s161, %s164
      %p170 = scmp.eq.s32.totalorder %s15, 0
      %p171 = por %p169, %p170
      %p172 = scmp.ne.s32.totalorder %s161, %s164
      %p173 = scmp.eq.s32.totalorder %s20, 1
      %p174 = por %p172, %p173
      %p175 = scmp.ne.s32.totalorder %s164, %s165
      %p176 = scmp.eq.s32.totalorder %s20, 0
      %p177 = por %p175, %p176
      %p178 = scmp.ne.s32.totalorder %s164, %s165
      %p179 = scmp.eq.s32.totalorder %s21, 1
      %p180 = por %p178, %p179
      %p182 = scmp.ne.s32.totalorder %s165, %s181
      %p183 = scmp.eq.s32.totalorder %s21, 0
      %p184 = por %p182, %p183
      %p185 = scmp.le.s32.totalorder 1, %s15
      %p186 = scmp.lt.s32.totalorder %s15, 3
      %p187 = pnand %p185, %p186
      %p188 = pneg %p187
      // Predicated region
      $region9: #{tpu_custom_call.1} parent=5 // pred_check
        _
      $region10: #{tpu_custom_call.1} parent=5 // pred_check_branch
        %190 = sbr.rel (%p187) target = $region12
      $region11: #{tpu_custom_call.1} parent=5 // pred_region
        %s191 = ssub.s32 %s15, 1
        // Predicated region
        $region13: #{tpu_custom_call.1} parent=11 // pred_check
          %p192 = pneg %p88
        $region14: #{tpu_custom_call.1} parent=11 // pred_check_branch
          %194 = sbr.rel (%p192) target = $region16
        $region15: #{tpu_custom_call.1} parent=11 // pred_region
          _
        $region16: #{tpu_custom_call.1} parent=11 // pred_fallthru
          _
        // Predicated region
        $region17: #{tpu_custom_call.1} parent=11 // pred_check
          %p195 = pneg %p109
        $region18: #{tpu_custom_call.1} parent=11 // pred_check_branch
          %197 = sbr.rel (%p195) target = $region20
        $region19: #{tpu_custom_call.1} parent=11 // pred_region
          _
        $region20: #{tpu_custom_call.1} parent=11 // pred_fallthru
          _
        // Predicated region
        $region21: #{tpu_custom_call.1} parent=11 // pred_check
          %p198 = pneg %p130
        $region22: #{tpu_custom_call.1} parent=11 // pred_check_branch
          %200 = sbr.rel (%p198) target = $region24
        $region23: #{tpu_custom_call.1} parent=11 // pred_region
          _
        $region24: #{tpu_custom_call.1} parent=11 // pred_fallthru
          _
        // Predicated region
        $region25: #{tpu_custom_call.1} parent=11 // pred_check
          %p201 = pneg %p151
        $region26: #{tpu_custom_call.1} parent=11 // pred_check_branch
          %203 = sbr.rel (%p201) target = $region28
        $region27: #{tpu_custom_call.1} parent=11 // pred_region
          _
        $region28: #{tpu_custom_call.1} parent=11 // pred_fallthru
          _
      $region12: #{tpu_custom_call.1} parent=5 // pred_fallthru
        _
      %p204 = scmp.lt.s32.totalorder %s15, 2
      // Predicated region
      $region29: #{tpu_custom_call.1} parent=5 // pred_check
        %p205 = pneg %p204
      $region30: #{tpu_custom_call.1} parent=5 // pred_check_branch
        %207 = sbr.rel (%p205) target = $region32
      $region31: #{tpu_custom_call.1} parent=5 // pred_region
        // Predicated region
        $region33: #{tpu_custom_call.1} parent=31 // pred_check
          %p208 = pneg %p35
        $region34: #{tpu_custom_call.1} parent=31 // pred_check_branch
          %210 = sbr.rel (%p208) target = $region36
        $region35: #{tpu_custom_call.1} parent=31 // pred_region
          %s211 = smul.u32 32, %s15
          %p212 = scmp.lt.s32.totalorder %s211, 63
          %s213 = scalar_select %p212, %s211, 63
          %s214 = smul.addr %s213, 8
          %s215 = scalar_lea.vmem %s0, %s214
          %s216 = smul.u32 32, %s15
        $region36: #{tpu_custom_call.1} parent=31 // pred_fallthru
          _
        // Predicated region
        $region37: #{tpu_custom_call.1} parent=31 // pred_check
          %p217 = pneg %p61
        $region38: #{tpu_custom_call.1} parent=31 // pred_check_branch
          %219 = sbr.rel (%p217) target = $region40
        $region39: #{tpu_custom_call.1} parent=31 // pred_region
          %s220 = smul.u32 32, %s15
          %p221 = scmp.lt.s32.totalorder %s220, 63
          %s222 = scalar_select %p221, %s220, 63
          %s223 = smul.addr %s222, 8
          %s224 = scalar_lea.vmem %s1, %s223
          %s225 = smul.u32 32, %s15
        $region40: #{tpu_custom_call.1} parent=31 // pred_fallthru
          _
      $region32: #{tpu_custom_call.1} parent=5 // pred_fallthru
        _
      %p226 = scmp.le.s32.totalorder 1, %s15
      %p227 = scmp.lt.s32.totalorder %s15, 3
      %p228 = pnand %p226, %p227
      %p229 = pneg %p228
      // Predicated region
      $region41: #{tpu_custom_call.1} parent=5 // pred_check
        _
      $region42: #{tpu_custom_call.1} parent=5 // pred_check_branch
        %231 = sbr.rel (%p228) target = $region44
      $region43: #{tpu_custom_call.1} parent=5 // pred_region
        %s232 = ssub.s32 %s15, 1
        %s233 = smul.u32 32, %s20
        %p234 = scmp.lt.s32.totalorder %s233, 63
        %s235 = scalar_select %p234, %s233, 63
        %s236 = smul.addr %s235, 8
        %s237 = scalar_lea.vmem %s0, %s236
        %p238 = pneg %p41
        %p239 = pneg %p38
        %s240 = smul.u32 32, %s20
        %p241 = scmp.lt.s32.totalorder %s240, 63
        %s242 = scalar_select %p241, %s240, 63
        %s243 = smul.addr %s242, 8
        %s244 = scalar_lea.vmem %s1, %s243
        %p245 = pneg %p67
        %p246 = pneg %p64
        %p247 = pneg %p88
        %p248 = pneg %p85
        %p249 = pneg %p109
        %p250 = pneg %p106
        %p251 = pneg %p130
        %p252 = pneg %p127
        %p253 = pneg %p151
        %p254 = pneg %p148
        %p255 = pneg %p177
        %p256 = pneg %p174
        %s257 = sand.u32 %s164, 1
        %s258 = scalar_lea.sflag [#allocation3], %s257
        %s259 = sand.u32 %s164, 1
        %s260 = smul.addr %s259, 2
        %s261 = scalar_lea.vmem [#allocation2], %s260
        %s262 = smul.u32 32, %s20
        %p263 = scmp.lt.s32.totalorder %s262, 63
        %s264 = scalar_select %p263, %s262, 63
        %s265 = smul.addr %s264, 8
        %s266 = scalar_lea.vmem %s0, %s265
        %s267 = smul.u32 32, %s20
        %s268 = smul.u32 32, %s20
        %p269 = scmp.lt.s32.totalorder %s268, 63
        %s270 = scalar_select %p269, %s268, 63
        %s271 = smul.addr %s270, 8
        %s272 = scalar_lea.vmem %s1, %s271
        %s273 = smul.u32 32, %s20
        %s274 = smul.u32 2, %s20
        %v275 = vld [vmem:[%s5] ss:$8 sm:$0x3]
        %s276 = scalar_lea.vmem %s5, 1
        %v277 = vld [vmem:[%s276] ss:$8 sm:$0x3]
        %s278 = scalar_lea.vmem %s5, 2
        %v279 = vld [vmem:[%s278] ss:$8 sm:$0x3]
        %s280 = scalar_lea.vmem %s5, 3
        %v281 = vld [vmem:[%s280] ss:$8 sm:$0x3]
        %s282 = scalar_lea.vmem %s5, 4
        %v283 = vld [vmem:[%s282] ss:$8 sm:$0x3]
        %s284 = scalar_lea.vmem %s5, 5
        %v285 = vld [vmem:[%s284] ss:$8 sm:$0x3]
        %s286 = scalar_lea.vmem %s5, 6
        %v287 = vld [vmem:[%s286] ss:$8 sm:$0x3]
        %v288 = vld [vmem:[%s5 + $0x7] ss:$0 sm:$0xff]
        %v289 = vld [vmem:[%s266] sm:$0xff]
        %v290 = vld [vmem:[%s266 + $0x8] sm:$0xff]
        %v291 = vld [vmem:[%s266 + $0x10] sm:$0xff]
        %v292 = vld [vmem:[%s266 + $0x18] sm:$0xff]
        %v293 = vld [vmem:[%s266 + $0x20] sm:$0xff]
        %v294 = vld [vmem:[%s266 + $0x28] sm:$0xff]
        %v295 = vld [vmem:[%s266 + $0x30] sm:$0xff]
        %v296 = vld [vmem:[%s266 + $0x38] sm:$0xff]
        %v297 = vld [vmem:[%s266 + $0x40] sm:$0xff]
        %v298 = vld [vmem:[%s266 + $0x48] sm:$0xff]
        %v299 = vld [vmem:[%s266 + $0x50] sm:$0xff]
        %v300 = vld [vmem:[%s266 + $0x58] sm:$0xff]
        %v301 = vld [vmem:[%s266 + $0x60] sm:$0xff]
        %v302 = vld [vmem:[%s266 + $0x68] sm:$0xff]
        %v303 = vld [vmem:[%s266 + $0x70] sm:$0xff]
        %v304 = vld [vmem:[%s266 + $0x78] sm:$0xff]
        %v305 = vld [vmem:[%s266 + $0x80] sm:$0xff]
        %v306 = vld [vmem:[%s266 + $0x88] sm:$0xff]
        %v307 = vld [vmem:[%s266 + $0x90] sm:$0xff]
        %v308 = vld [vmem:[%s266 + $0x98] sm:$0xff]
        %v309 = vld [vmem:[%s266 + $0xa0] sm:$0xff]
        %v310 = vld [vmem:[%s266 + $0xa8] sm:$0xff]
        %v311 = vld [vmem:[%s266 + $0xb0] sm:$0xff]
        %v312 = vld [vmem:[%s266 + $0xb8] sm:$0xff]
        %v313 = vld [vmem:[%s266 + $0xc0] sm:$0xff]
        %v314 = vld [vmem:[%s266 + $0xc8] sm:$0xff]
        %v315 = vld [vmem:[%s266 + $0xd0] sm:$0xff]
        %v316 = vld [vmem:[%s266 + $0xd8] sm:$0xff]
        %v317 = vld [vmem:[%s266 + $0xe0] sm:$0xff]
        %v318 = vld [vmem:[%s266 + $0xe8] sm:$0xff]
        %v319 = vld [vmem:[%s266 + $0xf0] sm:$0xff]
        %v320 = vld [vmem:[%s266 + $0xf8] sm:$0xff]
        %v321 = vld [vmem:[%s2] sm:$0xff]
        %v322 = vld [vmem:[%s2 + $0x8] sm:$0xff]
        %v323 = vld [vmem:[%s2 + $0x10] sm:$0xf]
        %v324 = vld [vmem:[%s2 + $0x18] sm:$0xf]
        %v325 = vld [vmem:[%s272] sm:$0xff]
        %v326 = vld [vmem:[%s272 + $0x8] sm:$0xff]
        %v327 = vld [vmem:[%s272 + $0x10] sm:$0xff]
        %v328 = vld [vmem:[%s272 + $0x18] sm:$0xff]
        %v329 = vld [vmem:[%s272 + $0x20] sm:$0xff]
        %v330 = vld [vmem:[%s272 + $0x28] sm:$0xff]
        %v331 = vld [vmem:[%s272 + $0x30] sm:$0xff]
        %v332 = vld [vmem:[%s272 + $0x38] sm:$0xff]
        %v333 = vld [vmem:[%s272 + $0x40] sm:$0xff]
        %v334 = vld [vmem:[%s272 + $0x48] sm:$0xff]
        %v335 = vld [vmem:[%s272 + $0x50] sm:$0xff]
        %v336 = vld [vmem:[%s272 + $0x58] sm:$0xff]
        %v337 = vld [vmem:[%s272 + $0x60] sm:$0xff]
        %v338 = vld [vmem:[%s272 + $0x68] sm:$0xff]
        %v339 = vld [vmem:[%s272 + $0x70] sm:$0xff]
        %v340 = vld [vmem:[%s272 + $0x78] sm:$0xff]
        %v341 = vld [vmem:[%s272 + $0x80] sm:$0xff]
        %v342 = vld [vmem:[%s272 + $0x88] sm:$0xff]
        %v343 = vld [vmem:[%s272 + $0x90] sm:$0xff]
        %v344 = vld [vmem:[%s272 + $0x98] sm:$0xff]
        %v345 = vld [vmem:[%s272 + $0xa0] sm:$0xff]
        %v346 = vld [vmem:[%s272 + $0xa8] sm:$0xff]
        %v347 = vld [vmem:[%s272 + $0xb0] sm:$0xff]
        %v348 = vld [vmem:[%s272 + $0xb8] sm:$0xff]
        %v349 = vld [vmem:[%s272 + $0xc0] sm:$0xff]
        %v350 = vld [vmem:[%s272 + $0xc8] sm:$0xff]
        %v351 = vld [vmem:[%s272 + $0xd0] sm:$0xff]
        %v352 = vld [vmem:[%s272 + $0xd8] sm:$0xff]
        %v353 = vld [vmem:[%s272 + $0xe0] sm:$0xff]
        %v354 = vld [vmem:[%s272 + $0xe8] sm:$0xff]
        %v355 = vld [vmem:[%s272 + $0xf0] sm:$0xff]
        %v356 = vld [vmem:[%s272 + $0xf8] sm:$0xff]
        %v357 = vld [vmem:[%s3] sm:$0xff]
        %v359 = vcombine.high %v357, %v357
        %vm360 = vcmask 31744
        %v362 = vsel %vm360, %v325, 0
        %v365 = vsel %vm360, %v326, 0
        %v368 = vsel %vm360, %v327, 0
        %v371 = vsel %vm360, %v328, 0
        %v374 = vsel %vm360, %v329, 0
        %v377 = vsel %vm360, %v330, 0
        %v380 = vsel %vm360, %v331, 0
        %v383 = vsel %vm360, %v332, 0
        %v386 = vsel %vm360, %v333, 0
        %v389 = vsel %vm360, %v334, 0
        %v392 = vsel %vm360, %v335, 0
        %v395 = vsel %vm360, %v336, 0
        %v398 = vsel %vm360, %v337, 0
        %v401 = vsel %vm360, %v338, 0
        %v404 = vsel %vm360, %v339, 0
        %v407 = vsel %vm360, %v340, 0
        %v410 = vsel %vm360, %v341, 0
        %v413 = vsel %vm360, %v342, 0
        %v416 = vsel %vm360, %v343, 0
        %v419 = vsel %vm360, %v344, 0
        %v422 = vsel %vm360, %v345, 0
        %v425 = vsel %vm360, %v346, 0
        %v428 = vsel %vm360, %v347, 0
        %v431 = vsel %vm360, %v348, 0
        %v434 = vsel %vm360, %v349, 0
        %v437 = vsel %vm360, %v350, 0
        %v440 = vsel %vm360, %v351, 0
        %v443 = vsel %vm360, %v352, 0
        %v446 = vsel %vm360, %v353, 0
        %v449 = vsel %vm360, %v354, 0
        %v452 = vsel %vm360, %v355, 0
        %v455 = vsel %vm360, %v356, 0
        %vm457 = vcmask 1043456
        %v458 = vsel %vm457, %v357, 0
        %v460 = vsel %vm457, %v359, 0
        %462 = vmatprep.subr.mxu0 %v460
        %463 = vmatpush1.msra.mxu0 %v458
        %464 = vmatprep.subr.mxu0 0.0
        %465 = vmatpush1.msra.mxu0 0.0
        %466 = vmatprep.subr.mxu0 0.0
        %467 = vmatpush1.msra.mxu0 0.0
        %468 = vmatprep.subr.mxu0 0.0
        %469 = vmatpush1.msra.mxu0 0.0
        %470 = vmatprep.subr.mxu0 0.0
        %471 = vmatpush1.msra.mxu0 0.0
        %472 = vmatprep.subr.mxu0 0.0
        %473 = vmatpush1.msra.mxu0 0.0
        %474 = vmatprep.subr.mxu0 0.0
        %475 = vmatpush1.msra.mxu0 0.0
        %476 = vmatprep.subr.mxu0 0.0
        %477 = vmatpush1.msra.mxu0 0.0
        %478 = vmatprep.subr.mxu0 0.0
        %479 = vmatpush1.msra.mxu0 0.0
        %480 = vmatprep.subr.mxu0 0.0
        %481 = vmatpush1.msra.mxu0 0.0
        %482 = vmatprep.subr.mxu0 0.0
        %483 = vmatpush1.msra.mxu0 0.0
        %484 = vmatprep.subr.mxu0 0.0
        %485 = vmatpush1.msra.mxu0 0.0
        %486 = vmatprep.subr.mxu0 0.0
        %487 = vmatpush1.msra.mxu0 0.0
        %488 = vmatprep.subr.mxu0 0.0
        %489 = vmatpush1.msra.mxu0 0.0
        %490 = vmatprep.subr.mxu0 0.0
        %491 = vmatpush1.msra.mxu0 0.0
        %492 = vmatprep.subr.mxu0 0.0
        %493 = vmatpush1.msra.mxu0 0.0
        %494 = vmatprep.subr.mxu0 0.0
        %495 = vmatpush1.msra.mxu0 0.0
        %496 = vmatprep.subr.mxu0 0.0
        %497 = vmatpush1.msra.mxu0 0.0
        %498 = vmatprep.subr.mxu0 0.0
        %499 = vmatpush1.msra.mxu0 0.0
        %500 = vmatprep.subr.mxu0 0.0
        %501 = vmatpush1.msra.mxu0 0.0
        %502 = vmatprep.subr.mxu0 0.0
        %503 = vmatpush1.msra.mxu0 0.0
        %504 = vmatprep.subr.mxu0 0.0
        %505 = vmatpush1.msra.mxu0 0.0
        %506 = vmatprep.subr.mxu0 0.0
        %507 = vmatpush1.msra.mxu0 0.0
        %508 = vmatprep.subr.mxu0 0.0
        %509 = vmatpush1.msra.mxu0 0.0
        %510 = vmatprep.subr.mxu0 0.0
        %511 = vmatpush1.msra.mxu0 0.0
        %512 = vmatprep.subr.mxu0 0.0
        %513 = vmatpush1.msra.mxu0 0.0
        %514 = vmatprep.subr.mxu0 0.0
        %515 = vmatpush1.msra.mxu0 0.0
        %516 = vmatprep.subr.mxu0 0.0
        %517 = vmatpush1.msra.mxu0 0.0
        %518 = vmatprep.subr.mxu0 0.0
        %519 = vmatpush1.msra.mxu0 0.0
        %520 = vmatprep.subr.mxu0 0.0
        %521 = vmatpush1.msra.mxu0 0.0
        %522 = vmatprep.subr.mxu0 0.0
        %523 = vmatpush1.msra.mxu0 0.0
        %524 = vmatprep.subr.mxu0 0.0
        %525 = vmatpush1.msra.mxu0 0.0
        %526 = vmatprep.mubr.f32.mxu0 0.0
        %527 = vmatmul.mubr.f32.gmra.mrb[0].mxu0 %v362
        %v528 = vpop.f32.mrb[0].mxu0
        %v529 = vadd.f32 0.0, %v528
        %v530 = vpop.f32.mrb[0].mxu0
        %v531 = vadd.f32 0.0, %v530
        %532 = vmatprep.mubr.f32.mxu0 0.0
        %533 = vmatmul.mubr.f32.gmra.mrb[0].mxu0 %v365
        %v534 = vpop.f32.mrb[0].mxu0
        %v535 = vadd.f32 0.0, %v534
        %v536 = vpop.f32.mrb[0].mxu0
        %v537 = vadd.f32 0.0, %v536
        %538 = vmatprep.mubr.f32.mxu0 0.0
        %539 = vmatmul.mubr.f32.gmra.mrb[0].mxu0 %v368
        %v540 = vpop.f32.mrb[0].mxu0
        %v541 = vadd.f32 0.0, %v540
        %v542 = vpop.f32.mrb[0].mxu0
        %v543 = vadd.f32 0.0, %v542
        %544 = vmatprep.mubr.f32.mxu0 0.0
        %545 = vmatmul.mubr.f32.gmra.mrb[0].mxu0 %v371
        %v546 = vpop.f32.mrb[0].mxu0
        %v547 = vadd.f32 0.0, %v546
        %v548 = vpop.f32.mrb[0].mxu0
        %v549 = vadd.f32 0.0, %v548
        %550 = vmatprep.mubr.f32.mxu0 0.0
        %551 = vmatmul.mubr.f32.gmra.mrb[0].mxu0 %v374
        %v552 = vpop.f32.mrb[0].mxu0
        %v553 = vadd.f32 0.0, %v552
        %v554 = vpop.f32.mrb[0].mxu0
        %v555 = vadd.f32 0.0, %v554
        %556 = vmatprep.mubr.f32.mxu0 0.0
        %557 = vmatmul.mubr.f32.gmra.mrb[0].mxu0 %v377
        %v558 = vpop.f32.mrb[0].mxu0
        %v559 = vadd.f32 0.0, %v558
        %v560 = vpop.f32.mrb[0].mxu0
        %v561 = vadd.f32 0.0, %v560
        %562 = vmatprep.mubr.f32.mxu0 0.0
        %563 = vmatmul.mubr.f32.gmra.mrb[0].mxu0 %v380
        %v564 = vpop.f32.mrb[0].mxu0
        %v565 = vadd.f32 0.0, %v564
        %v566 = vpop.f32.mrb[0].mxu0
        %v567 = vadd.f32 0.0, %v566
        %568 = vmatprep.mubr.f32.mxu0 0.0
        %569 = vmatmul.mubr.f32.gmra.mrb[0].mxu0 %v383
        %v570 = vpop.f32.mrb[0].mxu0
        %v571 = vadd.f32 0.0, %v570
        %v572 = vpop.f32.mrb[0].mxu0
        %v573 = vadd.f32 0.0, %v572
        %574 = vmatprep.mubr.f32.mxu0 0.0
        %575 = vmatmul.mubr.f32.gmra.mrb[0].mxu0 %v386
        %v576 = vpop.f32.mrb[0].mxu0
        %v577 = vadd.f32 0.0, %v576
        %v578 = vpop.f32.mrb[0].mxu0
        %v579 = vadd.f32 0.0, %v578
        %580 = vmatprep.mubr.f32.mxu0 0.0
        %581 = vmatmul.mubr.f32.gmra.mrb[0].mxu0 %v389
        %v582 = vpop.f32.mrb[0].mxu0
        %v583 = vadd.f32 0.0, %v582
        %v584 = vpop.f32.mrb[0].mxu0
        %v585 = vadd.f32 0.0, %v584
        %586 = vmatprep.mubr.f32.mxu0 0.0
        %587 = vmatmul.mubr.f32.gmra.mrb[0].mxu0 %v392
        %v588 = vpop.f32.mrb[0].mxu0
        %v589 = vadd.f32 0.0, %v588
        %v590 = vpop.f32.mrb[0].mxu0
        %v591 = vadd.f32 0.0, %v590
        %592 = vmatprep.mubr.f32.mxu0 0.0
        %593 = vmatmul.mubr.f32.gmra.mrb[0].mxu0 %v395
        %v594 = vpop.f32.mrb[0].mxu0
        %v595 = vadd.f32 0.0, %v594
        %v596 = vpop.f32.mrb[0].mxu0
        %v597 = vadd.f32 0.0, %v596
        %598 = vmatprep.mubr.f32.mxu0 0.0
        %599 = vmatmul.mubr.f32.gmra.mrb[0].mxu0 %v398
        %v600 = vpop.f32.mrb[0].mxu0
        %v601 = vadd.f32 0.0, %v600
        %v602 = vpop.f32.mrb[0].mxu0
        %v603 = vadd.f32 0.0, %v602
        %604 = vmatprep.mubr.f32.mxu0 0.0
        %605 = vmatmul.mubr.f32.gmra.mrb[0].mxu0 %v401
        %v606 = vpop.f32.mrb[0].mxu0
        %v607 = vadd.f32 0.0, %v606
        %v608 = vpop.f32.mrb[0].mxu0
        %v609 = vadd.f32 0.0, %v608
        %610 = vmatprep.mubr.f32.mxu0 0.0
        %611 = vmatmul.mubr.f32.gmra.mrb[0].mxu0 %v404
        %v612 = vpop.f32.mrb[0].mxu0
        %v613 = vadd.f32 0.0, %v612
        %v614 = vpop.f32.mrb[0].mxu0
        %v615 = vadd.f32 0.0, %v614
        %616 = vmatprep.mubr.f32.mxu0 0.0
        %617 = vmatmul.mubr.f32.gmra.mrb[0].mxu0 %v407
        %v618 = vpop.f32.mrb[0].mxu0
        %v619 = vadd.f32 0.0, %v618
        %v620 = vpop.f32.mrb[0].mxu0
        %v621 = vadd.f32 0.0, %v620
        %622 = vmatprep.mubr.f32.mxu0 0.0
        %623 = vmatmul.mubr.f32.gmra.mrb[0].mxu0 %v410
        %v624 = vpop.f32.mrb[0].mxu0
        %v625 = vadd.f32 0.0, %v624
        %v626 = vpop.f32.mrb[0].mxu0
        %v627 = vadd.f32 0.0, %v626
        %628 = vmatprep.mubr.f32.mxu0 0.0
        %629 = vmatmul.mubr.f32.gmra.mrb[0].mxu0 %v413
        %v630 = vpop.f32.mrb[0].mxu0
        %v631 = vadd.f32 0.0, %v630
        %v632 = vpop.f32.mrb[0].mxu0
        %v633 = vadd.f32 0.0, %v632
        %634 = vmatprep.mubr.f32.mxu0 0.0
        %635 = vmatmul.mubr.f32.gmra.mrb[0].mxu0 %v416
        %v636 = vpop.f32.mrb[0].mxu0
        %v637 = vadd.f32 0.0, %v636
        %v638 = vpop.f32.mrb[0].mxu0
        %v639 = vadd.f32 0.0, %v638
        %640 = vmatprep.mubr.f32.mxu0 0.0
        %641 = vmatmul.mubr.f32.gmra.mrb[0].mxu0 %v419
        %v642 = vpop.f32.mrb[0].mxu0
        %v643 = vadd.f32 0.0, %v642
        %v644 = vpop.f32.mrb[0].mxu0
        %v645 = vadd.f32 0.0, %v644
        %646 = vmatprep.mubr.f32.mxu0 0.0
        %647 = vmatmul.mubr.f32.gmra.mrb[0].mxu0 %v422
        %v648 = vpop.f32.mrb[0].mxu0
        %v649 = vadd.f32 0.0, %v648
        %v650 = vpop.f32.mrb[0].mxu0
        %v651 = vadd.f32 0.0, %v650
        %652 = vmatprep.mubr.f32.mxu0 0.0
        %653 = vmatmul.mubr.f32.gmra.mrb[0].mxu0 %v425
        %v654 = vpop.f32.mrb[0].mxu0
        %v655 = vadd.f32 0.0, %v654
        %v656 = vpop.f32.mrb[0].mxu0
        %v657 = vadd.f32 0.0, %v656
        %658 = vmatprep.mubr.f32.mxu0 0.0
        %659 = vmatmul.mubr.f32.gmra.mrb[0].mxu0 %v428
        %v660 = vpop.f32.mrb[0].mxu0
        %v661 = vadd.f32 0.0, %v660
        %v662 = vpop.f32.mrb[0].mxu0
        %v663 = vadd.f32 0.0, %v662
        %664 = vmatprep.mubr.f32.mxu0 0.0
        %665 = vmatmul.mubr.f32.gmra.mrb[0].mxu0 %v431
        %v666 = vpop.f32.mrb[0].mxu0
        %v667 = vadd.f32 0.0, %v666
        %v668 = vpop.f32.mrb[0].mxu0
        %v669 = vadd.f32 0.0, %v668
        %670 = vmatprep.mubr.f32.mxu0 0.0
        %671 = vmatmul.mubr.f32.gmra.mrb[0].mxu0 %v434
        %v672 = vpop.f32.mrb[0].mxu0
        %v673 = vadd.f32 0.0, %v672
        %v674 = vpop.f32.mrb[0].mxu0
        %v675 = vadd.f32 0.0, %v674
        %676 = vmatprep.mubr.f32.mxu0 0.0
        %677 = vmatmul.mubr.f32.gmra.mrb[0].mxu0 %v437
        %v678 = vpop.f32.mrb[0].mxu0
        %v679 = vadd.f32 0.0, %v678
        %v680 = vpop.f32.mrb[0].mxu0
        %v681 = vadd.f32 0.0, %v680
        %682 = vmatprep.mubr.f32.mxu0 0.0
        %683 = vmatmul.mubr.f32.gmra.mrb[0].mxu0 %v440
        %v684 = vpop.f32.mrb[0].mxu0
        %v685 = vadd.f32 0.0, %v684
        %v686 = vpop.f32.mrb[0].mxu0
        %v687 = vadd.f32 0.0, %v686
        %688 = vmatprep.mubr.f32.mxu0 0.0
        %689 = vmatmul.mubr.f32.gmra.mrb[0].mxu0 %v443
        %v690 = vpop.f32.mrb[0].mxu0
        %v691 = vadd.f32 0.0, %v690
        %v692 = vpop.f32.mrb[0].mxu0
        %v693 = vadd.f32 0.0, %v692
        %694 = vmatprep.mubr.f32.mxu0 0.0
        %695 = vmatmul.mubr.f32.gmra.mrb[0].mxu0 %v446
        %v696 = vpop.f32.mrb[0].mxu0
        %v697 = vadd.f32 0.0, %v696
        %v698 = vpop.f32.mrb[0].mxu0
        %v699 = vadd.f32 0.0, %v698
        %700 = vmatprep.mubr.f32.mxu0 0.0
        %701 = vmatmul.mubr.f32.gmra.mrb[0].mxu0 %v449
        %v702 = vpop.f32.mrb[0].mxu0
        %v703 = vadd.f32 0.0, %v702
        %v704 = vpop.f32.mrb[0].mxu0
        %v705 = vadd.f32 0.0, %v704
        %706 = vmatprep.mubr.f32.mxu0 0.0
        %707 = vmatmul.mubr.f32.gmra.mrb[0].mxu0 %v452
        %v708 = vpop.f32.mrb[0].mxu0
        %v709 = vadd.f32 0.0, %v708
        %v710 = vpop.f32.mrb[0].mxu0
        %v711 = vadd.f32 0.0, %v710
        %712 = vmatprep.mubr.f32.mxu0 0.0
        %713 = vmatmul.mubr.f32.gmra.mrb[0].mxu0 %v455
        %v714 = vpop.f32.mrb[0].mxu0
        %v715 = vadd.f32 0.0, %v714
        %v716 = vpop.f32.mrb[0].mxu0
        %v717 = vadd.f32 0.0, %v716
        %718 = vdwg.mxu0
        %vm719 = vcmask 97280
        %v721 = vsel %vm719, %v289, 0
        %v724 = vsel %vm719, %v290, 0
        %v727 = vsel %vm719, %v291, 0
        %v730 = vsel %vm719, %v292, 0
        %v733 = vsel %vm719, %v293, 0
        %v736 = vsel %vm719, %v294, 0
        %v739 = vsel %vm719, %v295, 0
        %v742 = vsel %vm719, %v296, 0
        %v745 = vsel %vm719, %v297, 0
        %v748 = vsel %vm719, %v298, 0
        %v751 = vsel %vm719, %v299, 0
        %v754 = vsel %vm719, %v300, 0
        %v757 = vsel %vm719, %v301, 0
        %v760 = vsel %vm719, %v302, 0
        %v763 = vsel %vm719, %v303, 0
        %v766 = vsel %vm719, %v304, 0
        %v769 = vsel %vm719, %v305, 0
        %v772 = vsel %vm719, %v306, 0
        %v775 = vsel %vm719, %v307, 0
        %v778 = vsel %vm719, %v308, 0
        %v781 = vsel %vm719, %v309, 0
        %v784 = vsel %vm719, %v310, 0
        %v787 = vsel %vm719, %v311, 0
        %v790 = vsel %vm719, %v312, 0
        %v793 = vsel %vm719, %v313, 0
        %v796 = vsel %vm719, %v314, 0
        %v799 = vsel %vm719, %v315, 0
        %v802 = vsel %vm719, %v316, 0
        %v805 = vsel %vm719, %v317, 0
        %v808 = vsel %vm719, %v318, 0
        %v811 = vsel %vm719, %v319, 0
        %v814 = vsel %vm719, %v320, 0
        %v817 = vsel %vm457, %v323, 0
        %v820 = vsel %vm457, %v324, 0
        %822 = vmatprep.subr.mxu0 %v322
        %823 = vmatpush1.msra.mxu0 %v321
        %824 = vmatprep.subr.mxu0 %v820
        %825 = vmatpush1.msra.mxu0 %v817
        %826 = vmatprep.subr.mxu0 0.0
        %827 = vmatpush1.msra.mxu0 0.0
        %828 = vmatprep.subr.mxu0 0.0
        %829 = vmatpush1.msra.mxu0 0.0
        %830 = vmatprep.subr.mxu0 0.0
        %831 = vmatpush1.msra.mxu0 0.0
        %832 = vmatprep.subr.mxu0 0.0
        %833 = vmatpush1.msra.mxu0 0.0
        %834 = vmatprep.subr.mxu0 0.0
        %835 = vmatpush1.msra.mxu0 0.0
        %836 = vmatprep.subr.mxu0 0.0
        %837 = vmatpush1.msra.mxu0 0.0
        %838 = vmatprep.subr.mxu0 0.0
        %839 = vmatpush1.msra.mxu0 0.0
        %840 = vmatprep.subr.mxu0 0.0
        %841 = vmatpush1.msra.mxu0 0.0
        %842 = vmatprep.subr.mxu0 0.0
        %843 = vmatpush1.msra.mxu0 0.0
        %844 = vmatprep.subr.mxu0 0.0
        %845 = vmatpush1.msra.mxu0 0.0
        %846 = vmatprep.subr.mxu0 0.0
        %847 = vmatpush1.msra.mxu0 0.0
        %848 = vmatprep.subr.mxu0 0.0
        %849 = vmatpush1.msra.mxu0 0.0
        %850 = vmatprep.subr.mxu0 0.0
        %851 = vmatpush1.msra.mxu0 0.0
        %852 = vmatprep.subr.mxu0 0.0
        %853 = vmatpush1.msra.mxu0 0.0
        %854 = vmatprep.subr.mxu0 0.0
        %855 = vmatpush1.msra.mxu0 0.0
        %856 = vmatprep.subr.mxu0 0.0
        %857 = vmatpush1.msra.mxu0 0.0
        %858 = vmatprep.subr.mxu0 0.0
        %859 = vmatpush1.msra.mxu0 0.0
        %860 = vmatprep.subr.mxu0 0.0
        %861 = vmatpush1.msra.mxu0 0.0
        %862 = vmatprep.subr.mxu0 0.0
        %863 = vmatpush1.msra.mxu0 0.0
        %864 = vmatprep.subr.mxu0 0.0
        %865 = vmatpush1.msra.mxu0 0.0
        %866 = vmatprep.subr.mxu0 0.0
        %867 = vmatpush1.msra.mxu0 0.0
        %868 = vmatprep.subr.mxu0 0.0
        %869 = vmatpush1.msra.mxu0 0.0
        %870 = vmatprep.subr.mxu0 0.0
        %871 = vmatpush1.msra.mxu0 0.0
        %872 = vmatprep.subr.mxu0 0.0
        %873 = vmatpush1.msra.mxu0 0.0
        %874 = vmatprep.subr.mxu0 0.0
        %875 = vmatpush1.msra.mxu0 0.0
        %876 = vmatprep.subr.mxu0 0.0
        %877 = vmatpush1.msra.mxu0 0.0
        %878 = vmatprep.subr.mxu0 0.0
        %879 = vmatpush1.msra.mxu0 0.0
        %880 = vmatprep.subr.mxu0 0.0
        %881 = vmatpush1.msra.mxu0 0.0
        %882 = vmatprep.subr.mxu0 0.0
        %883 = vmatpush1.msra.mxu0 0.0
        %884 = vmatprep.subr.mxu0 0.0
        %885 = vmatpush1.msra.mxu0 0.0
        %886 = vmatprep.mubr.f32.mxu0 0.0
        %887 = vmatmul.mubr.f32.gmra.mrb[0].mxu0 %v721
        %v888 = vpop.f32.mrb[0].mxu0
        %v889 = vadd.f32 %v529, %v888
        %v890 = vpop.f32.mrb[0].mxu0
        %v891 = vadd.f32 %v531, %v890
        %892 = vmatprep.mubr.f32.mxu0 0.0
        %893 = vmatmul.mubr.f32.gmra.mrb[0].mxu0 %v724
        %v894 = vpop.f32.mrb[0].mxu0
        %v895 = vadd.f32 %v535, %v894
        %v896 = vpop.f32.mrb[0].mxu0
        %v897 = vadd.f32 %v537, %v896
        %898 = vmatprep.mubr.f32.mxu0 0.0
        %899 = vmatmul.mubr.f32.gmra.mrb[0].mxu0 %v727
        %v900 = vpop.f32.mrb[0].mxu0
        %v901 = vadd.f32 %v541, %v900
        %v902 = vpop.f32.mrb[0].mxu0
        %v903 = vadd.f32 %v543, %v902
        %904 = vmatprep.mubr.f32.mxu0 0.0
        %905 = vmatmul.mubr.f32.gmra.mrb[0].mxu0 %v730
        %v906 = vpop.f32.mrb[0].mxu0
        %v907 = vadd.f32 %v547, %v906
        %v908 = vpop.f32.mrb[0].mxu0
        %v909 = vadd.f32 %v549, %v908
        %910 = vmatprep.mubr.f32.mxu0 0.0
        %911 = vmatmul.mubr.f32.gmra.mrb[0].mxu0 %v733
        %v912 = vpop.f32.mrb[0].mxu0
        %v913 = vadd.f32 %v553, %v912
        %v914 = vpop.f32.mrb[0].mxu0
        %v915 = vadd.f32 %v555, %v914
        %916 = vmatprep.mubr.f32.mxu0 0.0
        %917 = vmatmul.mubr.f32.gmra.mrb[0].mxu0 %v736
        %v918 = vpop.f32.mrb[0].mxu0
        %v919 = vadd.f32 %v559, %v918
        %v920 = vpop.f32.mrb[0].mxu0
        %v921 = vadd.f32 %v561, %v920
        %922 = vmatprep.mubr.f32.mxu0 0.0
        %923 = vmatmul.mubr.f32.gmra.mrb[0].mxu0 %v739
        %v924 = vpop.f32.mrb[0].mxu0
        %v925 = vadd.f32 %v565, %v924
        %v926 = vpop.f32.mrb[0].mxu0
        %v927 = vadd.f32 %v567, %v926
        %928 = vmatprep.mubr.f32.mxu0 0.0
        %929 = vmatmul.mubr.f32.gmra.mrb[0].mxu0 %v742
        %v930 = vpop.f32.mrb[0].mxu0
        %v931 = vadd.f32 %v571, %v930
        %v932 = vpop.f32.mrb[0].mxu0
        %v933 = vadd.f32 %v573, %v932
        %934 = vmatprep.mubr.f32.mxu0 0.0
        %935 = vmatmul.mubr.f32.gmra.mrb[0].mxu0 %v745
        %v936 = vpop.f32.mrb[0].mxu0
        %v937 = vadd.f32 %v577, %v936
        %v938 = vpop.f32.mrb[0].mxu0
        %v939 = vadd.f32 %v579, %v938
        %940 = vmatprep.mubr.f32.mxu0 0.0
        %941 = vmatmul.mubr.f32.gmra.mrb[0].mxu0 %v748
        %v942 = vpop.f32.mrb[0].mxu0
        %v943 = vadd.f32 %v583, %v942
        %v944 = vpop.f32.mrb[0].mxu0
        %v945 = vadd.f32 %v585, %v944
        %946 = vmatprep.mubr.f32.mxu0 0.0
        %947 = vmatmul.mubr.f32.gmra.mrb[0].mxu0 %v751
        %v948 = vpop.f32.mrb[0].mxu0
        %v949 = vadd.f32 %v589, %v948
        %v950 = vpop.f32.mrb[0].mxu0
        %v951 = vadd.f32 %v591, %v950
        %952 = vmatprep.mubr.f32.mxu0 0.0
        %953 = vmatmul.mubr.f32.gmra.mrb[0].mxu0 %v754
        %v954 = vpop.f32.mrb[0].mxu0
        %v955 = vadd.f32 %v595, %v954
        %v956 = vpop.f32.mrb[0].mxu0
        %v957 = vadd.f32 %v597, %v956
        %958 = vmatprep.mubr.f32.mxu0 0.0
        %959 = vmatmul.mubr.f32.gmra.mrb[0].mxu0 %v757
        %v960 = vpop.f32.mrb[0].mxu0
        %v961 = vadd.f32 %v601, %v960
        %v962 = vpop.f32.mrb[0].mxu0
        %v963 = vadd.f32 %v603, %v962
        %964 = vmatprep.mubr.f32.mxu0 0.0
        %965 = vmatmul.mubr.f32.gmra.mrb[0].mxu0 %v760
        %v966 = vpop.f32.mrb[0].mxu0
        %v967 = vadd.f32 %v607, %v966
        %v968 = vpop.f32.mrb[0].mxu0
        %v969 = vadd.f32 %v609, %v968
        %970 = vmatprep.mubr.f32.mxu0 0.0
        %971 = vmatmul.mubr.f32.gmra.mrb[0].mxu0 %v763
        %v972 = vpop.f32.mrb[0].mxu0
        %v973 = vadd.f32 %v613, %v972
        %v974 = vpop.f32.mrb[0].mxu0
        %v975 = vadd.f32 %v615, %v974
        %976 = vmatprep.mubr.f32.mxu0 0.0
        %977 = vmatmul.mubr.f32.gmra.mrb[0].mxu0 %v766
        %v978 = vpop.f32.mrb[0].mxu0
        %v979 = vadd.f32 %v619, %v978
        %v980 = vpop.f32.mrb[0].mxu0
        %v981 = vadd.f32 %v621, %v980
        %982 = vmatprep.mubr.f32.mxu0 0.0
        %983 = vmatmul.mubr.f32.gmra.mrb[0].mxu0 %v769
        %v984 = vpop.f32.mrb[0].mxu0
        %v985 = vadd.f32 %v625, %v984
        %v986 = vpop.f32.mrb[0].mxu0
        %v987 = vadd.f32 %v627, %v986
        %988 = vmatprep.mubr.f32.mxu0 0.0
        %989 = vmatmul.mubr.f32.gmra.mrb[0].mxu0 %v772
        %v990 = vpop.f32.mrb[0].mxu0
        %v991 = vadd.f32 %v631, %v990
        %v992 = vpop.f32.mrb[0].mxu0
        %v993 = vadd.f32 %v633, %v992
        %994 = vmatprep.mubr.f32.mxu0 0.0
        %995 = vmatmul.mubr.f32.gmra.mrb[0].mxu0 %v775
        %v996 = vpop.f32.mrb[0].mxu0
        %v997 = vadd.f32 %v637, %v996
        %v998 = vpop.f32.mrb[0].mxu0
        %v999 = vadd.f32 %v639, %v998
        %1000 = vmatprep.mubr.f32.mxu0 0.0
        %1001 = vmatmul.mubr.f32.gmra.mrb[0].mxu0 %v778
        %v1002 = vpop.f32.mrb[0].mxu0
        %v1003 = vadd.f32 %v643, %v1002
        %v1004 = vpop.f32.mrb[0].mxu0
        %v1005 = vadd.f32 %v645, %v1004
        %1006 = vmatprep.mubr.f32.mxu0 0.0
        %1007 = vmatmul.mubr.f32.gmra.mrb[0].mxu0 %v781
        %v1008 = vpop.f32.mrb[0].mxu0
        %v1009 = vadd.f32 %v649, %v1008
        %v1010 = vpop.f32.mrb[0].mxu0
        %v1011 = vadd.f32 %v651, %v1010
        %1012 = vmatprep.mubr.f32.mxu0 0.0
        %1013 = vmatmul.mubr.f32.gmra.mrb[0].mxu0 %v784
        %v1014 = vpop.f32.mrb[0].mxu0
        %v1015 = vadd.f32 %v655, %v1014
        %v1016 = vpop.f32.mrb[0].mxu0
        %v1017 = vadd.f32 %v657, %v1016
        %1018 = vmatprep.mubr.f32.mxu0 0.0
        %1019 = vmatmul.mubr.f32.gmra.mrb[0].mxu0 %v787
        %v1020 = vpop.f32.mrb[0].mxu0
        %v1021 = vadd.f32 %v661, %v1020
        %v1022 = vpop.f32.mrb[0].mxu0
        %v1023 = vadd.f32 %v663, %v1022
        %1024 = vmatprep.mubr.f32.mxu0 0.0
        %1025 = vmatmul.mubr.f32.gmra.mrb[0].mxu0 %v790
        %v1026 = vpop.f32.mrb[0].mxu0
        %v1027 = vadd.f32 %v667, %v1026
        %v1028 = vpop.f32.mrb[0].mxu0
        %v1029 = vadd.f32 %v669, %v1028
        %1030 = vmatprep.mubr.f32.mxu0 0.0
        %1031 = vmatmul.mubr.f32.gmra.mrb[0].mxu0 %v793
        %v1032 = vpop.f32.mrb[0].mxu0
        %v1033 = vadd.f32 %v673, %v1032
        %v1034 = vpop.f32.mrb[0].mxu0
        %v1035 = vadd.f32 %v675, %v1034
        %1036 = vmatprep.mubr.f32.mxu0 0.0
        %1037 = vmatmul.mubr.f32.gmra.mrb[0].mxu0 %v796
        %v1038 = vpop.f32.mrb[0].mxu0
        %v1039 = vadd.f32 %v679, %v1038
        %v1040 = vpop.f32.mrb[0].mxu0
        %v1041 = vadd.f32 %v681, %v1040
        %1042 = vmatprep.mubr.f32.mxu0 0.0
        %1043 = vmatmul.mubr.f32.gmra.mrb[0].mxu0 %v799
        %v1044 = vpop.f32.mrb[0].mxu0
        %v1045 = vadd.f32 %v685, %v1044
        %v1046 = vpop.f32.mrb[0].mxu0
        %v1047 = vadd.f32 %v687, %v1046
        %1048 = vmatprep.mubr.f32.mxu0 0.0
        %1049 = vmatmul.mubr.f32.gmra.mrb[0].mxu0 %v802
        %v1050 = vpop.f32.mrb[0].mxu0
        %v1051 = vadd.f32 %v691, %v1050
        %v1052 = vpop.f32.mrb[0].mxu0
        %v1053 = vadd.f32 %v693, %v1052
        %1054 = vmatprep.mubr.f32.mxu0 0.0
        %1055 = vmatmul.mubr.f32.gmra.mrb[0].mxu0 %v805
        %v1056 = vpop.f32.mrb[0].mxu0
        %v1057 = vadd.f32 %v697, %v1056
        %v1058 = vpop.f32.mrb[0].mxu0
        %v1059 = vadd.f32 %v699, %v1058
        %1060 = vmatprep.mubr.f32.mxu0 0.0
        %1061 = vmatmul.mubr.f32.gmra.mrb[0].mxu0 %v808
        %v1062 = vpop.f32.mrb[0].mxu0
        %v1063 = vadd.f32 %v703, %v1062
        %v1064 = vpop.f32.mrb[0].mxu0
        %v1065 = vadd.f32 %v705, %v1064
        %1066 = vmatprep.mubr.f32.mxu0 0.0
        %1067 = vmatmul.mubr.f32.gmra.mrb[0].mxu0 %v811
        %v1068 = vpop.f32.mrb[0].mxu0
        %v1069 = vadd.f32 %v709, %v1068
        %v1070 = vpop.f32.mrb[0].mxu0
        %v1071 = vadd.f32 %v711, %v1070
        %1072 = vmatprep.mubr.f32.mxu0 0.0
        %1073 = vmatmul.mubr.f32.gmra.mrb[0].mxu0 %v814
        %v1074 = vpop.f32.mrb[0].mxu0
        %v1075 = vadd.f32 %v715, %v1074
        %v1076 = vpop.f32.mrb[0].mxu0
        %v1077 = vadd.f32 %v717, %v1076
        %1078 = vdwg.mxu0
        %v1080 = vlaneseq
        %v1081 = vshrl.u32 %v1080, 7
        %v1082 = vsub.s32 0, %v1081
        %v1083 = vrot.slane %v275, %v1082
        %v1084 = vlaneseq
        %v1085 = vshrl.u32 %v1084, 7
        %v1086 = vsub.s32 1, %v1085
        %v1087 = vrot.slane %v275, %v1086
        %v1090 = vadd.f32 %v889, %v1083
        %v1091 = vadd.f32 %v891, %v1087
        %v1092 = vadd.f32 %v895, %v1083
        %v1093 = vadd.f32 %v897, %v1087
        %v1094 = vadd.f32 %v901, %v1083
        %v1095 = vadd.f32 %v903, %v1087
        %v1096 = vadd.f32 %v907, %v1083
        %v1097 = vadd.f32 %v909, %v1087
        %v1098 = vadd.f32 %v913, %v1083
        %v1099 = vadd.f32 %v915, %v1087
        %v1100 = vadd.f32 %v919, %v1083
        %v1101 = vadd.f32 %v921, %v1087
        %v1102 = vadd.f32 %v925, %v1083
        %v1103 = vadd.f32 %v927, %v1087
        %v1104 = vadd.f32 %v931, %v1083
        %v1105 = vadd.f32 %v933, %v1087
        %v1106 = vadd.f32 %v937, %v1083
        %v1107 = vadd.f32 %v939, %v1087
        %v1108 = vadd.f32 %v943, %v1083
        %v1109 = vadd.f32 %v945, %v1087
        %v1110 = vadd.f32 %v949, %v1083
        %v1111 = vadd.f32 %v951, %v1087
        %v1112 = vadd.f32 %v955, %v1083
        %v1113 = vadd.f32 %v957, %v1087
        %v1114 = vadd.f32 %v961, %v1083
        %v1115 = vadd.f32 %v963, %v1087
        %v1116 = vadd.f32 %v967, %v1083
        %v1117 = vadd.f32 %v969, %v1087
        %v1118 = vadd.f32 %v973, %v1083
        %v1119 = vadd.f32 %v975, %v1087
        %v1120 = vadd.f32 %v979, %v1083
        %v1121 = vadd.f32 %v981, %v1087
        %v1122 = vadd.f32 %v985, %v1083
        %v1123 = vadd.f32 %v987, %v1087
        %v1124 = vadd.f32 %v991, %v1083
        %v1125 = vadd.f32 %v993, %v1087
        %v1126 = vadd.f32 %v997, %v1083
        %v1127 = vadd.f32 %v999, %v1087
        %v1128 = vadd.f32 %v1003, %v1083
        %v1129 = vadd.f32 %v1005, %v1087
        %v1130 = vadd.f32 %v1009, %v1083
        %v1131 = vadd.f32 %v1011, %v1087
        %v1132 = vadd.f32 %v1015, %v1083
        %v1133 = vadd.f32 %v1017, %v1087
        %v1134 = vadd.f32 %v1021, %v1083
        %v1135 = vadd.f32 %v1023, %v1087
        %v1136 = vadd.f32 %v1027, %v1083
        %v1137 = vadd.f32 %v1029, %v1087
        %v1138 = vadd.f32 %v1033, %v1083
        %v1139 = vadd.f32 %v1035, %v1087
        %v1140 = vadd.f32 %v1039, %v1083
        %v1141 = vadd.f32 %v1041, %v1087
        %v1142 = vadd.f32 %v1045, %v1083
        %v1143 = vadd.f32 %v1047, %v1087
        %v1144 = vadd.f32 %v1051, %v1083
        %v1145 = vadd.f32 %v1053, %v1087
        %v1146 = vadd.f32 %v1057, %v1083
        %v1147 = vadd.f32 %v1059, %v1087
        %v1148 = vadd.f32 %v1063, %v1083
        %v1149 = vadd.f32 %v1065, %v1087
        %v1150 = vadd.f32 %v1069, %v1083
        %v1151 = vadd.f32 %v1071, %v1087
        %v1152 = vadd.f32 %v1075, %v1083
        %v1153 = vadd.f32 %v1077, %v1087
        %v1154 = vmax.f32 %v1090, 0.0
        %v1155 = vmax.f32 %v1091, 0.0
        %v1156 = vmax.f32 %v1092, 0.0
        %v1157 = vmax.f32 %v1093, 0.0
        %v1158 = vmax.f32 %v1094, 0.0
        %v1159 = vmax.f32 %v1095, 0.0
        %v1160 = vmax.f32 %v1096, 0.0
        %v1161 = vmax.f32 %v1097, 0.0
        %v1162 = vmax.f32 %v1098, 0.0
        %v1163 = vmax.f32 %v1099, 0.0
        %v1164 = vmax.f32 %v1100, 0.0
        %v1165 = vmax.f32 %v1101, 0.0
        %v1166 = vmax.f32 %v1102, 0.0
        %v1167 = vmax.f32 %v1103, 0.0
        %v1168 = vmax.f32 %v1104, 0.0
        %v1169 = vmax.f32 %v1105, 0.0
        %v1170 = vmax.f32 %v1106, 0.0
        %v1171 = vmax.f32 %v1107, 0.0
        %v1172 = vmax.f32 %v1108, 0.0
        %v1173 = vmax.f32 %v1109, 0.0
        %v1174 = vmax.f32 %v1110, 0.0
        %v1175 = vmax.f32 %v1111, 0.0
        %v1176 = vmax.f32 %v1112, 0.0
        %v1177 = vmax.f32 %v1113, 0.0
        %v1178 = vmax.f32 %v1114, 0.0
        %v1179 = vmax.f32 %v1115, 0.0
        %v1180 = vmax.f32 %v1116, 0.0
        %v1181 = vmax.f32 %v1117, 0.0
        %v1182 = vmax.f32 %v1118, 0.0
        %v1183 = vmax.f32 %v1119, 0.0
        %v1184 = vmax.f32 %v1120, 0.0
        %v1185 = vmax.f32 %v1121, 0.0
        %v1186 = vmax.f32 %v1122, 0.0
        %v1187 = vmax.f32 %v1123, 0.0
        %v1188 = vmax.f32 %v1124, 0.0
        %v1189 = vmax.f32 %v1125, 0.0
        %v1190 = vmax.f32 %v1126, 0.0
        %v1191 = vmax.f32 %v1127, 0.0
        %v1192 = vmax.f32 %v1128, 0.0
        %v1193 = vmax.f32 %v1129, 0.0
        %v1194 = vmax.f32 %v1130, 0.0
        %v1195 = vmax.f32 %v1131, 0.0
        %v1196 = vmax.f32 %v1132, 0.0
        %v1197 = vmax.f32 %v1133, 0.0
        %v1198 = vmax.f32 %v1134, 0.0
        %v1199 = vmax.f32 %v1135, 0.0
        %v1200 = vmax.f32 %v1136, 0.0
        %v1201 = vmax.f32 %v1137, 0.0
        %v1202 = vmax.f32 %v1138, 0.0
        %v1203 = vmax.f32 %v1139, 0.0
        %v1204 = vmax.f32 %v1140, 0.0
        %v1205 = vmax.f32 %v1141, 0.0
        %v1206 = vmax.f32 %v1142, 0.0
        %v1207 = vmax.f32 %v1143, 0.0
        %v1208 = vmax.f32 %v1144, 0.0
        %v1209 = vmax.f32 %v1145, 0.0
        %v1210 = vmax.f32 %v1146, 0.0
        %v1211 = vmax.f32 %v1147, 0.0
        %v1212 = vmax.f32 %v1148, 0.0
        %v1213 = vmax.f32 %v1149, 0.0
        %v1214 = vmax.f32 %v1150, 0.0
        %v1215 = vmax.f32 %v1151, 0.0
        %v1216 = vmax.f32 %v1152, 0.0
        %v1217 = vmax.f32 %v1153, 0.0
        %v1218 = vadd.f32 %v1154, %v1155
        %1219 = vadd.xlane.f32.xlu0 %v1218
        %v1220 = vpop.xlane.xlu0 %1219
        %v1221 = vadd.f32 %v1156, %v1157
        %1222 = vadd.xlane.f32.xlu0 %v1221
        %v1223 = vpop.xlane.xlu0 %1222
        %v1224 = vadd.f32 %v1158, %v1159
        %1225 = vadd.xlane.f32.xlu0 %v1224
        %v1226 = vpop.xlane.xlu0 %1225
        %v1227 = vadd.f32 %v1160, %v1161
        %1228 = vadd.xlane.f32.xlu0 %v1227
        %v1229 = vpop.xlane.xlu0 %1228
        %v1230 = vadd.f32 %v1162, %v1163
        %1231 = vadd.xlane.f32.xlu0 %v1230
        %v1232 = vpop.xlane.xlu0 %1231
        %v1233 = vadd.f32 %v1164, %v1165
        %1234 = vadd.xlane.f32.xlu0 %v1233
        %v1235 = vpop.xlane.xlu0 %1234
        %v1236 = vadd.f32 %v1166, %v1167
        %1237 = vadd.xlane.f32.xlu0 %v1236
        %v1238 = vpop.xlane.xlu0 %1237
        %v1239 = vadd.f32 %v1168, %v1169
        %1240 = vadd.xlane.f32.xlu0 %v1239
        %v1241 = vpop.xlane.xlu0 %1240
        %v1242 = vadd.f32 %v1170, %v1171
        %1243 = vadd.xlane.f32.xlu0 %v1242
        %v1244 = vpop.xlane.xlu0 %1243
        %v1245 = vadd.f32 %v1172, %v1173
        %1246 = vadd.xlane.f32.xlu0 %v1245
        %v1247 = vpop.xlane.xlu0 %1246
        %v1248 = vadd.f32 %v1174, %v1175
        %1249 = vadd.xlane.f32.xlu0 %v1248
        %v1250 = vpop.xlane.xlu0 %1249
        %v1251 = vadd.f32 %v1176, %v1177
        %1252 = vadd.xlane.f32.xlu0 %v1251
        %v1253 = vpop.xlane.xlu0 %1252
        %v1254 = vadd.f32 %v1178, %v1179
        %1255 = vadd.xlane.f32.xlu0 %v1254
        %v1256 = vpop.xlane.xlu0 %1255
        %v1257 = vadd.f32 %v1180, %v1181
        %1258 = vadd.xlane.f32.xlu0 %v1257
        %v1259 = vpop.xlane.xlu0 %1258
        %v1260 = vadd.f32 %v1182, %v1183
        %1261 = vadd.xlane.f32.xlu0 %v1260
        %v1262 = vpop.xlane.xlu0 %1261
        %v1263 = vadd.f32 %v1184, %v1185
        %1264 = vadd.xlane.f32.xlu0 %v1263
        %v1265 = vpop.xlane.xlu0 %1264
        %v1266 = vadd.f32 %v1186, %v1187
        %1267 = vadd.xlane.f32.xlu0 %v1266
        %v1268 = vpop.xlane.xlu0 %1267
        %v1269 = vadd.f32 %v1188, %v1189
        %1270 = vadd.xlane.f32.xlu0 %v1269
        %v1271 = vpop.xlane.xlu0 %1270
        %v1272 = vadd.f32 %v1190, %v1191
        %1273 = vadd.xlane.f32.xlu0 %v1272
        %v1274 = vpop.xlane.xlu0 %1273
        %v1275 = vadd.f32 %v1192, %v1193
        %1276 = vadd.xlane.f32.xlu0 %v1275
        %v1277 = vpop.xlane.xlu0 %1276
        %v1278 = vadd.f32 %v1194, %v1195
        %1279 = vadd.xlane.f32.xlu0 %v1278
        %v1280 = vpop.xlane.xlu0 %1279
        %v1281 = vadd.f32 %v1196, %v1197
        %1282 = vadd.xlane.f32.xlu0 %v1281
        %v1283 = vpop.xlane.xlu0 %1282
        %v1284 = vadd.f32 %v1198, %v1199
        %1285 = vadd.xlane.f32.xlu0 %v1284
        %v1286 = vpop.xlane.xlu0 %1285
        %v1287 = vadd.f32 %v1200, %v1201
        %1288 = vadd.xlane.f32.xlu0 %v1287
        %v1289 = vpop.xlane.xlu0 %1288
        %v1290 = vadd.f32 %v1202, %v1203
        %1291 = vadd.xlane.f32.xlu0 %v1290
        %v1292 = vpop.xlane.xlu0 %1291
        %v1293 = vadd.f32 %v1204, %v1205
        %1294 = vadd.xlane.f32.xlu0 %v1293
        %v1295 = vpop.xlane.xlu0 %1294
        %v1296 = vadd.f32 %v1206, %v1207
        %1297 = vadd.xlane.f32.xlu0 %v1296
        %v1298 = vpop.xlane.xlu0 %1297
        %v1299 = vadd.f32 %v1208, %v1209
        %1300 = vadd.xlane.f32.xlu0 %v1299
        %v1301 = vpop.xlane.xlu0 %1300
        %v1302 = vadd.f32 %v1210, %v1211
        %1303 = vadd.xlane.f32.xlu0 %v1302
        %v1304 = vpop.xlane.xlu0 %1303
        %v1305 = vadd.f32 %v1212, %v1213
        %1306 = vadd.xlane.f32.xlu0 %v1305
        %v1307 = vpop.xlane.xlu0 %1306
        %v1308 = vadd.f32 %v1214, %v1215
        %1309 = vadd.xlane.f32.xlu0 %v1308
        %v1310 = vpop.xlane.xlu0 %1309
        %v1311 = vadd.f32 %v1216, %v1217
        %1312 = vadd.xlane.f32.xlu0 %v1311
        %v1313 = vpop.xlane.xlu0 %1312
        %v1314 = vmul.f32 %v1154, %v1154
        %v1315 = vmul.f32 %v1155, %v1155
        %v1316 = vmul.f32 %v1156, %v1156
        %v1317 = vmul.f32 %v1157, %v1157
        %v1318 = vmul.f32 %v1158, %v1158
        %v1319 = vmul.f32 %v1159, %v1159
        %v1320 = vmul.f32 %v1160, %v1160
        %v1321 = vmul.f32 %v1161, %v1161
        %v1322 = vmul.f32 %v1162, %v1162
        %v1323 = vmul.f32 %v1163, %v1163
        %v1324 = vmul.f32 %v1164, %v1164
        %v1325 = vmul.f32 %v1165, %v1165
        %v1326 = vmul.f32 %v1166, %v1166
        %v1327 = vmul.f32 %v1167, %v1167
        %v1328 = vmul.f32 %v1168, %v1168
        %v1329 = vmul.f32 %v1169, %v1169
        %v1330 = vmul.f32 %v1170, %v1170
        %v1331 = vmul.f32 %v1171, %v1171
        %v1332 = vmul.f32 %v1172, %v1172
        %v1333 = vmul.f32 %v1173, %v1173
        %v1334 = vmul.f32 %v1174, %v1174
        %v1335 = vmul.f32 %v1175, %v1175
        %v1336 = vmul.f32 %v1176, %v1176
        %v1337 = vmul.f32 %v1177, %v1177
        %v1338 = vmul.f32 %v1178, %v1178
        %v1339 = vmul.f32 %v1179, %v1179
        %v1340 = vmul.f32 %v1180, %v1180
        %v1341 = vmul.f32 %v1181, %v1181
        %v1342 = vmul.f32 %v1182, %v1182
        %v1343 = vmul.f32 %v1183, %v1183
        %v1344 = vmul.f32 %v1184, %v1184
        %v1345 = vmul.f32 %v1185, %v1185
        %v1346 = vmul.f32 %v1186, %v1186
        %v1347 = vmul.f32 %v1187, %v1187
        %v1348 = vmul.f32 %v1188, %v1188
        %v1349 = vmul.f32 %v1189, %v1189
        %v1350 = vmul.f32 %v1190, %v1190
        %v1351 = vmul.f32 %v1191, %v1191
        %v1352 = vmul.f32 %v1192, %v1192
        %v1353 = vmul.f32 %v1193, %v1193
        %v1354 = vmul.f32 %v1194, %v1194
        %v1355 = vmul.f32 %v1195, %v1195
        %v1356 = vmul.f32 %v1196, %v1196
        %v1357 = vmul.f32 %v1197, %v1197
        %v1358 = vmul.f32 %v1198, %v1198
        %v1359 = vmul.f32 %v1199, %v1199
        %v1360 = vmul.f32 %v1200, %v1200
        %v1361 = vmul.f32 %v1201, %v1201
        %v1362 = vmul.f32 %v1202, %v1202
        %v1363 = vmul.f32 %v1203, %v1203
        %v1364 = vmul.f32 %v1204, %v1204
        %v1365 = vmul.f32 %v1205, %v1205
        %v1366 = vmul.f32 %v1206, %v1206
        %v1367 = vmul.f32 %v1207, %v1207
        %v1368 = vmul.f32 %v1208, %v1208
        %v1369 = vmul.f32 %v1209, %v1209
        %v1370 = vmul.f32 %v1210, %v1210
        %v1371 = vmul.f32 %v1211, %v1211
        %v1372 = vmul.f32 %v1212, %v1212
        %v1373 = vmul.f32 %v1213, %v1213
        %v1374 = vmul.f32 %v1214, %v1214
        %v1375 = vmul.f32 %v1215, %v1215
        %v1376 = vmul.f32 %v1216, %v1216
        %v1377 = vmul.f32 %v1217, %v1217
        %v1378 = vadd.f32 %v1314, %v1315
        %1379 = vadd.xlane.f32.xlu0 %v1378
        %v1380 = vpop.xlane.xlu0 %1379
        %v1381 = vadd.f32 %v1316, %v1317
        %1382 = vadd.xlane.f32.xlu0 %v1381
        %v1383 = vpop.xlane.xlu0 %1382
        %v1384 = vadd.f32 %v1318, %v1319
        %1385 = vadd.xlane.f32.xlu0 %v1384
        %v1386 = vpop.xlane.xlu0 %1385
        %v1387 = vadd.f32 %v1320, %v1321
        %1388 = vadd.xlane.f32.xlu0 %v1387
        %v1389 = vpop.xlane.xlu0 %1388
        %v1390 = vadd.f32 %v1322, %v1323
        %1391 = vadd.xlane.f32.xlu0 %v1390
        %v1392 = vpop.xlane.xlu0 %1391
        %v1393 = vadd.f32 %v1324, %v1325
        %1394 = vadd.xlane.f32.xlu0 %v1393
        %v1395 = vpop.xlane.xlu0 %1394
        %v1396 = vadd.f32 %v1326, %v1327
        %1397 = vadd.xlane.f32.xlu0 %v1396
        %v1398 = vpop.xlane.xlu0 %1397
        %v1399 = vadd.f32 %v1328, %v1329
        %1400 = vadd.xlane.f32.xlu0 %v1399
        %v1401 = vpop.xlane.xlu0 %1400
        %v1402 = vadd.f32 %v1330, %v1331
        %1403 = vadd.xlane.f32.xlu0 %v1402
        %v1404 = vpop.xlane.xlu0 %1403
        %v1405 = vadd.f32 %v1332, %v1333
        %1406 = vadd.xlane.f32.xlu0 %v1405
        %v1407 = vpop.xlane.xlu0 %1406
        %v1408 = vadd.f32 %v1334, %v1335
        %1409 = vadd.xlane.f32.xlu0 %v1408
        %v1410 = vpop.xlane.xlu0 %1409
        %v1411 = vadd.f32 %v1336, %v1337
        %1412 = vadd.xlane.f32.xlu0 %v1411
        %v1413 = vpop.xlane.xlu0 %1412
        %v1414 = vadd.f32 %v1338, %v1339
        %1415 = vadd.xlane.f32.xlu0 %v1414
        %v1416 = vpop.xlane.xlu0 %1415
        %v1417 = vadd.f32 %v1340, %v1341
        %1418 = vadd.xlane.f32.xlu0 %v1417
        %v1419 = vpop.xlane.xlu0 %1418
        %v1420 = vadd.f32 %v1342, %v1343
        %1421 = vadd.xlane.f32.xlu0 %v1420
        %v1422 = vpop.xlane.xlu0 %1421
        %v1423 = vadd.f32 %v1344, %v1345
        %1424 = vadd.xlane.f32.xlu0 %v1423
        %v1425 = vpop.xlane.xlu0 %1424
        %v1426 = vadd.f32 %v1346, %v1347
        %1427 = vadd.xlane.f32.xlu0 %v1426
        %v1428 = vpop.xlane.xlu0 %1427
        %v1429 = vadd.f32 %v1348, %v1349
        %1430 = vadd.xlane.f32.xlu0 %v1429
        %v1431 = vpop.xlane.xlu0 %1430
        %v1432 = vadd.f32 %v1350, %v1351
        %1433 = vadd.xlane.f32.xlu0 %v1432
        %v1434 = vpop.xlane.xlu0 %1433
        %v1435 = vadd.f32 %v1352, %v1353
        %1436 = vadd.xlane.f32.xlu0 %v1435
        %v1437 = vpop.xlane.xlu0 %1436
        %v1438 = vadd.f32 %v1354, %v1355
        %1439 = vadd.xlane.f32.xlu0 %v1438
        %v1440 = vpop.xlane.xlu0 %1439
        %v1441 = vadd.f32 %v1356, %v1357
        %1442 = vadd.xlane.f32.xlu0 %v1441
        %v1443 = vpop.xlane.xlu0 %1442
        %v1444 = vadd.f32 %v1358, %v1359
        %1445 = vadd.xlane.f32.xlu0 %v1444
        %v1446 = vpop.xlane.xlu0 %1445
        %v1447 = vadd.f32 %v1360, %v1361
        %1448 = vadd.xlane.f32.xlu0 %v1447
        %v1449 = vpop.xlane.xlu0 %1448
        %v1450 = vadd.f32 %v1362, %v1363
        %1451 = vadd.xlane.f32.xlu0 %v1450
        %v1452 = vpop.xlane.xlu0 %1451
        %v1453 = vadd.f32 %v1364, %v1365
        %1454 = vadd.xlane.f32.xlu0 %v1453
        %v1455 = vpop.xlane.xlu0 %1454
        %v1456 = vadd.f32 %v1366, %v1367
        %1457 = vadd.xlane.f32.xlu0 %v1456
        %v1458 = vpop.xlane.xlu0 %1457
        %v1459 = vadd.f32 %v1368, %v1369
        %1460 = vadd.xlane.f32.xlu0 %v1459
        %v1461 = vpop.xlane.xlu0 %1460
        %v1462 = vadd.f32 %v1370, %v1371
        %1463 = vadd.xlane.f32.xlu0 %v1462
        %v1464 = vpop.xlane.xlu0 %1463
        %v1465 = vadd.f32 %v1372, %v1373
        %1466 = vadd.xlane.f32.xlu0 %v1465
        %v1467 = vpop.xlane.xlu0 %1466
        %v1468 = vadd.f32 %v1374, %v1375
        %1469 = vadd.xlane.f32.xlu0 %v1468
        %v1470 = vpop.xlane.xlu0 %1469
        %v1471 = vadd.f32 %v1376, %v1377
        %1472 = vadd.xlane.f32.xlu0 %v1471
        %v1473 = vpop.xlane.xlu0 %1472
        %v1474 = vmul.f32 %v1220, 0.00390625
        %v1475 = vmul.f32 %v1223, 0.00390625
        %v1476 = vmul.f32 %v1226, 0.00390625
        %v1477 = vmul.f32 %v1229, 0.00390625
        %v1478 = vmul.f32 %v1232, 0.00390625
        %v1479 = vmul.f32 %v1235, 0.00390625
        %v1480 = vmul.f32 %v1238, 0.00390625
        %v1481 = vmul.f32 %v1241, 0.00390625
        %v1482 = vmul.f32 %v1244, 0.00390625
        %v1483 = vmul.f32 %v1247, 0.00390625
        %v1484 = vmul.f32 %v1250, 0.00390625
        %v1485 = vmul.f32 %v1253, 0.00390625
        %v1486 = vmul.f32 %v1256, 0.00390625
        %v1487 = vmul.f32 %v1259, 0.00390625
        %v1488 = vmul.f32 %v1262, 0.00390625
        %v1489 = vmul.f32 %v1265, 0.00390625
        %v1490 = vmul.f32 %v1268, 0.00390625
        %v1491 = vmul.f32 %v1271, 0.00390625
        %v1492 = vmul.f32 %v1274, 0.00390625
        %v1493 = vmul.f32 %v1277, 0.00390625
        %v1494 = vmul.f32 %v1280, 0.00390625
        %v1495 = vmul.f32 %v1283, 0.00390625
        %v1496 = vmul.f32 %v1286, 0.00390625
        %v1497 = vmul.f32 %v1289, 0.00390625
        %v1498 = vmul.f32 %v1292, 0.00390625
        %v1499 = vmul.f32 %v1295, 0.00390625
        %v1500 = vmul.f32 %v1298, 0.00390625
        %v1501 = vmul.f32 %v1301, 0.00390625
        %v1502 = vmul.f32 %v1304, 0.00390625
        %v1503 = vmul.f32 %v1307, 0.00390625
        %v1504 = vmul.f32 %v1310, 0.00390625
        %v1505 = vmul.f32 %v1313, 0.00390625
        %v1506 = vmul.f32 %v1380, 0.00390625
        %v1507 = vmul.f32 %v1383, 0.00390625
        %v1508 = vmul.f32 %v1386, 0.00390625
        %v1509 = vmul.f32 %v1389, 0.00390625
        %v1510 = vmul.f32 %v1392, 0.00390625
        %v1511 = vmul.f32 %v1395, 0.00390625
        %v1512 = vmul.f32 %v1398, 0.00390625
        %v1513 = vmul.f32 %v1401, 0.00390625
        %v1514 = vmul.f32 %v1404, 0.00390625
        %v1515 = vmul.f32 %v1407, 0.00390625
        %v1516 = vmul.f32 %v1410, 0.00390625
        %v1517 = vmul.f32 %v1413, 0.00390625
        %v1518 = vmul.f32 %v1416, 0.00390625
        %v1519 = vmul.f32 %v1419, 0.00390625
        %v1520 = vmul.f32 %v1422, 0.00390625
        %v1521 = vmul.f32 %v1425, 0.00390625
        %v1522 = vmul.f32 %v1428, 0.00390625
        %v1523 = vmul.f32 %v1431, 0.00390625
        %v1524 = vmul.f32 %v1434, 0.00390625
        %v1525 = vmul.f32 %v1437, 0.00390625
        %v1526 = vmul.f32 %v1440, 0.00390625
        %v1527 = vmul.f32 %v1443, 0.00390625
        %v1528 = vmul.f32 %v1446, 0.00390625
        %v1529 = vmul.f32 %v1449, 0.00390625
        %v1530 = vmul.f32 %v1452, 0.00390625
        %v1531 = vmul.f32 %v1455, 0.00390625
        %v1532 = vmul.f32 %v1458, 0.00390625
        %v1533 = vmul.f32 %v1461, 0.00390625
        %v1534 = vmul.f32 %v1464, 0.00390625
        %v1535 = vmul.f32 %v1467, 0.00390625
        %v1536 = vmul.f32 %v1470, 0.00390625
        %v1537 = vmul.f32 %v1473, 0.00390625
        %v1538 = vmul.f32 %v1474, %v1474
        %v1539 = vmul.f32 %v1475, %v1475
        %v1540 = vmul.f32 %v1476, %v1476
        %v1541 = vmul.f32 %v1477, %v1477
        %v1542 = vmul.f32 %v1478, %v1478
        %v1543 = vmul.f32 %v1479, %v1479
        %v1544 = vmul.f32 %v1480, %v1480
        %v1545 = vmul.f32 %v1481, %v1481
        %v1546 = vmul.f32 %v1482, %v1482
        %v1547 = vmul.f32 %v1483, %v1483
        %v1548 = vmul.f32 %v1484, %v1484
        %v1549 = vmul.f32 %v1485, %v1485
        %v1550 = vmul.f32 %v1486, %v1486
        %v1551 = vmul.f32 %v1487, %v1487
        %v1552 = vmul.f32 %v1488, %v1488
        %v1553 = vmul.f32 %v1489, %v1489
        %v1554 = vmul.f32 %v1490, %v1490
        %v1555 = vmul.f32 %v1491, %v1491
        %v1556 = vmul.f32 %v1492, %v1492
        %v1557 = vmul.f32 %v1493, %v1493
        %v1558 = vmul.f32 %v1494, %v1494
        %v1559 = vmul.f32 %v1495, %v1495
        %v1560 = vmul.f32 %v1496, %v1496
        %v1561 = vmul.f32 %v1497, %v1497
        %v1562 = vmul.f32 %v1498, %v1498
        %v1563 = vmul.f32 %v1499, %v1499
        %v1564 = vmul.f32 %v1500, %v1500
        %v1565 = vmul.f32 %v1501, %v1501
        %v1566 = vmul.f32 %v1502, %v1502
        %v1567 = vmul.f32 %v1503, %v1503
        %v1568 = vmul.f32 %v1504, %v1504
        %v1569 = vmul.f32 %v1505, %v1505
        %v1570 = vsub.f32 %v1506, %v1538
        %v1571 = vsub.f32 %v1507, %v1539
        %v1572 = vsub.f32 %v1508, %v1540
        %v1573 = vsub.f32 %v1509, %v1541
        %v1574 = vsub.f32 %v1510, %v1542
        %v1575 = vsub.f32 %v1511, %v1543
        %v1576 = vsub.f32 %v1512, %v1544
        %v1577 = vsub.f32 %v1513, %v1545
        %v1578 = vsub.f32 %v1514, %v1546
        %v1579 = vsub.f32 %v1515, %v1547
        %v1580 = vsub.f32 %v1516, %v1548
        %v1581 = vsub.f32 %v1517, %v1549
        %v1582 = vsub.f32 %v1518, %v1550
        %v1583 = vsub.f32 %v1519, %v1551
        %v1584 = vsub.f32 %v1520, %v1552
        %v1585 = vsub.f32 %v1521, %v1553
        %v1586 = vsub.f32 %v1522, %v1554
        %v1587 = vsub.f32 %v1523, %v1555
        %v1588 = vsub.f32 %v1524, %v1556
        %v1589 = vsub.f32 %v1525, %v1557
        %v1590 = vsub.f32 %v1526, %v1558
        %v1591 = vsub.f32 %v1527, %v1559
        %v1592 = vsub.f32 %v1528, %v1560
        %v1593 = vsub.f32 %v1529, %v1561
        %v1594 = vsub.f32 %v1530, %v1562
        %v1595 = vsub.f32 %v1531, %v1563
        %v1596 = vsub.f32 %v1532, %v1564
        %v1597 = vsub.f32 %v1533, %v1565
        %v1598 = vsub.f32 %v1534, %v1566
        %v1599 = vsub.f32 %v1535, %v1567
        %v1600 = vsub.f32 %v1536, %v1568
        %v1601 = vsub.f32 %v1537, %v1569
        %v1602 = vmax.f32 %v1570, 0.0
        %v1603 = vmax.f32 %v1571, 0.0
        %v1604 = vmax.f32 %v1572, 0.0
        %v1605 = vmax.f32 %v1573, 0.0
        %v1606 = vmax.f32 %v1574, 0.0
        %v1607 = vmax.f32 %v1575, 0.0
        %v1608 = vmax.f32 %v1576, 0.0
        %v1609 = vmax.f32 %v1577, 0.0
        %v1610 = vmax.f32 %v1578, 0.0
        %v1611 = vmax.f32 %v1579, 0.0
        %v1612 = vmax.f32 %v1580, 0.0
        %v1613 = vmax.f32 %v1581, 0.0
        %v1614 = vmax.f32 %v1582, 0.0
        %v1615 = vmax.f32 %v1583, 0.0
        %v1616 = vmax.f32 %v1584, 0.0
        %v1617 = vmax.f32 %v1585, 0.0
        %v1618 = vmax.f32 %v1586, 0.0
        %v1619 = vmax.f32 %v1587, 0.0
        %v1620 = vmax.f32 %v1588, 0.0
        %v1621 = vmax.f32 %v1589, 0.0
        %v1622 = vmax.f32 %v1590, 0.0
        %v1623 = vmax.f32 %v1591, 0.0
        %v1624 = vmax.f32 %v1592, 0.0
        %v1625 = vmax.f32 %v1593, 0.0
        %v1626 = vmax.f32 %v1594, 0.0
        %v1627 = vmax.f32 %v1595, 0.0
        %v1628 = vmax.f32 %v1596, 0.0
        %v1629 = vmax.f32 %v1597, 0.0
        %v1630 = vmax.f32 %v1598, 0.0
        %v1631 = vmax.f32 %v1599, 0.0
        %v1632 = vmax.f32 %v1600, 0.0
        %v1633 = vmax.f32 %v1601, 0.0
        %v1634 = vadd.f32 %v1602, 1e-05
        %v1635 = vadd.f32 %v1603, 1e-05
        %v1636 = vadd.f32 %v1604, 1e-05
        %v1637 = vadd.f32 %v1605, 1e-05
        %v1638 = vadd.f32 %v1606, 1e-05
        %v1639 = vadd.f32 %v1607, 1e-05
        %v1640 = vadd.f32 %v1608, 1e-05
        %v1641 = vadd.f32 %v1609, 1e-05
        %v1642 = vadd.f32 %v1610, 1e-05
        %v1643 = vadd.f32 %v1611, 1e-05
        %v1644 = vadd.f32 %v1612, 1e-05
        %v1645 = vadd.f32 %v1613, 1e-05
        %v1646 = vadd.f32 %v1614, 1e-05
        %v1647 = vadd.f32 %v1615, 1e-05
        %v1648 = vadd.f32 %v1616, 1e-05
        %v1649 = vadd.f32 %v1617, 1e-05
        %v1650 = vadd.f32 %v1618, 1e-05
        %v1651 = vadd.f32 %v1619, 1e-05
        %v1652 = vadd.f32 %v1620, 1e-05
        %v1653 = vadd.f32 %v1621, 1e-05
        %v1654 = vadd.f32 %v1622, 1e-05
        %v1655 = vadd.f32 %v1623, 1e-05
        %v1656 = vadd.f32 %v1624, 1e-05
        %v1657 = vadd.f32 %v1625, 1e-05
        %v1658 = vadd.f32 %v1626, 1e-05
        %v1659 = vadd.f32 %v1627, 1e-05
        %v1660 = vadd.f32 %v1628, 1e-05
        %v1661 = vadd.f32 %v1629, 1e-05
        %v1662 = vadd.f32 %v1630, 1e-05
        %v1663 = vadd.f32 %v1631, 1e-05
        %v1664 = vadd.f32 %v1632, 1e-05
        %v1665 = vadd.f32 %v1633, 1e-05
        %v1666 = vrsqrt.pop %v1634
        %v1667 = vrsqrt.pop %v1635
        %v1668 = vrsqrt.pop %v1636
        %v1669 = vrsqrt.pop %v1637
        %v1670 = vrsqrt.pop %v1638
        %v1671 = vrsqrt.pop %v1639
        %v1672 = vrsqrt.pop %v1640
        %v1673 = vrsqrt.pop %v1641
        %v1674 = vrsqrt.pop %v1642
        %v1675 = vrsqrt.pop %v1643
        %v1676 = vrsqrt.pop %v1644
        %v1677 = vrsqrt.pop %v1645
        %v1678 = vrsqrt.pop %v1646
        %v1679 = vrsqrt.pop %v1647
        %v1680 = vrsqrt.pop %v1648
        %v1681 = vrsqrt.pop %v1649
        %v1682 = vrsqrt.pop %v1650
        %v1683 = vrsqrt.pop %v1651
        %v1684 = vrsqrt.pop %v1652
        %v1685 = vrsqrt.pop %v1653
        %v1686 = vrsqrt.pop %v1654
        %v1687 = vrsqrt.pop %v1655
        %v1688 = vrsqrt.pop %v1656
        %v1689 = vrsqrt.pop %v1657
        %v1690 = vrsqrt.pop %v1658
        %v1691 = vrsqrt.pop %v1659
        %v1692 = vrsqrt.pop %v1660
        %v1693 = vrsqrt.pop %v1661
        %v1694 = vrsqrt.pop %v1662
        %v1695 = vrsqrt.pop %v1663
        %v1696 = vrsqrt.pop %v1664
        %v1697 = vrsqrt.pop %v1665
        %v1699 = vlaneseq
        %v1700 = vshrl.u32 %v1699, 7
        %v1701 = vsub.s32 0, %v1700
        %v1702 = vrot.slane %v277, %v1701
        %v1703 = vlaneseq
        %v1704 = vshrl.u32 %v1703, 7
        %v1705 = vsub.s32 1, %v1704
        %v1706 = vrot.slane %v277, %v1705
        %v1709 = vmul.f32 %v1702, %v1666
        %v1710 = vmul.f32 %v1706, %v1666
        %v1711 = vmul.f32 %v1702, %v1667
        %v1712 = vmul.f32 %v1706, %v1667
        %v1713 = vmul.f32 %v1702, %v1668
        %v1714 = vmul.f32 %v1706, %v1668
        %v1715 = vmul.f32 %v1702, %v1669
        %v1716 = vmul.f32 %v1706, %v1669
        %v1717 = vmul.f32 %v1702, %v1670
        %v1718 = vmul.f32 %v1706, %v1670
        %v1719 = vmul.f32 %v1702, %v1671
        %v1720 = vmul.f32 %v1706, %v1671
        %v1721 = vmul.f32 %v1702, %v1672
        %v1722 = vmul.f32 %v1706, %v1672
        %v1723 = vmul.f32 %v1702, %v1673
        %v1724 = vmul.f32 %v1706, %v1673
        %v1725 = vmul.f32 %v1702, %v1674
        %v1726 = vmul.f32 %v1706, %v1674
        %v1727 = vmul.f32 %v1702, %v1675
        %v1728 = vmul.f32 %v1706, %v1675
        %v1729 = vmul.f32 %v1702, %v1676
        %v1730 = vmul.f32 %v1706, %v1676
        %v1731 = vmul.f32 %v1702, %v1677
        %v1732 = vmul.f32 %v1706, %v1677
        %v1733 = vmul.f32 %v1702, %v1678
        %v1734 = vmul.f32 %v1706, %v1678
        %v1735 = vmul.f32 %v1702, %v1679
        %v1736 = vmul.f32 %v1706, %v1679
        %v1737 = vmul.f32 %v1702, %v1680
        %v1738 = vmul.f32 %v1706, %v1680
        %v1739 = vmul.f32 %v1702, %v1681
        %v1740 = vmul.f32 %v1706, %v1681
        %v1741 = vmul.f32 %v1702, %v1682
        %v1742 = vmul.f32 %v1706, %v1682
        %v1743 = vmul.f32 %v1702, %v1683
        %v1744 = vmul.f32 %v1706, %v1683
        %v1745 = vmul.f32 %v1702, %v1684
        %v1746 = vmul.f32 %v1706, %v1684
        %v1747 = vmul.f32 %v1702, %v1685
        %v1748 = vmul.f32 %v1706, %v1685
        %v1749 = vmul.f32 %v1702, %v1686
        %v1750 = vmul.f32 %v1706, %v1686
        %v1751 = vmul.f32 %v1702, %v1687
        %v1752 = vmul.f32 %v1706, %v1687
        %v1753 = vmul.f32 %v1702, %v1688
        %v1754 = vmul.f32 %v1706, %v1688
        %v1755 = vmul.f32 %v1702, %v1689
        %v1756 = vmul.f32 %v1706, %v1689
        %v1757 = vmul.f32 %v1702, %v1690
        %v1758 = vmul.f32 %v1706, %v1690
        %v1759 = vmul.f32 %v1702, %v1691
        %v1760 = vmul.f32 %v1706, %v1691
        %v1761 = vmul.f32 %v1702, %v1692
        %v1762 = vmul.f32 %v1706, %v1692
        %v1763 = vmul.f32 %v1702, %v1693
        %v1764 = vmul.f32 %v1706, %v1693
        %v1765 = vmul.f32 %v1702, %v1694
        %v1766 = vmul.f32 %v1706, %v1694
        %v1767 = vmul.f32 %v1702, %v1695
        %v1768 = vmul.f32 %v1706, %v1695
        %v1769 = vmul.f32 %v1702, %v1696
        %v1770 = vmul.f32 %v1706, %v1696
        %v1771 = vmul.f32 %v1702, %v1697
        %v1772 = vmul.f32 %v1706, %v1697
        %v1773 = vsub.f32 %v1154, %v1474
        %v1774 = vsub.f32 %v1155, %v1474
        %v1775 = vsub.f32 %v1156, %v1475
        %v1776 = vsub.f32 %v1157, %v1475
        %v1777 = vsub.f32 %v1158, %v1476
        %v1778 = vsub.f32 %v1159, %v1476
        %v1779 = vsub.f32 %v1160, %v1477
        %v1780 = vsub.f32 %v1161, %v1477
        %v1781 = vsub.f32 %v1162, %v1478
        %v1782 = vsub.f32 %v1163, %v1478
        %v1783 = vsub.f32 %v1164, %v1479
        %v1784 = vsub.f32 %v1165, %v1479
        %v1785 = vsub.f32 %v1166, %v1480
        %v1786 = vsub.f32 %v1167, %v1480
        %v1787 = vsub.f32 %v1168, %v1481
        %v1788 = vsub.f32 %v1169, %v1481
        %v1789 = vsub.f32 %v1170, %v1482
        %v1790 = vsub.f32 %v1171, %v1482
        %v1791 = vsub.f32 %v1172, %v1483
        %v1792 = vsub.f32 %v1173, %v1483
        %v1793 = vsub.f32 %v1174, %v1484
        %v1794 = vsub.f32 %v1175, %v1484
        %v1795 = vsub.f32 %v1176, %v1485
        %v1796 = vsub.f32 %v1177, %v1485
        %v1797 = vsub.f32 %v1178, %v1486
        %v1798 = vsub.f32 %v1179, %v1486
        %v1799 = vsub.f32 %v1180, %v1487
        %v1800 = vsub.f32 %v1181, %v1487
        %v1801 = vsub.f32 %v1182, %v1488
        %v1802 = vsub.f32 %v1183, %v1488
        %v1803 = vsub.f32 %v1184, %v1489
        %v1804 = vsub.f32 %v1185, %v1489
        %v1805 = vsub.f32 %v1186, %v1490
        %v1806 = vsub.f32 %v1187, %v1490
        %v1807 = vsub.f32 %v1188, %v1491
        %v1808 = vsub.f32 %v1189, %v1491
        %v1809 = vsub.f32 %v1190, %v1492
        %v1810 = vsub.f32 %v1191, %v1492
        %v1811 = vsub.f32 %v1192, %v1493
        %v1812 = vsub.f32 %v1193, %v1493
        %v1813 = vsub.f32 %v1194, %v1494
        %v1814 = vsub.f32 %v1195, %v1494
        %v1815 = vsub.f32 %v1196, %v1495
        %v1816 = vsub.f32 %v1197, %v1495
        %v1817 = vsub.f32 %v1198, %v1496
        %v1818 = vsub.f32 %v1199, %v1496
        %v1819 = vsub.f32 %v1200, %v1497
        %v1820 = vsub.f32 %v1201, %v1497
        %v1821 = vsub.f32 %v1202, %v1498
        %v1822 = vsub.f32 %v1203, %v1498
        %v1823 = vsub.f32 %v1204, %v1499
        %v1824 = vsub.f32 %v1205, %v1499
        %v1825 = vsub.f32 %v1206, %v1500
        %v1826 = vsub.f32 %v1207, %v1500
        %v1827 = vsub.f32 %v1208, %v1501
        %v1828 = vsub.f32 %v1209, %v1501
        %v1829 = vsub.f32 %v1210, %v1502
        %v1830 = vsub.f32 %v1211, %v1502
        %v1831 = vsub.f32 %v1212, %v1503
        %v1832 = vsub.f32 %v1213, %v1503
        %v1833 = vsub.f32 %v1214, %v1504
        %v1834 = vsub.f32 %v1215, %v1504
        %v1835 = vsub.f32 %v1216, %v1505
        %v1836 = vsub.f32 %v1217, %v1505
        %v1837 = vmul.f32 %v1773, %v1709
        %v1838 = vmul.f32 %v1774, %v1710
        %v1839 = vmul.f32 %v1775, %v1711
        %v1840 = vmul.f32 %v1776, %v1712
        %v1841 = vmul.f32 %v1777, %v1713
        %v1842 = vmul.f32 %v1778, %v1714
        %v1843 = vmul.f32 %v1779, %v1715
        %v1844 = vmul.f32 %v1780, %v1716
        %v1845 = vmul.f32 %v1781, %v1717
        %v1846 = vmul.f32 %v1782, %v1718
        %v1847 = vmul.f32 %v1783, %v1719
        %v1848 = vmul.f32 %v1784, %v1720
        %v1849 = vmul.f32 %v1785, %v1721
        %v1850 = vmul.f32 %v1786, %v1722
        %v1851 = vmul.f32 %v1787, %v1723
        %v1852 = vmul.f32 %v1788, %v1724
        %v1853 = vmul.f32 %v1789, %v1725
        %v1854 = vmul.f32 %v1790, %v1726
        %v1855 = vmul.f32 %v1791, %v1727
        %v1856 = vmul.f32 %v1792, %v1728
        %v1857 = vmul.f32 %v1793, %v1729
        %v1858 = vmul.f32 %v1794, %v1730
        %v1859 = vmul.f32 %v1795, %v1731
        %v1860 = vmul.f32 %v1796, %v1732
        %v1861 = vmul.f32 %v1797, %v1733
        %v1862 = vmul.f32 %v1798, %v1734
        %v1863 = vmul.f32 %v1799, %v1735
        %v1864 = vmul.f32 %v1800, %v1736
        %v1865 = vmul.f32 %v1801, %v1737
        %v1866 = vmul.f32 %v1802, %v1738
        %v1867 = vmul.f32 %v1803, %v1739
        %v1868 = vmul.f32 %v1804, %v1740
        %v1869 = vmul.f32 %v1805, %v1741
        %v1870 = vmul.f32 %v1806, %v1742
        %v1871 = vmul.f32 %v1807, %v1743
        %v1872 = vmul.f32 %v1808, %v1744
        %v1873 = vmul.f32 %v1809, %v1745
        %v1874 = vmul.f32 %v1810, %v1746
        %v1875 = vmul.f32 %v1811, %v1747
        %v1876 = vmul.f32 %v1812, %v1748
        %v1877 = vmul.f32 %v1813, %v1749
        %v1878 = vmul.f32 %v1814, %v1750
        %v1879 = vmul.f32 %v1815, %v1751
        %v1880 = vmul.f32 %v1816, %v1752
        %v1881 = vmul.f32 %v1817, %v1753
        %v1882 = vmul.f32 %v1818, %v1754
        %v1883 = vmul.f32 %v1819, %v1755
        %v1884 = vmul.f32 %v1820, %v1756
        %v1885 = vmul.f32 %v1821, %v1757
        %v1886 = vmul.f32 %v1822, %v1758
        %v1887 = vmul.f32 %v1823, %v1759
        %v1888 = vmul.f32 %v1824, %v1760
        %v1889 = vmul.f32 %v1825, %v1761
        %v1890 = vmul.f32 %v1826, %v1762
        %v1891 = vmul.f32 %v1827, %v1763
        %v1892 = vmul.f32 %v1828, %v1764
        %v1893 = vmul.f32 %v1829, %v1765
        %v1894 = vmul.f32 %v1830, %v1766
        %v1895 = vmul.f32 %v1831, %v1767
        %v1896 = vmul.f32 %v1832, %v1768
        %v1897 = vmul.f32 %v1833, %v1769
        %v1898 = vmul.f32 %v1834, %v1770
        %v1899 = vmul.f32 %v1835, %v1771
        %v1900 = vmul.f32 %v1836, %v1772
        %v1902 = vlaneseq
        %v1903 = vshrl.u32 %v1902, 7
        %v1904 = vsub.s32 0, %v1903
        %v1905 = vrot.slane %v279, %v1904
        %v1906 = vlaneseq
        %v1907 = vshrl.u32 %v1906, 7
        %v1908 = vsub.s32 1, %v1907
        %v1909 = vrot.slane %v279, %v1908
        %v1912 = vadd.f32 %v1837, %v1905
        %v1913 = vadd.f32 %v1838, %v1909
        %v1914 = vadd.f32 %v1839, %v1905
        %v1915 = vadd.f32 %v1840, %v1909
        %v1916 = vadd.f32 %v1841, %v1905
        %v1917 = vadd.f32 %v1842, %v1909
        %v1918 = vadd.f32 %v1843, %v1905
        %v1919 = vadd.f32 %v1844, %v1909
        %v1920 = vadd.f32 %v1845, %v1905
        %v1921 = vadd.f32 %v1846, %v1909
        %v1922 = vadd.f32 %v1847, %v1905
        %v1923 = vadd.f32 %v1848, %v1909
        %v1924 = vadd.f32 %v1849, %v1905
        %v1925 = vadd.f32 %v1850, %v1909
        %v1926 = vadd.f32 %v1851, %v1905
        %v1927 = vadd.f32 %v1852, %v1909
        %v1928 = vadd.f32 %v1853, %v1905
        %v1929 = vadd.f32 %v1854, %v1909
        %v1930 = vadd.f32 %v1855, %v1905
        %v1931 = vadd.f32 %v1856, %v1909
        %v1932 = vadd.f32 %v1857, %v1905
        %v1933 = vadd.f32 %v1858, %v1909
        %v1934 = vadd.f32 %v1859, %v1905
        %v1935 = vadd.f32 %v1860, %v1909
        %v1936 = vadd.f32 %v1861, %v1905
        %v1937 = vadd.f32 %v1862, %v1909
        %v1938 = vadd.f32 %v1863, %v1905
        %v1939 = vadd.f32 %v1864, %v1909
        %v1940 = vadd.f32 %v1865, %v1905
        %v1941 = vadd.f32 %v1866, %v1909
        %v1942 = vadd.f32 %v1867, %v1905
        %v1943 = vadd.f32 %v1868, %v1909
        %v1944 = vadd.f32 %v1869, %v1905
        %v1945 = vadd.f32 %v1870, %v1909
        %v1946 = vadd.f32 %v1871, %v1905
        %v1947 = vadd.f32 %v1872, %v1909
        %v1948 = vadd.f32 %v1873, %v1905
        %v1949 = vadd.f32 %v1874, %v1909
        %v1950 = vadd.f32 %v1875, %v1905
        %v1951 = vadd.f32 %v1876, %v1909
        %v1952 = vadd.f32 %v1877, %v1905
        %v1953 = vadd.f32 %v1878, %v1909
        %v1954 = vadd.f32 %v1879, %v1905
        %v1955 = vadd.f32 %v1880, %v1909
        %v1956 = vadd.f32 %v1881, %v1905
        %v1957 = vadd.f32 %v1882, %v1909
        %v1958 = vadd.f32 %v1883, %v1905
        %v1959 = vadd.f32 %v1884, %v1909
        %v1960 = vadd.f32 %v1885, %v1905
        %v1961 = vadd.f32 %v1886, %v1909
        %v1962 = vadd.f32 %v1887, %v1905
        %v1963 = vadd.f32 %v1888, %v1909
        %v1964 = vadd.f32 %v1889, %v1905
        %v1965 = vadd.f32 %v1890, %v1909
        %v1966 = vadd.f32 %v1891, %v1905
        %v1967 = vadd.f32 %v1892, %v1909
        %v1968 = vadd.f32 %v1893, %v1905
        %v1969 = vadd.f32 %v1894, %v1909
        %v1970 = vadd.f32 %v1895, %v1905
        %v1971 = vadd.f32 %v1896, %v1909
        %v1972 = vadd.f32 %v1897, %v1905
        %v1973 = vadd.f32 %v1898, %v1909
        %v1974 = vadd.f32 %v1899, %v1905
        %v1975 = vadd.f32 %v1900, %v1909
        %v1976 = vld [vmem:[%s4] sm:$0xff]
        %v1977 = vld [vmem:[%s4 + $0x8] sm:$0xff]
        %v1978 = vld [vmem:[%s4 + $0x10] sm:$0xff]
        %v1979 = vld [vmem:[%s4 + $0x18] sm:$0xff]
        %v1980 = vld [vmem:[%s4 + $0x20] sm:$0xff]
        %v1981 = vld [vmem:[%s4 + $0x28] sm:$0xff]
        %v1982 = vld [vmem:[%s4 + $0x30] sm:$0xff]
        %v1983 = vld [vmem:[%s4 + $0x38] sm:$0xff]
        %v1984 = vld [vmem:[%s4 + $0x40] sm:$0xff]
        %v1985 = vld [vmem:[%s4 + $0x48] sm:$0xff]
        %v1986 = vld [vmem:[%s4 + $0x50] sm:$0xff]
        %v1987 = vld [vmem:[%s4 + $0x58] sm:$0xff]
        %v1988 = vld [vmem:[%s4 + $0x60] sm:$0xff]
        %v1989 = vld [vmem:[%s4 + $0x68] sm:$0xff]
        %v1990 = vld [vmem:[%s4 + $0x70] sm:$0xff]
        %v1991 = vld [vmem:[%s4 + $0x78] sm:$0xff]
        %v1992 = vld [vmem:[%s4 + $0x80] sm:$0xff]
        %v1993 = vld [vmem:[%s4 + $0x88] sm:$0xff]
        %v1994 = vld [vmem:[%s4 + $0x90] sm:$0xff]
        %v1995 = vld [vmem:[%s4 + $0x98] sm:$0xff]
        %v1996 = vld [vmem:[%s4 + $0xa0] sm:$0xff]
        %v1997 = vld [vmem:[%s4 + $0xa8] sm:$0xff]
        %v1998 = vld [vmem:[%s4 + $0xb0] sm:$0xff]
        %v1999 = vld [vmem:[%s4 + $0xb8] sm:$0xff]
        %v2000 = vld [vmem:[%s4 + $0xc0] sm:$0xff]
        %v2001 = vld [vmem:[%s4 + $0xc8] sm:$0xff]
        %v2002 = vld [vmem:[%s4 + $0xd0] sm:$0xff]
        %v2003 = vld [vmem:[%s4 + $0xd8] sm:$0xff]
        %v2004 = vld [vmem:[%s4 + $0xe0] sm:$0xff]
        %v2005 = vld [vmem:[%s4 + $0xe8] sm:$0xff]
        %v2006 = vld [vmem:[%s4 + $0xf0] sm:$0xff]
        %v2007 = vld [vmem:[%s4 + $0xf8] sm:$0xff]
        %v2008 = vld [vmem:[%s4 + $0x100] sm:$0xff]
        %v2009 = vld [vmem:[%s4 + $0x108] sm:$0xff]
        %v2010 = vld [vmem:[%s4 + $0x110] sm:$0xff]
        %v2011 = vld [vmem:[%s4 + $0x118] sm:$0xff]
        %v2012 = vld [vmem:[%s4 + $0x120] sm:$0xff]
        %v2013 = vld [vmem:[%s4 + $0x128] sm:$0xff]
        %v2014 = vld [vmem:[%s4 + $0x130] sm:$0xff]
        %v2015 = vld [vmem:[%s4 + $0x138] sm:$0xff]
        %v2016 = vld [vmem:[%s4 + $0x140] sm:$0xff]
        %v2017 = vld [vmem:[%s4 + $0x148] sm:$0xff]
        %v2018 = vld [vmem:[%s4 + $0x150] sm:$0xff]
        %v2019 = vld [vmem:[%s4 + $0x158] sm:$0xff]
        %v2020 = vld [vmem:[%s4 + $0x160] sm:$0xff]
        %v2021 = vld [vmem:[%s4 + $0x168] sm:$0xff]
        %v2022 = vld [vmem:[%s4 + $0x170] sm:$0xff]
        %v2023 = vld [vmem:[%s4 + $0x178] sm:$0xff]
        %v2024 = vld [vmem:[%s4 + $0x180] sm:$0xff]
        %v2025 = vld [vmem:[%s4 + $0x188] sm:$0xff]
        %v2026 = vld [vmem:[%s4 + $0x190] sm:$0xff]
        %v2027 = vld [vmem:[%s4 + $0x198] sm:$0xff]
        %v2028 = vld [vmem:[%s4 + $0x1a0] sm:$0xff]
        %v2029 = vld [vmem:[%s4 + $0x1a8] sm:$0xff]
        %v2030 = vld [vmem:[%s4 + $0x1b0] sm:$0xff]
        %v2031 = vld [vmem:[%s4 + $0x1b8] sm:$0xff]
        %v2032 = vld [vmem:[%s4 + $0x1c0] sm:$0xff]
        %v2033 = vld [vmem:[%s4 + $0x1c8] sm:$0xff]
        %v2034 = vld [vmem:[%s4 + $0x1d0] sm:$0xff]
        %v2035 = vld [vmem:[%s4 + $0x1d8] sm:$0xff]
        %v2036 = vld [vmem:[%s4 + $0x1e0] sm:$0xff]
        %v2037 = vld [vmem:[%s4 + $0x1e8] sm:$0xff]
        %v2038 = vld [vmem:[%s4 + $0x1f0] sm:$0xff]
        %v2039 = vld [vmem:[%s4 + $0x1f8] sm:$0xff]
        %v2041 = vlaneseq
        %v2042 = vshrl.u32 %v2041, 7
        %v2043 = vsub.s32 0, %v2042
        %v2044 = vrot.slane %v281, %v2043
        %v2045 = vlaneseq
        %v2046 = vshrl.u32 %v2045, 7
        %v2047 = vsub.s32 1, %v2046
        %v2048 = vrot.slane %v281, %v2047
        %2051 = vmatprep.subr.mxu0 %v1977
        %2052 = vmatpush1.msra.mxu0 %v1976
        %2053 = vmatprep.subr.mxu0 %v1979
        %2054 = vmatpush1.msra.mxu0 %v1978
        %2055 = vmatprep.subr.mxu0 %v1981
        %2056 = vmatpush1.msra.mxu0 %v1980
        %2057 = vmatprep.subr.mxu0 %v1983
        %2058 = vmatpush1.msra.mxu0 %v1982
        %2059 = vmatprep.subr.mxu0 %v1985
        %2060 = vmatpush1.msra.mxu0 %v1984
        %2061 = vmatprep.subr.mxu0 %v1987
        %2062 = vmatpush1.msra.mxu0 %v1986
        %2063 = vmatprep.subr.mxu0 %v1989
        %2064 = vmatpush1.msra.mxu0 %v1988
        %2065 = vmatprep.subr.mxu0 %v1991
        %2066 = vmatpush1.msra.mxu0 %v1990
        %2067 = vmatprep.subr.mxu0 %v1993
        %2068 = vmatpush1.msra.mxu0 %v1992
        %2069 = vmatprep.subr.mxu0 %v1995
        %2070 = vmatpush1.msra.mxu0 %v1994
        %2071 = vmatprep.subr.mxu0 %v1997
        %2072 = vmatpush1.msra.mxu0 %v1996
        %2073 = vmatprep.subr.mxu0 %v1999
        %2074 = vmatpush1.msra.mxu0 %v1998
        %2075 = vmatprep.subr.mxu0 %v2001
        %2076 = vmatpush1.msra.mxu0 %v2000
        %2077 = vmatprep.subr.mxu0 %v2003
        %2078 = vmatpush1.msra.mxu0 %v2002
        %2079 = vmatprep.subr.mxu0 %v2005
        %2080 = vmatpush1.msra.mxu0 %v2004
        %2081 = vmatprep.subr.mxu0 %v2007
        %2082 = vmatpush1.msra.mxu0 %v2006
        %2083 = vmatprep.subr.mxu0 %v2009
        %2084 = vmatpush1.msra.mxu0 %v2008
        %2085 = vmatprep.subr.mxu0 %v2011
        %2086 = vmatpush1.msra.mxu0 %v2010
        %2087 = vmatprep.subr.mxu0 %v2013
        %2088 = vmatpush1.msra.mxu0 %v2012
        %2089 = vmatprep.subr.mxu0 %v2015
        %2090 = vmatpush1.msra.mxu0 %v2014
        %2091 = vmatprep.subr.mxu0 %v2017
        %2092 = vmatpush1.msra.mxu0 %v2016
        %2093 = vmatprep.subr.mxu0 %v2019
        %2094 = vmatpush1.msra.mxu0 %v2018
        %2095 = vmatprep.subr.mxu0 %v2021
        %2096 = vmatpush1.msra.mxu0 %v2020
        %2097 = vmatprep.subr.mxu0 %v2023
        %2098 = vmatpush1.msra.mxu0 %v2022
        %2099 = vmatprep.subr.mxu0 %v2025
        %2100 = vmatpush1.msra.mxu0 %v2024
        %2101 = vmatprep.subr.mxu0 %v2027
        %2102 = vmatpush1.msra.mxu0 %v2026
        %2103 = vmatprep.subr.mxu0 %v2029
        %2104 = vmatpush1.msra.mxu0 %v2028
        %2105 = vmatprep.subr.mxu0 %v2031
        %2106 = vmatpush1.msra.mxu0 %v2030
        %2107 = vmatprep.subr.mxu0 %v2033
        %2108 = vmatpush1.msra.mxu0 %v2032
        %2109 = vmatprep.subr.mxu0 %v2035
        %2110 = vmatpush1.msra.mxu0 %v2034
        %2111 = vmatprep.subr.mxu0 %v2037
        %2112 = vmatpush1.msra.mxu0 %v2036
        %2113 = vmatprep.subr.mxu0 %v2039
        %2114 = vmatpush1.msra.mxu0 %v2038
        %2115 = vmatprep.mubr.f32.mxu0 %v1913
        %2116 = vmatmul.mubr.f32.gmra.mrb[0].mxu0 %v1912
        %v2117 = vpop.f32.mrb[0].mxu0
        %v2118 = vadd.f32 %v2044, %v2117
        %v2119 = vpop.f32.mrb[0].mxu0
        %v2120 = vadd.f32 %v2048, %v2119
        %2121 = vmatprep.mubr.f32.mxu0 %v1915
        %2122 = vmatmul.mubr.f32.gmra.mrb[0].mxu0 %v1914
        %v2123 = vpop.f32.mrb[0].mxu0
        %v2124 = vadd.f32 %v2044, %v2123
        %v2125 = vpop.f32.mrb[0].mxu0
        %v2126 = vadd.f32 %v2048, %v2125
        %2127 = vmatprep.mubr.f32.mxu0 %v1917
        %2128 = vmatmul.mubr.f32.gmra.mrb[0].mxu0 %v1916
        %v2129 = vpop.f32.mrb[0].mxu0
        %v2130 = vadd.f32 %v2044, %v2129
        %v2131 = vpop.f32.mrb[0].mxu0
        %v2132 = vadd.f32 %v2048, %v2131
        %2133 = vmatprep.mubr.f32.mxu0 %v1919
        %2134 = vmatmul.mubr.f32.gmra.mrb[0].mxu0 %v1918
        %v2135 = vpop.f32.mrb[0].mxu0
        %v2136 = vadd.f32 %v2044, %v2135
        %v2137 = vpop.f32.mrb[0].mxu0
        %v2138 = vadd.f32 %v2048, %v2137
        %2139 = vmatprep.mubr.f32.mxu0 %v1921
        %2140 = vmatmul.mubr.f32.gmra.mrb[0].mxu0 %v1920
        %v2141 = vpop.f32.mrb[0].mxu0
        %v2142 = vadd.f32 %v2044, %v2141
        %v2143 = vpop.f32.mrb[0].mxu0
        %v2144 = vadd.f32 %v2048, %v2143
        %2145 = vmatprep.mubr.f32.mxu0 %v1923
        %2146 = vmatmul.mubr.f32.gmra.mrb[0].mxu0 %v1922
        %v2147 = vpop.f32.mrb[0].mxu0
        %v2148 = vadd.f32 %v2044, %v2147
        %v2149 = vpop.f32.mrb[0].mxu0
        %v2150 = vadd.f32 %v2048, %v2149
        %2151 = vmatprep.mubr.f32.mxu0 %v1925
        %2152 = vmatmul.mubr.f32.gmra.mrb[0].mxu0 %v1924
        %v2153 = vpop.f32.mrb[0].mxu0
        %v2154 = vadd.f32 %v2044, %v2153
        %v2155 = vpop.f32.mrb[0].mxu0
        %v2156 = vadd.f32 %v2048, %v2155
        %2157 = vmatprep.mubr.f32.mxu0 %v1927
        %2158 = vmatmul.mubr.f32.gmra.mrb[0].mxu0 %v1926
        %v2159 = vpop.f32.mrb[0].mxu0
        %v2160 = vadd.f32 %v2044, %v2159
        %v2161 = vpop.f32.mrb[0].mxu0
        %v2162 = vadd.f32 %v2048, %v2161
        %2163 = vmatprep.mubr.f32.mxu0 %v1929
        %2164 = vmatmul.mubr.f32.gmra.mrb[0].mxu0 %v1928
        %v2165 = vpop.f32.mrb[0].mxu0
        %v2166 = vadd.f32 %v2044, %v2165
        %v2167 = vpop.f32.mrb[0].mxu0
        %v2168 = vadd.f32 %v2048, %v2167
        %2169 = vmatprep.mubr.f32.mxu0 %v1931
        %2170 = vmatmul.mubr.f32.gmra.mrb[0].mxu0 %v1930
        %v2171 = vpop.f32.mrb[0].mxu0
        %v2172 = vadd.f32 %v2044, %v2171
        %v2173 = vpop.f32.mrb[0].mxu0
        %v2174 = vadd.f32 %v2048, %v2173
        %2175 = vmatprep.mubr.f32.mxu0 %v1933
        %2176 = vmatmul.mubr.f32.gmra.mrb[0].mxu0 %v1932
        %v2177 = vpop.f32.mrb[0].mxu0
        %v2178 = vadd.f32 %v2044, %v2177
        %v2179 = vpop.f32.mrb[0].mxu0
        %v2180 = vadd.f32 %v2048, %v2179
        %2181 = vmatprep.mubr.f32.mxu0 %v1935
        %2182 = vmatmul.mubr.f32.gmra.mrb[0].mxu0 %v1934
        %v2183 = vpop.f32.mrb[0].mxu0
        %v2184 = vadd.f32 %v2044, %v2183
        %v2185 = vpop.f32.mrb[0].mxu0
        %v2186 = vadd.f32 %v2048, %v2185
        %2187 = vmatprep.mubr.f32.mxu0 %v1937
        %2188 = vmatmul.mubr.f32.gmra.mrb[0].mxu0 %v1936
        %v2189 = vpop.f32.mrb[0].mxu0
        %v2190 = vadd.f32 %v2044, %v2189
        %v2191 = vpop.f32.mrb[0].mxu0
        %v2192 = vadd.f32 %v2048, %v2191
        %2193 = vmatprep.mubr.f32.mxu0 %v1939
        %2194 = vmatmul.mubr.f32.gmra.mrb[0].mxu0 %v1938
        %v2195 = vpop.f32.mrb[0].mxu0
        %v2196 = vadd.f32 %v2044, %v2195
        %v2197 = vpop.f32.mrb[0].mxu0
        %v2198 = vadd.f32 %v2048, %v2197
        %2199 = vmatprep.mubr.f32.mxu0 %v1941
        %2200 = vmatmul.mubr.f32.gmra.mrb[0].mxu0 %v1940
        %v2201 = vpop.f32.mrb[0].mxu0
        %v2202 = vadd.f32 %v2044, %v2201
        %v2203 = vpop.f32.mrb[0].mxu0
        %v2204 = vadd.f32 %v2048, %v2203
        %2205 = vmatprep.mubr.f32.mxu0 %v1943
        %2206 = vmatmul.mubr.f32.gmra.mrb[0].mxu0 %v1942
        %v2207 = vpop.f32.mrb[0].mxu0
        %v2208 = vadd.f32 %v2044, %v2207
        %v2209 = vpop.f32.mrb[0].mxu0
        %v2210 = vadd.f32 %v2048, %v2209
        %2211 = vmatprep.mubr.f32.mxu0 %v1945
        %2212 = vmatmul.mubr.f32.gmra.mrb[0].mxu0 %v1944
        %v2213 = vpop.f32.mrb[0].mxu0
        %v2214 = vadd.f32 %v2044, %v2213
        %v2215 = vpop.f32.mrb[0].mxu0
        %v2216 = vadd.f32 %v2048, %v2215
        %2217 = vmatprep.mubr.f32.mxu0 %v1947
        %2218 = vmatmul.mubr.f32.gmra.mrb[0].mxu0 %v1946
        %v2219 = vpop.f32.mrb[0].mxu0
        %v2220 = vadd.f32 %v2044, %v2219
        %v2221 = vpop.f32.mrb[0].mxu0
        %v2222 = vadd.f32 %v2048, %v2221
        %2223 = vmatprep.mubr.f32.mxu0 %v1949
        %2224 = vmatmul.mubr.f32.gmra.mrb[0].mxu0 %v1948
        %v2225 = vpop.f32.mrb[0].mxu0
        %v2226 = vadd.f32 %v2044, %v2225
        %v2227 = vpop.f32.mrb[0].mxu0
        %v2228 = vadd.f32 %v2048, %v2227
        %2229 = vmatprep.mubr.f32.mxu0 %v1951
        %2230 = vmatmul.mubr.f32.gmra.mrb[0].mxu0 %v1950
        %v2231 = vpop.f32.mrb[0].mxu0
        %v2232 = vadd.f32 %v2044, %v2231
        %v2233 = vpop.f32.mrb[0].mxu0
        %v2234 = vadd.f32 %v2048, %v2233
        %2235 = vmatprep.mubr.f32.mxu0 %v1953
        %2236 = vmatmul.mubr.f32.gmra.mrb[0].mxu0 %v1952
        %v2237 = vpop.f32.mrb[0].mxu0
        %v2238 = vadd.f32 %v2044, %v2237
        %v2239 = vpop.f32.mrb[0].mxu0
        %v2240 = vadd.f32 %v2048, %v2239
        %2241 = vmatprep.mubr.f32.mxu0 %v1955
        %2242 = vmatmul.mubr.f32.gmra.mrb[0].mxu0 %v1954
        %v2243 = vpop.f32.mrb[0].mxu0
        %v2244 = vadd.f32 %v2044, %v2243
        %v2245 = vpop.f32.mrb[0].mxu0
        %v2246 = vadd.f32 %v2048, %v2245
        %2247 = vmatprep.mubr.f32.mxu0 %v1957
        %2248 = vmatmul.mubr.f32.gmra.mrb[0].mxu0 %v1956
        %v2249 = vpop.f32.mrb[0].mxu0
        %v2250 = vadd.f32 %v2044, %v2249
        %v2251 = vpop.f32.mrb[0].mxu0
        %v2252 = vadd.f32 %v2048, %v2251
        %2253 = vmatprep.mubr.f32.mxu0 %v1959
        %2254 = vmatmul.mubr.f32.gmra.mrb[0].mxu0 %v1958
        %v2255 = vpop.f32.mrb[0].mxu0
        %v2256 = vadd.f32 %v2044, %v2255
        %v2257 = vpop.f32.mrb[0].mxu0
        %v2258 = vadd.f32 %v2048, %v2257
        %2259 = vmatprep.mubr.f32.mxu0 %v1961
        %2260 = vmatmul.mubr.f32.gmra.mrb[0].mxu0 %v1960
        %v2261 = vpop.f32.mrb[0].mxu0
        %v2262 = vadd.f32 %v2044, %v2261
        %v2263 = vpop.f32.mrb[0].mxu0
        %v2264 = vadd.f32 %v2048, %v2263
        %2265 = vmatprep.mubr.f32.mxu0 %v1963
        %2266 = vmatmul.mubr.f32.gmra.mrb[0].mxu0 %v1962
        %v2267 = vpop.f32.mrb[0].mxu0
        %v2268 = vadd.f32 %v2044, %v2267
        %v2269 = vpop.f32.mrb[0].mxu0
        %v2270 = vadd.f32 %v2048, %v2269
        %2271 = vmatprep.mubr.f32.mxu0 %v1965
        %2272 = vmatmul.mubr.f32.gmra.mrb[0].mxu0 %v1964
        %v2273 = vpop.f32.mrb[0].mxu0
        %v2274 = vadd.f32 %v2044, %v2273
        %v2275 = vpop.f32.mrb[0].mxu0
        %v2276 = vadd.f32 %v2048, %v2275
        %2277 = vmatprep.mubr.f32.mxu0 %v1967
        %2278 = vmatmul.mubr.f32.gmra.mrb[0].mxu0 %v1966
        %v2279 = vpop.f32.mrb[0].mxu0
        %v2280 = vadd.f32 %v2044, %v2279
        %v2281 = vpop.f32.mrb[0].mxu0
        %v2282 = vadd.f32 %v2048, %v2281
        %2283 = vmatprep.mubr.f32.mxu0 %v1969
        %2284 = vmatmul.mubr.f32.gmra.mrb[0].mxu0 %v1968
        %v2285 = vpop.f32.mrb[0].mxu0
        %v2286 = vadd.f32 %v2044, %v2285
        %v2287 = vpop.f32.mrb[0].mxu0
        %v2288 = vadd.f32 %v2048, %v2287
        %2289 = vmatprep.mubr.f32.mxu0 %v1971
        %2290 = vmatmul.mubr.f32.gmra.mrb[0].mxu0 %v1970
        %v2291 = vpop.f32.mrb[0].mxu0
        %v2292 = vadd.f32 %v2044, %v2291
        %v2293 = vpop.f32.mrb[0].mxu0
        %v2294 = vadd.f32 %v2048, %v2293
        %2295 = vmatprep.mubr.f32.mxu0 %v1973
        %2296 = vmatmul.mubr.f32.gmra.mrb[0].mxu0 %v1972
        %v2297 = vpop.f32.mrb[0].mxu0
        %v2298 = vadd.f32 %v2044, %v2297
        %v2299 = vpop.f32.mrb[0].mxu0
        %v2300 = vadd.f32 %v2048, %v2299
        %2301 = vmatprep.mubr.f32.mxu0 %v1975
        %2302 = vmatmul.mubr.f32.gmra.mrb[0].mxu0 %v1974
        %v2303 = vpop.f32.mrb[0].mxu0
        %v2304 = vadd.f32 %v2044, %v2303
        %v2305 = vpop.f32.mrb[0].mxu0
        %v2306 = vadd.f32 %v2048, %v2305
        %2307 = vdwg.mxu0
        %v2308 = vmax.f32 %v2118, 0.0
        %v2309 = vmax.f32 %v2120, 0.0
        %v2310 = vmax.f32 %v2124, 0.0
        %v2311 = vmax.f32 %v2126, 0.0
        %v2312 = vmax.f32 %v2130, 0.0
        %v2313 = vmax.f32 %v2132, 0.0
        %v2314 = vmax.f32 %v2136, 0.0
        %v2315 = vmax.f32 %v2138, 0.0
        %v2316 = vmax.f32 %v2142, 0.0
        %v2317 = vmax.f32 %v2144, 0.0
        %v2318 = vmax.f32 %v2148, 0.0
        %v2319 = vmax.f32 %v2150, 0.0
        %v2320 = vmax.f32 %v2154, 0.0
        %v2321 = vmax.f32 %v2156, 0.0
        %v2322 = vmax.f32 %v2160, 0.0
        %v2323 = vmax.f32 %v2162, 0.0
        %v2324 = vmax.f32 %v2166, 0.0
        %v2325 = vmax.f32 %v2168, 0.0
        %v2326 = vmax.f32 %v2172, 0.0
        %v2327 = vmax.f32 %v2174, 0.0
        %v2328 = vmax.f32 %v2178, 0.0
        %v2329 = vmax.f32 %v2180, 0.0
        %v2330 = vmax.f32 %v2184, 0.0
        %v2331 = vmax.f32 %v2186, 0.0
        %v2332 = vmax.f32 %v2190, 0.0
        %v2333 = vmax.f32 %v2192, 0.0
        %v2334 = vmax.f32 %v2196, 0.0
        %v2335 = vmax.f32 %v2198, 0.0
        %v2336 = vmax.f32 %v2202, 0.0
        %v2337 = vmax.f32 %v2204, 0.0
        %v2338 = vmax.f32 %v2208, 0.0
        %v2339 = vmax.f32 %v2210, 0.0
        %v2340 = vmax.f32 %v2214, 0.0
        %v2341 = vmax.f32 %v2216, 0.0
        %v2342 = vmax.f32 %v2220, 0.0
        %v2343 = vmax.f32 %v2222, 0.0
        %v2344 = vmax.f32 %v2226, 0.0
        %v2345 = vmax.f32 %v2228, 0.0
        %v2346 = vmax.f32 %v2232, 0.0
        %v2347 = vmax.f32 %v2234, 0.0
        %v2348 = vmax.f32 %v2238, 0.0
        %v2349 = vmax.f32 %v2240, 0.0
        %v2350 = vmax.f32 %v2244, 0.0
        %v2351 = vmax.f32 %v2246, 0.0
        %v2352 = vmax.f32 %v2250, 0.0
        %v2353 = vmax.f32 %v2252, 0.0
        %v2354 = vmax.f32 %v2256, 0.0
        %v2355 = vmax.f32 %v2258, 0.0
        %v2356 = vmax.f32 %v2262, 0.0
        %v2357 = vmax.f32 %v2264, 0.0
        %v2358 = vmax.f32 %v2268, 0.0
        %v2359 = vmax.f32 %v2270, 0.0
        %v2360 = vmax.f32 %v2274, 0.0
        %v2361 = vmax.f32 %v2276, 0.0
        %v2362 = vmax.f32 %v2280, 0.0
        %v2363 = vmax.f32 %v2282, 0.0
        %v2364 = vmax.f32 %v2286, 0.0
        %v2365 = vmax.f32 %v2288, 0.0
        %v2366 = vmax.f32 %v2292, 0.0
        %v2367 = vmax.f32 %v2294, 0.0
        %v2368 = vmax.f32 %v2298, 0.0
        %v2369 = vmax.f32 %v2300, 0.0
        %v2370 = vmax.f32 %v2304, 0.0
        %v2371 = vmax.f32 %v2306, 0.0
        %v2372 = vadd.f32 %v2308, %v2309
        %2373 = vadd.xlane.f32.xlu0 %v2372
        %v2374 = vpop.xlane.xlu0 %2373
        %v2375 = vadd.f32 %v2310, %v2311
        %2376 = vadd.xlane.f32.xlu0 %v2375
        %v2377 = vpop.xlane.xlu0 %2376
        %v2378 = vadd.f32 %v2312, %v2313
        %2379 = vadd.xlane.f32.xlu0 %v2378
        %v2380 = vpop.xlane.xlu0 %2379
        %v2381 = vadd.f32 %v2314, %v2315
        %2382 = vadd.xlane.f32.xlu0 %v2381
        %v2383 = vpop.xlane.xlu0 %2382
        %v2384 = vadd.f32 %v2316, %v2317
        %2385 = vadd.xlane.f32.xlu0 %v2384
        %v2386 = vpop.xlane.xlu0 %2385
        %v2387 = vadd.f32 %v2318, %v2319
        %2388 = vadd.xlane.f32.xlu0 %v2387
        %v2389 = vpop.xlane.xlu0 %2388
        %v2390 = vadd.f32 %v2320, %v2321
        %2391 = vadd.xlane.f32.xlu0 %v2390
        %v2392 = vpop.xlane.xlu0 %2391
        %v2393 = vadd.f32 %v2322, %v2323
        %2394 = vadd.xlane.f32.xlu0 %v2393
        %v2395 = vpop.xlane.xlu0 %2394
        %v2396 = vadd.f32 %v2324, %v2325
        %2397 = vadd.xlane.f32.xlu0 %v2396
        %v2398 = vpop.xlane.xlu0 %2397
        %v2399 = vadd.f32 %v2326, %v2327
        %2400 = vadd.xlane.f32.xlu0 %v2399
        %v2401 = vpop.xlane.xlu0 %2400
        %v2402 = vadd.f32 %v2328, %v2329
        %2403 = vadd.xlane.f32.xlu0 %v2402
        %v2404 = vpop.xlane.xlu0 %2403
        %v2405 = vadd.f32 %v2330, %v2331
        %2406 = vadd.xlane.f32.xlu0 %v2405
        %v2407 = vpop.xlane.xlu0 %2406
        %v2408 = vadd.f32 %v2332, %v2333
        %2409 = vadd.xlane.f32.xlu0 %v2408
        %v2410 = vpop.xlane.xlu0 %2409
        %v2411 = vadd.f32 %v2334, %v2335
        %2412 = vadd.xlane.f32.xlu0 %v2411
        %v2413 = vpop.xlane.xlu0 %2412
        %v2414 = vadd.f32 %v2336, %v2337
        %2415 = vadd.xlane.f32.xlu0 %v2414
        %v2416 = vpop.xlane.xlu0 %2415
        %v2417 = vadd.f32 %v2338, %v2339
        %2418 = vadd.xlane.f32.xlu0 %v2417
        %v2419 = vpop.xlane.xlu0 %2418
        %v2420 = vadd.f32 %v2340, %v2341
        %2421 = vadd.xlane.f32.xlu0 %v2420
        %v2422 = vpop.xlane.xlu0 %2421
        %v2423 = vadd.f32 %v2342, %v2343
        %2424 = vadd.xlane.f32.xlu0 %v2423
        %v2425 = vpop.xlane.xlu0 %2424
        %v2426 = vadd.f32 %v2344, %v2345
        %2427 = vadd.xlane.f32.xlu0 %v2426
        %v2428 = vpop.xlane.xlu0 %2427
        %v2429 = vadd.f32 %v2346, %v2347
        %2430 = vadd.xlane.f32.xlu0 %v2429
        %v2431 = vpop.xlane.xlu0 %2430
        %v2432 = vadd.f32 %v2348, %v2349
        %2433 = vadd.xlane.f32.xlu0 %v2432
        %v2434 = vpop.xlane.xlu0 %2433
        %v2435 = vadd.f32 %v2350, %v2351
        %2436 = vadd.xlane.f32.xlu0 %v2435
        %v2437 = vpop.xlane.xlu0 %2436
        %v2438 = vadd.f32 %v2352, %v2353
        %2439 = vadd.xlane.f32.xlu0 %v2438
        %v2440 = vpop.xlane.xlu0 %2439
        %v2441 = vadd.f32 %v2354, %v2355
        %2442 = vadd.xlane.f32.xlu0 %v2441
        %v2443 = vpop.xlane.xlu0 %2442
        %v2444 = vadd.f32 %v2356, %v2357
        %2445 = vadd.xlane.f32.xlu0 %v2444
        %v2446 = vpop.xlane.xlu0 %2445
        %v2447 = vadd.f32 %v2358, %v2359
        %2448 = vadd.xlane.f32.xlu0 %v2447
        %v2449 = vpop.xlane.xlu0 %2448
        %v2450 = vadd.f32 %v2360, %v2361
        %2451 = vadd.xlane.f32.xlu0 %v2450
        %v2452 = vpop.xlane.xlu0 %2451
        %v2453 = vadd.f32 %v2362, %v2363
        %2454 = vadd.xlane.f32.xlu0 %v2453
        %v2455 = vpop.xlane.xlu0 %2454
        %v2456 = vadd.f32 %v2364, %v2365
        %2457 = vadd.xlane.f32.xlu0 %v2456
        %v2458 = vpop.xlane.xlu0 %2457
        %v2459 = vadd.f32 %v2366, %v2367
        %2460 = vadd.xlane.f32.xlu0 %v2459
        %v2461 = vpop.xlane.xlu0 %2460
        %v2462 = vadd.f32 %v2368, %v2369
        %2463 = vadd.xlane.f32.xlu0 %v2462
        %v2464 = vpop.xlane.xlu0 %2463
        %v2465 = vadd.f32 %v2370, %v2371
        %2466 = vadd.xlane.f32.xlu0 %v2465
        %v2467 = vpop.xlane.xlu0 %2466
        %v2468 = vmul.f32 %v2308, %v2308
        %v2469 = vmul.f32 %v2309, %v2309
        %v2470 = vmul.f32 %v2310, %v2310
        %v2471 = vmul.f32 %v2311, %v2311
        %v2472 = vmul.f32 %v2312, %v2312
        %v2473 = vmul.f32 %v2313, %v2313
        %v2474 = vmul.f32 %v2314, %v2314
        %v2475 = vmul.f32 %v2315, %v2315
        %v2476 = vmul.f32 %v2316, %v2316
        %v2477 = vmul.f32 %v2317, %v2317
        %v2478 = vmul.f32 %v2318, %v2318
        %v2479 = vmul.f32 %v2319, %v2319
        %v2480 = vmul.f32 %v2320, %v2320
        %v2481 = vmul.f32 %v2321, %v2321
        %v2482 = vmul.f32 %v2322, %v2322
        %v2483 = vmul.f32 %v2323, %v2323
        %v2484 = vmul.f32 %v2324, %v2324
        %v2485 = vmul.f32 %v2325, %v2325
        %v2486 = vmul.f32 %v2326, %v2326
        %v2487 = vmul.f32 %v2327, %v2327
        %v2488 = vmul.f32 %v2328, %v2328
        %v2489 = vmul.f32 %v2329, %v2329
        %v2490 = vmul.f32 %v2330, %v2330
        %v2491 = vmul.f32 %v2331, %v2331
        %v2492 = vmul.f32 %v2332, %v2332
        %v2493 = vmul.f32 %v2333, %v2333
        %v2494 = vmul.f32 %v2334, %v2334
        %v2495 = vmul.f32 %v2335, %v2335
        %v2496 = vmul.f32 %v2336, %v2336
        %v2497 = vmul.f32 %v2337, %v2337
        %v2498 = vmul.f32 %v2338, %v2338
        %v2499 = vmul.f32 %v2339, %v2339
        %v2500 = vmul.f32 %v2340, %v2340
        %v2501 = vmul.f32 %v2341, %v2341
        %v2502 = vmul.f32 %v2342, %v2342
        %v2503 = vmul.f32 %v2343, %v2343
        %v2504 = vmul.f32 %v2344, %v2344
        %v2505 = vmul.f32 %v2345, %v2345
        %v2506 = vmul.f32 %v2346, %v2346
        %v2507 = vmul.f32 %v2347, %v2347
        %v2508 = vmul.f32 %v2348, %v2348
        %v2509 = vmul.f32 %v2349, %v2349
        %v2510 = vmul.f32 %v2350, %v2350
        %v2511 = vmul.f32 %v2351, %v2351
        %v2512 = vmul.f32 %v2352, %v2352
        %v2513 = vmul.f32 %v2353, %v2353
        %v2514 = vmul.f32 %v2354, %v2354
        %v2515 = vmul.f32 %v2355, %v2355
        %v2516 = vmul.f32 %v2356, %v2356
        %v2517 = vmul.f32 %v2357, %v2357
        %v2518 = vmul.f32 %v2358, %v2358
        %v2519 = vmul.f32 %v2359, %v2359
        %v2520 = vmul.f32 %v2360, %v2360
        %v2521 = vmul.f32 %v2361, %v2361
        %v2522 = vmul.f32 %v2362, %v2362
        %v2523 = vmul.f32 %v2363, %v2363
        %v2524 = vmul.f32 %v2364, %v2364
        %v2525 = vmul.f32 %v2365, %v2365
        %v2526 = vmul.f32 %v2366, %v2366
        %v2527 = vmul.f32 %v2367, %v2367
        %v2528 = vmul.f32 %v2368, %v2368
        %v2529 = vmul.f32 %v2369, %v2369
        %v2530 = vmul.f32 %v2370, %v2370
        %v2531 = vmul.f32 %v2371, %v2371
        %v2532 = vadd.f32 %v2468, %v2469
        %2533 = vadd.xlane.f32.xlu0 %v2532
        %v2534 = vpop.xlane.xlu0 %2533
        %v2535 = vadd.f32 %v2470, %v2471
        %2536 = vadd.xlane.f32.xlu0 %v2535
        %v2537 = vpop.xlane.xlu0 %2536
        %v2538 = vadd.f32 %v2472, %v2473
        %2539 = vadd.xlane.f32.xlu0 %v2538
        %v2540 = vpop.xlane.xlu0 %2539
        %v2541 = vadd.f32 %v2474, %v2475
        %2542 = vadd.xlane.f32.xlu0 %v2541
        %v2543 = vpop.xlane.xlu0 %2542
        %v2544 = vadd.f32 %v2476, %v2477
        %2545 = vadd.xlane.f32.xlu0 %v2544
        %v2546 = vpop.xlane.xlu0 %2545
        %v2547 = vadd.f32 %v2478, %v2479
        %2548 = vadd.xlane.f32.xlu0 %v2547
        %v2549 = vpop.xlane.xlu0 %2548
        %v2550 = vadd.f32 %v2480, %v2481
        %2551 = vadd.xlane.f32.xlu0 %v2550
        %v2552 = vpop.xlane.xlu0 %2551
        %v2553 = vadd.f32 %v2482, %v2483
        %2554 = vadd.xlane.f32.xlu0 %v2553
        %v2555 = vpop.xlane.xlu0 %2554
        %v2556 = vadd.f32 %v2484, %v2485
        %2557 = vadd.xlane.f32.xlu0 %v2556
        %v2558 = vpop.xlane.xlu0 %2557
        %v2559 = vadd.f32 %v2486, %v2487
        %2560 = vadd.xlane.f32.xlu0 %v2559
        %v2561 = vpop.xlane.xlu0 %2560
        %v2562 = vadd.f32 %v2488, %v2489
        %2563 = vadd.xlane.f32.xlu0 %v2562
        %v2564 = vpop.xlane.xlu0 %2563
        %v2565 = vadd.f32 %v2490, %v2491
        %2566 = vadd.xlane.f32.xlu0 %v2565
        %v2567 = vpop.xlane.xlu0 %2566
        %v2568 = vadd.f32 %v2492, %v2493
        %2569 = vadd.xlane.f32.xlu0 %v2568
        %v2570 = vpop.xlane.xlu0 %2569
        %v2571 = vadd.f32 %v2494, %v2495
        %2572 = vadd.xlane.f32.xlu0 %v2571
        %v2573 = vpop.xlane.xlu0 %2572
        %v2574 = vadd.f32 %v2496, %v2497
        %2575 = vadd.xlane.f32.xlu0 %v2574
        %v2576 = vpop.xlane.xlu0 %2575
        %v2577 = vadd.f32 %v2498, %v2499
        %2578 = vadd.xlane.f32.xlu0 %v2577
        %v2579 = vpop.xlane.xlu0 %2578
        %v2580 = vadd.f32 %v2500, %v2501
        %2581 = vadd.xlane.f32.xlu0 %v2580
        %v2582 = vpop.xlane.xlu0 %2581
        %v2583 = vadd.f32 %v2502, %v2503
        %2584 = vadd.xlane.f32.xlu0 %v2583
        %v2585 = vpop.xlane.xlu0 %2584
        %v2586 = vadd.f32 %v2504, %v2505
        %2587 = vadd.xlane.f32.xlu0 %v2586
        %v2588 = vpop.xlane.xlu0 %2587
        %v2589 = vadd.f32 %v2506, %v2507
        %2590 = vadd.xlane.f32.xlu0 %v2589
        %v2591 = vpop.xlane.xlu0 %2590
        %v2592 = vadd.f32 %v2508, %v2509
        %2593 = vadd.xlane.f32.xlu0 %v2592
        %v2594 = vpop.xlane.xlu0 %2593
        %v2595 = vadd.f32 %v2510, %v2511
        %2596 = vadd.xlane.f32.xlu0 %v2595
        %v2597 = vpop.xlane.xlu0 %2596
        %v2598 = vadd.f32 %v2512, %v2513
        %2599 = vadd.xlane.f32.xlu0 %v2598
        %v2600 = vpop.xlane.xlu0 %2599
        %v2601 = vadd.f32 %v2514, %v2515
        %2602 = vadd.xlane.f32.xlu0 %v2601
        %v2603 = vpop.xlane.xlu0 %2602
        %v2604 = vadd.f32 %v2516, %v2517
        %2605 = vadd.xlane.f32.xlu0 %v2604
        %v2606 = vpop.xlane.xlu0 %2605
        %v2607 = vadd.f32 %v2518, %v2519
        %2608 = vadd.xlane.f32.xlu0 %v2607
        %v2609 = vpop.xlane.xlu0 %2608
        %v2610 = vadd.f32 %v2520, %v2521
        %2611 = vadd.xlane.f32.xlu0 %v2610
        %v2612 = vpop.xlane.xlu0 %2611
        %v2613 = vadd.f32 %v2522, %v2523
        %2614 = vadd.xlane.f32.xlu0 %v2613
        %v2615 = vpop.xlane.xlu0 %2614
        %v2616 = vadd.f32 %v2524, %v2525
        %2617 = vadd.xlane.f32.xlu0 %v2616
        %v2618 = vpop.xlane.xlu0 %2617
        %v2619 = vadd.f32 %v2526, %v2527
        %2620 = vadd.xlane.f32.xlu0 %v2619
        %v2621 = vpop.xlane.xlu0 %2620
        %v2622 = vadd.f32 %v2528, %v2529
        %2623 = vadd.xlane.f32.xlu0 %v2622
        %v2624 = vpop.xlane.xlu0 %2623
        %v2625 = vadd.f32 %v2530, %v2531
        %2626 = vadd.xlane.f32.xlu0 %v2625
        %v2627 = vpop.xlane.xlu0 %2626
        %v2628 = vmul.f32 %v2374, 0.00390625
        %v2629 = vmul.f32 %v2377, 0.00390625
        %v2630 = vmul.f32 %v2380, 0.00390625
        %v2631 = vmul.f32 %v2383, 0.00390625
        %v2632 = vmul.f32 %v2386, 0.00390625
        %v2633 = vmul.f32 %v2389, 0.00390625
        %v2634 = vmul.f32 %v2392, 0.00390625
        %v2635 = vmul.f32 %v2395, 0.00390625
        %v2636 = vmul.f32 %v2398, 0.00390625
        %v2637 = vmul.f32 %v2401, 0.00390625
        %v2638 = vmul.f32 %v2404, 0.00390625
        %v2639 = vmul.f32 %v2407, 0.00390625
        %v2640 = vmul.f32 %v2410, 0.00390625
        %v2641 = vmul.f32 %v2413, 0.00390625
        %v2642 = vmul.f32 %v2416, 0.00390625
        %v2643 = vmul.f32 %v2419, 0.00390625
        %v2644 = vmul.f32 %v2422, 0.00390625
        %v2645 = vmul.f32 %v2425, 0.00390625
        %v2646 = vmul.f32 %v2428, 0.00390625
        %v2647 = vmul.f32 %v2431, 0.00390625
        %v2648 = vmul.f32 %v2434, 0.00390625
        %v2649 = vmul.f32 %v2437, 0.00390625
        %v2650 = vmul.f32 %v2440, 0.00390625
        %v2651 = vmul.f32 %v2443, 0.00390625
        %v2652 = vmul.f32 %v2446, 0.00390625
        %v2653 = vmul.f32 %v2449, 0.00390625
        %v2654 = vmul.f32 %v2452, 0.00390625
        %v2655 = vmul.f32 %v2455, 0.00390625
        %v2656 = vmul.f32 %v2458, 0.00390625
        %v2657 = vmul.f32 %v2461, 0.00390625
        %v2658 = vmul.f32 %v2464, 0.00390625
        %v2659 = vmul.f32 %v2467, 0.00390625
        %v2660 = vmul.f32 %v2534, 0.00390625
        %v2661 = vmul.f32 %v2537, 0.00390625
        %v2662 = vmul.f32 %v2540, 0.00390625
        %v2663 = vmul.f32 %v2543, 0.00390625
        %v2664 = vmul.f32 %v2546, 0.00390625
        %v2665 = vmul.f32 %v2549, 0.00390625
        %v2666 = vmul.f32 %v2552, 0.00390625
        %v2667 = vmul.f32 %v2555, 0.00390625
        %v2668 = vmul.f32 %v2558, 0.00390625
        %v2669 = vmul.f32 %v2561, 0.00390625
        %v2670 = vmul.f32 %v2564, 0.00390625
        %v2671 = vmul.f32 %v2567, 0.00390625
        %v2672 = vmul.f32 %v2570, 0.00390625
        %v2673 = vmul.f32 %v2573, 0.00390625
        %v2674 = vmul.f32 %v2576, 0.00390625
        %v2675 = vmul.f32 %v2579, 0.00390625
        %v2676 = vmul.f32 %v2582, 0.00390625
        %v2677 = vmul.f32 %v2585, 0.00390625
        %v2678 = vmul.f32 %v2588, 0.00390625
        %v2679 = vmul.f32 %v2591, 0.00390625
        %v2680 = vmul.f32 %v2594, 0.00390625
        %v2681 = vmul.f32 %v2597, 0.00390625
        %v2682 = vmul.f32 %v2600, 0.00390625
        %v2683 = vmul.f32 %v2603, 0.00390625
        %v2684 = vmul.f32 %v2606, 0.00390625
        %v2685 = vmul.f32 %v2609, 0.00390625
        %v2686 = vmul.f32 %v2612, 0.00390625
        %v2687 = vmul.f32 %v2615, 0.00390625
        %v2688 = vmul.f32 %v2618, 0.00390625
        %v2689 = vmul.f32 %v2621, 0.00390625
        %v2690 = vmul.f32 %v2624, 0.00390625
        %v2691 = vmul.f32 %v2627, 0.00390625
        %v2692 = vmul.f32 %v2628, %v2628
        %v2693 = vmul.f32 %v2629, %v2629
        %v2694 = vmul.f32 %v2630, %v2630
        %v2695 = vmul.f32 %v2631, %v2631
        %v2696 = vmul.f32 %v2632, %v2632
        %v2697 = vmul.f32 %v2633, %v2633
        %v2698 = vmul.f32 %v2634, %v2634
        %v2699 = vmul.f32 %v2635, %v2635
        %v2700 = vmul.f32 %v2636, %v2636
        %v2701 = vmul.f32 %v2637, %v2637
        %v2702 = vmul.f32 %v2638, %v2638
        %v2703 = vmul.f32 %v2639, %v2639
        %v2704 = vmul.f32 %v2640, %v2640
        %v2705 = vmul.f32 %v2641, %v2641
        %v2706 = vmul.f32 %v2642, %v2642
        %v2707 = vmul.f32 %v2643, %v2643
        %v2708 = vmul.f32 %v2644, %v2644
        %v2709 = vmul.f32 %v2645, %v2645
        %v2710 = vmul.f32 %v2646, %v2646
        %v2711 = vmul.f32 %v2647, %v2647
        %v2712 = vmul.f32 %v2648, %v2648
        %v2713 = vmul.f32 %v2649, %v2649
        %v2714 = vmul.f32 %v2650, %v2650
        %v2715 = vmul.f32 %v2651, %v2651
        %v2716 = vmul.f32 %v2652, %v2652
        %v2717 = vmul.f32 %v2653, %v2653
        %v2718 = vmul.f32 %v2654, %v2654
        %v2719 = vmul.f32 %v2655, %v2655
        %v2720 = vmul.f32 %v2656, %v2656
        %v2721 = vmul.f32 %v2657, %v2657
        %v2722 = vmul.f32 %v2658, %v2658
        %v2723 = vmul.f32 %v2659, %v2659
        %v2724 = vsub.f32 %v2660, %v2692
        %v2725 = vsub.f32 %v2661, %v2693
        %v2726 = vsub.f32 %v2662, %v2694
        %v2727 = vsub.f32 %v2663, %v2695
        %v2728 = vsub.f32 %v2664, %v2696
        %v2729 = vsub.f32 %v2665, %v2697
        %v2730 = vsub.f32 %v2666, %v2698
        %v2731 = vsub.f32 %v2667, %v2699
        %v2732 = vsub.f32 %v2668, %v2700
        %v2733 = vsub.f32 %v2669, %v2701
        %v2734 = vsub.f32 %v2670, %v2702
        %v2735 = vsub.f32 %v2671, %v2703
        %v2736 = vsub.f32 %v2672, %v2704
        %v2737 = vsub.f32 %v2673, %v2705
        %v2738 = vsub.f32 %v2674, %v2706
        %v2739 = vsub.f32 %v2675, %v2707
        %v2740 = vsub.f32 %v2676, %v2708
        %v2741 = vsub.f32 %v2677, %v2709
        %v2742 = vsub.f32 %v2678, %v2710
        %v2743 = vsub.f32 %v2679, %v2711
        %v2744 = vsub.f32 %v2680, %v2712
        %v2745 = vsub.f32 %v2681, %v2713
        %v2746 = vsub.f32 %v2682, %v2714
        %v2747 = vsub.f32 %v2683, %v2715
        %v2748 = vsub.f32 %v2684, %v2716
        %v2749 = vsub.f32 %v2685, %v2717
        %v2750 = vsub.f32 %v2686, %v2718
        %v2751 = vsub.f32 %v2687, %v2719
        %v2752 = vsub.f32 %v2688, %v2720
        %v2753 = vsub.f32 %v2689, %v2721
        %v2754 = vsub.f32 %v2690, %v2722
        %v2755 = vsub.f32 %v2691, %v2723
        %v2756 = vmax.f32 %v2724, 0.0
        %v2757 = vmax.f32 %v2725, 0.0
        %v2758 = vmax.f32 %v2726, 0.0
        %v2759 = vmax.f32 %v2727, 0.0
        %v2760 = vmax.f32 %v2728, 0.0
        %v2761 = vmax.f32 %v2729, 0.0
        %v2762 = vmax.f32 %v2730, 0.0
        %v2763 = vmax.f32 %v2731, 0.0
        %v2764 = vmax.f32 %v2732, 0.0
        %v2765 = vmax.f32 %v2733, 0.0
        %v2766 = vmax.f32 %v2734, 0.0
        %v2767 = vmax.f32 %v2735, 0.0
        %v2768 = vmax.f32 %v2736, 0.0
        %v2769 = vmax.f32 %v2737, 0.0
        %v2770 = vmax.f32 %v2738, 0.0
        %v2771 = vmax.f32 %v2739, 0.0
        %v2772 = vmax.f32 %v2740, 0.0
        %v2773 = vmax.f32 %v2741, 0.0
        %v2774 = vmax.f32 %v2742, 0.0
        %v2775 = vmax.f32 %v2743, 0.0
        %v2776 = vmax.f32 %v2744, 0.0
        %v2777 = vmax.f32 %v2745, 0.0
        %v2778 = vmax.f32 %v2746, 0.0
        %v2779 = vmax.f32 %v2747, 0.0
        %v2780 = vmax.f32 %v2748, 0.0
        %v2781 = vmax.f32 %v2749, 0.0
        %v2782 = vmax.f32 %v2750, 0.0
        %v2783 = vmax.f32 %v2751, 0.0
        %v2784 = vmax.f32 %v2752, 0.0
        %v2785 = vmax.f32 %v2753, 0.0
        %v2786 = vmax.f32 %v2754, 0.0
        %v2787 = vmax.f32 %v2755, 0.0
        %v2788 = vadd.f32 %v2756, 1e-05
        %v2789 = vadd.f32 %v2757, 1e-05
        %v2790 = vadd.f32 %v2758, 1e-05
        %v2791 = vadd.f32 %v2759, 1e-05
        %v2792 = vadd.f32 %v2760, 1e-05
        %v2793 = vadd.f32 %v2761, 1e-05
        %v2794 = vadd.f32 %v2762, 1e-05
        %v2795 = vadd.f32 %v2763, 1e-05
        %v2796 = vadd.f32 %v2764, 1e-05
        %v2797 = vadd.f32 %v2765, 1e-05
        %v2798 = vadd.f32 %v2766, 1e-05
        %v2799 = vadd.f32 %v2767, 1e-05
        %v2800 = vadd.f32 %v2768, 1e-05
        %v2801 = vadd.f32 %v2769, 1e-05
        %v2802 = vadd.f32 %v2770, 1e-05
        %v2803 = vadd.f32 %v2771, 1e-05
        %v2804 = vadd.f32 %v2772, 1e-05
        %v2805 = vadd.f32 %v2773, 1e-05
        %v2806 = vadd.f32 %v2774, 1e-05
        %v2807 = vadd.f32 %v2775, 1e-05
        %v2808 = vadd.f32 %v2776, 1e-05
        %v2809 = vadd.f32 %v2777, 1e-05
        %v2810 = vadd.f32 %v2778, 1e-05
        %v2811 = vadd.f32 %v2779, 1e-05
        %v2812 = vadd.f32 %v2780, 1e-05
        %v2813 = vadd.f32 %v2781, 1e-05
        %v2814 = vadd.f32 %v2782, 1e-05
        %v2815 = vadd.f32 %v2783, 1e-05
        %v2816 = vadd.f32 %v2784, 1e-05
        %v2817 = vadd.f32 %v2785, 1e-05
        %v2818 = vadd.f32 %v2786, 1e-05
        %v2819 = vadd.f32 %v2787, 1e-05
        %v2820 = vrsqrt.pop %v2788
        %v2821 = vrsqrt.pop %v2789
        %v2822 = vrsqrt.pop %v2790
        %v2823 = vrsqrt.pop %v2791
        %v2824 = vrsqrt.pop %v2792
        %v2825 = vrsqrt.pop %v2793
        %v2826 = vrsqrt.pop %v2794
        %v2827 = vrsqrt.pop %v2795
        %v2828 = vrsqrt.pop %v2796
        %v2829 = vrsqrt.pop %v2797
        %v2830 = vrsqrt.pop %v2798
        %v2831 = vrsqrt.pop %v2799
        %v2832 = vrsqrt.pop %v2800
        %v2833 = vrsqrt.pop %v2801
        %v2834 = vrsqrt.pop %v2802
        %v2835 = vrsqrt.pop %v2803
        %v2836 = vrsqrt.pop %v2804
        %v2837 = vrsqrt.pop %v2805
        %v2838 = vrsqrt.pop %v2806
        %v2839 = vrsqrt.pop %v2807
        %v2840 = vrsqrt.pop %v2808
        %v2841 = vrsqrt.pop %v2809
        %v2842 = vrsqrt.pop %v2810
        %v2843 = vrsqrt.pop %v2811
        %v2844 = vrsqrt.pop %v2812
        %v2845 = vrsqrt.pop %v2813
        %v2846 = vrsqrt.pop %v2814
        %v2847 = vrsqrt.pop %v2815
        %v2848 = vrsqrt.pop %v2816
        %v2849 = vrsqrt.pop %v2817
        %v2850 = vrsqrt.pop %v2818
        %v2851 = vrsqrt.pop %v2819
        %v2853 = vlaneseq
        %v2854 = vshrl.u32 %v2853, 7
        %v2855 = vsub.s32 0, %v2854
        %v2856 = vrot.slane %v283, %v2855
        %v2857 = vlaneseq
        %v2858 = vshrl.u32 %v2857, 7
        %v2859 = vsub.s32 1, %v2858
        %v2860 = vrot.slane %v283, %v2859
        %v2863 = vmul.f32 %v2856, %v2820
        %v2864 = vmul.f32 %v2860, %v2820
        %v2865 = vmul.f32 %v2856, %v2821
        %v2866 = vmul.f32 %v2860, %v2821
        %v2867 = vmul.f32 %v2856, %v2822
        %v2868 = vmul.f32 %v2860, %v2822
        %v2869 = vmul.f32 %v2856, %v2823
        %v2870 = vmul.f32 %v2860, %v2823
        %v2871 = vmul.f32 %v2856, %v2824
        %v2872 = vmul.f32 %v2860, %v2824
        %v2873 = vmul.f32 %v2856, %v2825
        %v2874 = vmul.f32 %v2860, %v2825
        %v2875 = vmul.f32 %v2856, %v2826
        %v2876 = vmul.f32 %v2860, %v2826
        %v2877 = vmul.f32 %v2856, %v2827
        %v2878 = vmul.f32 %v2860, %v2827
        %v2879 = vmul.f32 %v2856, %v2828
        %v2880 = vmul.f32 %v2860, %v2828
        %v2881 = vmul.f32 %v2856, %v2829
        %v2882 = vmul.f32 %v2860, %v2829
        %v2883 = vmul.f32 %v2856, %v2830
        %v2884 = vmul.f32 %v2860, %v2830
        %v2885 = vmul.f32 %v2856, %v2831
        %v2886 = vmul.f32 %v2860, %v2831
        %v2887 = vmul.f32 %v2856, %v2832
        %v2888 = vmul.f32 %v2860, %v2832
        %v2889 = vmul.f32 %v2856, %v2833
        %v2890 = vmul.f32 %v2860, %v2833
        %v2891 = vmul.f32 %v2856, %v2834
        %v2892 = vmul.f32 %v2860, %v2834
        %v2893 = vmul.f32 %v2856, %v2835
        %v2894 = vmul.f32 %v2860, %v2835
        %v2895 = vmul.f32 %v2856, %v2836
        %v2896 = vmul.f32 %v2860, %v2836
        %v2897 = vmul.f32 %v2856, %v2837
        %v2898 = vmul.f32 %v2860, %v2837
        %v2899 = vmul.f32 %v2856, %v2838
        %v2900 = vmul.f32 %v2860, %v2838
        %v2901 = vmul.f32 %v2856, %v2839
        %v2902 = vmul.f32 %v2860, %v2839
        %v2903 = vmul.f32 %v2856, %v2840
        %v2904 = vmul.f32 %v2860, %v2840
        %v2905 = vmul.f32 %v2856, %v2841
        %v2906 = vmul.f32 %v2860, %v2841
        %v2907 = vmul.f32 %v2856, %v2842
        %v2908 = vmul.f32 %v2860, %v2842
        %v2909 = vmul.f32 %v2856, %v2843
        %v2910 = vmul.f32 %v2860, %v2843
        %v2911 = vmul.f32 %v2856, %v2844
        %v2912 = vmul.f32 %v2860, %v2844
        %v2913 = vmul.f32 %v2856, %v2845
        %v2914 = vmul.f32 %v2860, %v2845
        %v2915 = vmul.f32 %v2856, %v2846
        %v2916 = vmul.f32 %v2860, %v2846
        %v2917 = vmul.f32 %v2856, %v2847
        %v2918 = vmul.f32 %v2860, %v2847
        %v2919 = vmul.f32 %v2856, %v2848
        %v2920 = vmul.f32 %v2860, %v2848
        %v2921 = vmul.f32 %v2856, %v2849
        %v2922 = vmul.f32 %v2860, %v2849
        %v2923 = vmul.f32 %v2856, %v2850
        %v2924 = vmul.f32 %v2860, %v2850
        %v2925 = vmul.f32 %v2856, %v2851
        %v2926 = vmul.f32 %v2860, %v2851
        %v2927 = vsub.f32 %v2308, %v2628
        %v2928 = vsub.f32 %v2309, %v2628
        %v2929 = vsub.f32 %v2310, %v2629
        %v2930 = vsub.f32 %v2311, %v2629
        %v2931 = vsub.f32 %v2312, %v2630
        %v2932 = vsub.f32 %v2313, %v2630
        %v2933 = vsub.f32 %v2314, %v2631
        %v2934 = vsub.f32 %v2315, %v2631
        %v2935 = vsub.f32 %v2316, %v2632
        %v2936 = vsub.f32 %v2317, %v2632
        %v2937 = vsub.f32 %v2318, %v2633
        %v2938 = vsub.f32 %v2319, %v2633
        %v2939 = vsub.f32 %v2320, %v2634
        %v2940 = vsub.f32 %v2321, %v2634
        %v2941 = vsub.f32 %v2322, %v2635
        %v2942 = vsub.f32 %v2323, %v2635
        %v2943 = vsub.f32 %v2324, %v2636
        %v2944 = vsub.f32 %v2325, %v2636
        %v2945 = vsub.f32 %v2326, %v2637
        %v2946 = vsub.f32 %v2327, %v2637
        %v2947 = vsub.f32 %v2328, %v2638
        %v2948 = vsub.f32 %v2329, %v2638
        %v2949 = vsub.f32 %v2330, %v2639
        %v2950 = vsub.f32 %v2331, %v2639
        %v2951 = vsub.f32 %v2332, %v2640
        %v2952 = vsub.f32 %v2333, %v2640
        %v2953 = vsub.f32 %v2334, %v2641
        %v2954 = vsub.f32 %v2335, %v2641
        %v2955 = vsub.f32 %v2336, %v2642
        %v2956 = vsub.f32 %v2337, %v2642
        %v2957 = vsub.f32 %v2338, %v2643
        %v2958 = vsub.f32 %v2339, %v2643
        %v2959 = vsub.f32 %v2340, %v2644
        %v2960 = vsub.f32 %v2341, %v2644
        %v2961 = vsub.f32 %v2342, %v2645
        %v2962 = vsub.f32 %v2343, %v2645
        %v2963 = vsub.f32 %v2344, %v2646
        %v2964 = vsub.f32 %v2345, %v2646
        %v2965 = vsub.f32 %v2346, %v2647
        %v2966 = vsub.f32 %v2347, %v2647
        %v2967 = vsub.f32 %v2348, %v2648
        %v2968 = vsub.f32 %v2349, %v2648
        %v2969 = vsub.f32 %v2350, %v2649
        %v2970 = vsub.f32 %v2351, %v2649
        %v2971 = vsub.f32 %v2352, %v2650
        %v2972 = vsub.f32 %v2353, %v2650
        %v2973 = vsub.f32 %v2354, %v2651
        %v2974 = vsub.f32 %v2355, %v2651
        %v2975 = vsub.f32 %v2356, %v2652
        %v2976 = vsub.f32 %v2357, %v2652
        %v2977 = vsub.f32 %v2358, %v2653
        %v2978 = vsub.f32 %v2359, %v2653
        %v2979 = vsub.f32 %v2360, %v2654
        %v2980 = vsub.f32 %v2361, %v2654
        %v2981 = vsub.f32 %v2362, %v2655
        %v2982 = vsub.f32 %v2363, %v2655
        %v2983 = vsub.f32 %v2364, %v2656
        %v2984 = vsub.f32 %v2365, %v2656
        %v2985 = vsub.f32 %v2366, %v2657
        %v2986 = vsub.f32 %v2367, %v2657
        %v2987 = vsub.f32 %v2368, %v2658
        %v2988 = vsub.f32 %v2369, %v2658
        %v2989 = vsub.f32 %v2370, %v2659
        %v2990 = vsub.f32 %v2371, %v2659
        %v2991 = vmul.f32 %v2927, %v2863
        %v2992 = vmul.f32 %v2928, %v2864
        %v2993 = vmul.f32 %v2929, %v2865
        %v2994 = vmul.f32 %v2930, %v2866
        %v2995 = vmul.f32 %v2931, %v2867
        %v2996 = vmul.f32 %v2932, %v2868
        %v2997 = vmul.f32 %v2933, %v2869
        %v2998 = vmul.f32 %v2934, %v2870
        %v2999 = vmul.f32 %v2935, %v2871
        %v3000 = vmul.f32 %v2936, %v2872
        %v3001 = vmul.f32 %v2937, %v2873
        %v3002 = vmul.f32 %v2938, %v2874
        %v3003 = vmul.f32 %v2939, %v2875
        %v3004 = vmul.f32 %v2940, %v2876
        %v3005 = vmul.f32 %v2941, %v2877
        %v3006 = vmul.f32 %v2942, %v2878
        %v3007 = vmul.f32 %v2943, %v2879
        %v3008 = vmul.f32 %v2944, %v2880
        %v3009 = vmul.f32 %v2945, %v2881
        %v3010 = vmul.f32 %v2946, %v2882
        %v3011 = vmul.f32 %v2947, %v2883
        %v3012 = vmul.f32 %v2948, %v2884
        %v3013 = vmul.f32 %v2949, %v2885
        %v3014 = vmul.f32 %v2950, %v2886
        %v3015 = vmul.f32 %v2951, %v2887
        %v3016 = vmul.f32 %v2952, %v2888
        %v3017 = vmul.f32 %v2953, %v2889
        %v3018 = vmul.f32 %v2954, %v2890
        %v3019 = vmul.f32 %v2955, %v2891
        %v3020 = vmul.f32 %v2956, %v2892
        %v3021 = vmul.f32 %v2957, %v2893
        %v3022 = vmul.f32 %v2958, %v2894
        %v3023 = vmul.f32 %v2959, %v2895
        %v3024 = vmul.f32 %v2960, %v2896
        %v3025 = vmul.f32 %v2961, %v2897
        %v3026 = vmul.f32 %v2962, %v2898
        %v3027 = vmul.f32 %v2963, %v2899
        %v3028 = vmul.f32 %v2964, %v2900
        %v3029 = vmul.f32 %v2965, %v2901
        %v3030 = vmul.f32 %v2966, %v2902
        %v3031 = vmul.f32 %v2967, %v2903
        %v3032 = vmul.f32 %v2968, %v2904
        %v3033 = vmul.f32 %v2969, %v2905
        %v3034 = vmul.f32 %v2970, %v2906
        %v3035 = vmul.f32 %v2971, %v2907
        %v3036 = vmul.f32 %v2972, %v2908
        %v3037 = vmul.f32 %v2973, %v2909
        %v3038 = vmul.f32 %v2974, %v2910
        %v3039 = vmul.f32 %v2975, %v2911
        %v3040 = vmul.f32 %v2976, %v2912
        %v3041 = vmul.f32 %v2977, %v2913
        %v3042 = vmul.f32 %v2978, %v2914
        %v3043 = vmul.f32 %v2979, %v2915
        %v3044 = vmul.f32 %v2980, %v2916
        %v3045 = vmul.f32 %v2981, %v2917
        %v3046 = vmul.f32 %v2982, %v2918
        %v3047 = vmul.f32 %v2983, %v2919
        %v3048 = vmul.f32 %v2984, %v2920
        %v3049 = vmul.f32 %v2985, %v2921
        %v3050 = vmul.f32 %v2986, %v2922
        %v3051 = vmul.f32 %v2987, %v2923
        %v3052 = vmul.f32 %v2988, %v2924
        %v3053 = vmul.f32 %v2989, %v2925
        %v3054 = vmul.f32 %v2990, %v2926
        %v3056 = vlaneseq
        %v3057 = vshrl.u32 %v3056, 7
        %v3058 = vsub.s32 0, %v3057
        %v3059 = vrot.slane %v285, %v3058
        %v3060 = vlaneseq
        %v3061 = vshrl.u32 %v3060, 7
        %v3062 = vsub.s32 1, %v3061
        %v3063 = vrot.slane %v285, %v3062
        %v3066 = vadd.f32 %v2991, %v3059
        %v3067 = vadd.f32 %v2992, %v3063
        %v3068 = vadd.f32 %v2993, %v3059
        %v3069 = vadd.f32 %v2994, %v3063
        %v3070 = vadd.f32 %v2995, %v3059
        %v3071 = vadd.f32 %v2996, %v3063
        %v3072 = vadd.f32 %v2997, %v3059
        %v3073 = vadd.f32 %v2998, %v3063
        %v3074 = vadd.f32 %v2999, %v3059
        %v3075 = vadd.f32 %v3000, %v3063
        %v3076 = vadd.f32 %v3001, %v3059
        %v3077 = vadd.f32 %v3002, %v3063
        %v3078 = vadd.f32 %v3003, %v3059
        %v3079 = vadd.f32 %v3004, %v3063
        %v3080 = vadd.f32 %v3005, %v3059
        %v3081 = vadd.f32 %v3006, %v3063
        %v3082 = vadd.f32 %v3007, %v3059
        %v3083 = vadd.f32 %v3008, %v3063
        %v3084 = vadd.f32 %v3009, %v3059
        %v3085 = vadd.f32 %v3010, %v3063
        %v3086 = vadd.f32 %v3011, %v3059
        %v3087 = vadd.f32 %v3012, %v3063
        %v3088 = vadd.f32 %v3013, %v3059
        %v3089 = vadd.f32 %v3014, %v3063
        %v3090 = vadd.f32 %v3015, %v3059
        %v3091 = vadd.f32 %v3016, %v3063
        %v3092 = vadd.f32 %v3017, %v3059
        %v3093 = vadd.f32 %v3018, %v3063
        %v3094 = vadd.f32 %v3019, %v3059
        %v3095 = vadd.f32 %v3020, %v3063
        %v3096 = vadd.f32 %v3021, %v3059
        %v3097 = vadd.f32 %v3022, %v3063
        %v3098 = vadd.f32 %v3023, %v3059
        %v3099 = vadd.f32 %v3024, %v3063
        %v3100 = vadd.f32 %v3025, %v3059
        %v3101 = vadd.f32 %v3026, %v3063
        %v3102 = vadd.f32 %v3027, %v3059
        %v3103 = vadd.f32 %v3028, %v3063
        %v3104 = vadd.f32 %v3029, %v3059
        %v3105 = vadd.f32 %v3030, %v3063
        %v3106 = vadd.f32 %v3031, %v3059
        %v3107 = vadd.f32 %v3032, %v3063
        %v3108 = vadd.f32 %v3033, %v3059
        %v3109 = vadd.f32 %v3034, %v3063
        %v3110 = vadd.f32 %v3035, %v3059
        %v3111 = vadd.f32 %v3036, %v3063
        %v3112 = vadd.f32 %v3037, %v3059
        %v3113 = vadd.f32 %v3038, %v3063
        %v3114 = vadd.f32 %v3039, %v3059
        %v3115 = vadd.f32 %v3040, %v3063
        %v3116 = vadd.f32 %v3041, %v3059
        %v3117 = vadd.f32 %v3042, %v3063
        %v3118 = vadd.f32 %v3043, %v3059
        %v3119 = vadd.f32 %v3044, %v3063
        %v3120 = vadd.f32 %v3045, %v3059
        %v3121 = vadd.f32 %v3046, %v3063
        %v3122 = vadd.f32 %v3047, %v3059
        %v3123 = vadd.f32 %v3048, %v3063
        %v3124 = vadd.f32 %v3049, %v3059
        %v3125 = vadd.f32 %v3050, %v3063
        %v3126 = vadd.f32 %v3051, %v3059
        %v3127 = vadd.f32 %v3052, %v3063
        %v3128 = vadd.f32 %v3053, %v3059
        %v3129 = vadd.f32 %v3054, %v3063
        %3131 = vset.pattern.permute.xlu0 0
        %3132 = vperm.xlu0 %3131, %v288
        %v3133 = vpop.permute.xlu0 %3132
        %v3136 = vlaneseq
        %v3137 = vshrl.u32 %v3136, 7
        %v3138 = vsub.s32 0, %v3137
        %v3139 = vrot.slane %v287, %v3138
        %v3140 = vlaneseq
        %v3141 = vshrl.u32 %v3140, 7
        %v3142 = vsub.s32 1, %v3141
        %v3143 = vrot.slane %v287, %v3142
        %3146 = vmatprep.subr.mxu0 %v3067
        %3147 = vmatpush1.xpose.msra.mxu0 %v3066
        %3148 = vmatprep.subr.mxu0 %v3069
        %3149 = vmatpush1.xpose.msra.mxu0 %v3068
        %3150 = vmatprep.subr.mxu0 %v3071
        %3151 = vmatpush1.xpose.msra.mxu0 %v3070
        %3152 = vmatprep.subr.mxu0 %v3073
        %3153 = vmatpush1.xpose.msra.mxu0 %v3072
        %3154 = vmatprep.subr.mxu0 %v3075
        %3155 = vmatpush1.xpose.msra.mxu0 %v3074
        %3156 = vmatprep.subr.mxu0 %v3077
        %3157 = vmatpush1.xpose.msra.mxu0 %v3076
        %3158 = vmatprep.subr.mxu0 %v3079
        %3159 = vmatpush1.xpose.msra.mxu0 %v3078
        %3160 = vmatprep.subr.mxu0 %v3081
        %3161 = vmatpush1.xpose.msra.mxu0 %v3080
        %3162 = vmatprep.subr.mxu0 %v3083
        %3163 = vmatpush1.xpose.msra.mxu0 %v3082
        %3164 = vmatprep.subr.mxu0 %v3085
        %3165 = vmatpush1.xpose.msra.mxu0 %v3084
        %3166 = vmatprep.subr.mxu0 %v3087
        %3167 = vmatpush1.xpose.msra.mxu0 %v3086
        %3168 = vmatprep.subr.mxu0 %v3089
        %3169 = vmatpush1.xpose.msra.mxu0 %v3088
        %3170 = vmatprep.subr.mxu0 %v3091
        %3171 = vmatpush1.xpose.msra.mxu0 %v3090
        %3172 = vmatprep.subr.mxu0 %v3093
        %3173 = vmatpush1.xpose.msra.mxu0 %v3092
        %3174 = vmatprep.subr.mxu0 %v3095
        %3175 = vmatpush1.xpose.msra.mxu0 %v3094
        %3176 = vmatprep.subr.mxu0 %v3097
        %3177 = vmatpush1.xpose.msra.mxu0 %v3096
        %3178 = vmatprep.subr.mxu0 %v3099
        %3179 = vmatpush1.xpose.msra.mxu0 %v3098
        %3180 = vmatprep.subr.mxu0 %v3101
        %3181 = vmatpush1.xpose.msra.mxu0 %v3100
        %3182 = vmatprep.subr.mxu0 %v3103
        %3183 = vmatpush1.xpose.msra.mxu0 %v3102
        %3184 = vmatprep.subr.mxu0 %v3105
        %3185 = vmatpush1.xpose.msra.mxu0 %v3104
        %3186 = vmatprep.subr.mxu0 %v3107
        %3187 = vmatpush1.xpose.msra.mxu0 %v3106
        %3188 = vmatprep.subr.mxu0 %v3109
        %3189 = vmatpush1.xpose.msra.mxu0 %v3108
        %3190 = vmatprep.subr.mxu0 %v3111
        %3191 = vmatpush1.xpose.msra.mxu0 %v3110
        %3192 = vmatprep.subr.mxu0 %v3113
        %3193 = vmatpush1.xpose.msra.mxu0 %v3112
        %3194 = vmatprep.subr.mxu0 %v3115
        %3195 = vmatpush1.xpose.msra.mxu0 %v3114
        %3196 = vmatprep.subr.mxu0 %v3117
        %3197 = vmatpush1.xpose.msra.mxu0 %v3116
        %3198 = vmatprep.subr.mxu0 %v3119
        %3199 = vmatpush1.xpose.msra.mxu0 %v3118
        %3200 = vmatprep.subr.mxu0 %v3121
        %3201 = vmatpush1.xpose.msra.mxu0 %v3120
        %3202 = vmatprep.subr.mxu0 %v3123
        %3203 = vmatpush1.xpose.msra.mxu0 %v3122
        %3204 = vmatprep.subr.mxu0 %v3125
        %3205 = vmatpush1.xpose.msra.mxu0 %v3124
        %3206 = vmatprep.subr.mxu0 %v3127
        %3207 = vmatpush1.xpose.msra.mxu0 %v3126
        %3208 = vmatprep.subr.mxu0 %v3129
        %3209 = vmatpush1.xpose.msra.mxu0 %v3128
        %3210 = vmatprep.mubr.f32.mxu0 %v3143
        %3211 = vmatmul.mubr.f32.gmra.mrb[0].mxu0 %v3139
        %v3212 = vpop.f32.mrb[0].mxu0
        %v3213 = vadd.f32 %v3133, %v3212
        %v3214 = vpop.f32.mrb[0].mxu0
        %v3215 = vadd.f32 %v3133, %v3214
        %3216 = vdwg.mxu0
        %v3219 = vcombine.low %v3213, %v3215
        %v3221 = vunpack.c.l.s4 1966171168
        %v3222 = vunpack.c.0.s8 %v3221
        %v3223 = vlaneseq
        %v3224 = vshrl.u32 %v3223, 7
        %v3225 = vsub.s32 %v3222, %v3224
        %v3226 = vrot.slane %v3219, %v3225
        %v3228 = vunpack.c.l.s4 1966171168
        %v3229 = vunpack.c.0.s8 %v3228
        %v3230 = vlaneseq
        %v3231 = vshrl.u32 %v3230, 7
        %v3232 = vsub.s32 %v3229, %v3231
        %v3233 = vrot.slane %v3226, %v3232
        %v3235 = vlaneseq
        %vm3236 = vcmp.ge.s32.totalorder %v3235, 0
        %vm3237 = vcmp.lt.s32.totalorder %v3235, 256
        %vm3238 = vmand %vm3236, %vm3237
        %3239 = vst.msk [vmem:[%s261] sm:$0x3] %vm3238, %v3233
        %s3240 = sand.u32 %s164, 1
        %s3241 = scalar_lea.sflag [#allocation3], %s3240
        %s3242 = sand.u32 %s164, 1
        %s3243 = smul.addr %s3242, 2
        %s3244 = scalar_lea.vmem [#allocation2], %s3243
        // Predicated region
        $region45: #{tpu_custom_call.1} parent=43 // pred_check
          %p3245 = pneg %p174
        $region46: #{tpu_custom_call.1} parent=43 // pred_check_branch
          %3247 = sbr.rel (%p3245) target = $region48
        $region47: #{tpu_custom_call.1} parent=43 // pred_region
          %s3248 = smul.u32 2, %s20
          %s3250 = ssub.s32 32, 32
          %3251 = vsyncadd %s3241, %s3250
          %s3252 = smul.addr %s3248, 16
          %s3253 = scalar_lea.hbm %s6, %s3252
          %s3255 = sshll.u32 %s3244, 4
          %s3256 = int_to_ptr.vmem [resolvable:$true] %s3255
          %3258 = dma.vmem_to_hbm [thread:$0]  %s3256, 32, %s3253, %s3241
        $region48: #{tpu_custom_call.1} parent=43 // pred_fallthru
          _
      $region44: #{tpu_custom_call.1} parent=5 // pred_fallthru
        _
      %p3259 = scmp.le.s32.totalorder 2, %s15
      // Predicated region
      $region49: #{tpu_custom_call.1} parent=5 // pred_check
        %p3260 = pneg %p3259
      $region50: #{tpu_custom_call.1} parent=5 // pred_check_branch
        %3262 = sbr.rel (%p3260) target = $region52
      $region51: #{tpu_custom_call.1} parent=5 // pred_region
        %s3263 = ssub.s32 %s15, 2
        // Predicated region
        $region53: #{tpu_custom_call.1} parent=51 // pred_check
          %p3264 = pneg %p180
        $region54: #{tpu_custom_call.1} parent=51 // pred_check_branch
          %3266 = sbr.rel (%p3264) target = $region56
        $region55: #{tpu_custom_call.1} parent=51 // pred_region
          %s3267 = sand.u32 %s165, 1
          %s3268 = scalar_lea.sflag [#allocation3], %s3267
          %s3269 = sand.u32 %s165, 1
          %s3270 = smul.addr %s3269, 2
          %s3271 = scalar_lea.vmem [#allocation2], %s3270
          %3272 = dma.done %s3268, 32
        $region56: #{tpu_custom_call.1} parent=51 // pred_fallthru
          _
      $region52: #{tpu_custom_call.1} parent=5 // pred_fallthru
        _
    $region6: #{tpu_custom_call.1} parent=1 // loop_footer
      %s19 = sadd.s32 1, %s15
    $region7: #{tpu_custom_call.1} parent=1 // loop_footer_branch
      %14 = sbr.rel target = $region3
    $region8: #{tpu_custom_call.1} parent=1 // loop_exit
      _
    %3273 = vsyncpa [#allocation3], 1
    %s3274 = scalar_lea.sflag [#allocation3], 1
    %3275 = vsyncpa %s3274, 1

</llo_original>
